<compile_context>
chip_gen: v5e
topology: v5e:2x2
jax: 0.10.0
libtpu: 0.0.40
codegen_flags: <defaults>
</compile_context>

<pallas_src>
import math
from functools import partial

import jax
import jax.numpy as jnp
from jax.experimental import pallas as pl
from jax.experimental.pallas import tpu as pltpu

LN_EPS = 1e-5  # PyTorch nn.LayerNorm default


def _gelu(x, exact):
    # exact erf GELU == PyTorch F.gelu default; tanh approx routes to the EUP.
    return jax.nn.gelu(x, approximate=not exact)


# --------------------------------------------------------------------------- #
# Kernel
# --------------------------------------------------------------------------- #
def gmlp_kernel(x_ref,
                ln1_g_ref, ln1_b_ref,
                w1u_ref, w1v_ref,
                b1u_ref, b1v_ref,
                ln2_g_ref, ln2_b_ref,
                ws_ref, bs_ref,
                w2_ref, b2_ref,
                o_ref,
                xn_ref, vcache_ref, vsum_ref, vsq_ref, acc_ref,
                *, exact_gelu):
    p = pl.program_id(1)            # phase: 0 = stats pass, 1 = main pass
    c = pl.program_id(2)            # d_ffn chunk index
    nc = pl.num_programs(2)

    f32, bf16 = jnp.float32, jnp.bfloat16
    S = ws_ref.shape[0]                              # seq_len (static)
    Bb = xn_ref.shape[0] // S                        # batch elements per group
    Fc = vcache_ref.shape[2]                         # chunk width
    d_ffn = vcache_ref.shape[0] * Fc                 # NC * Fc (static)

    # ---- per-group init: LayerNorm(d_model) once, cached as bf16 ------------
    @pl.when((p == 0) & (c == 0))
    def _init():
        x = x_ref[0].astype(f32)
        mu = jnp.mean(x, axis=-1, keepdims=True)
        xc = x - mu
        var = jnp.mean(xc * xc, axis=-1, keepdims=True)   # two-pass: no cancellation
        xn = xc * jax.lax.rsqrt(var + LN_EPS) * ln1_g_ref[...] + ln1_b_ref[...]
        xn_ref[...] = xn.astype(bf16)
        vsum_ref[...] = jnp.zeros_like(vsum_ref)
        vsq_ref[...] = jnp.zeros_like(vsq_ref)

    # ---- phase 0: v-half chunk of channel_proj1, cache + LN2 statistics -----
    @pl.when(p == 0)
    def _phase0():
        v = jnp.dot(xn_ref[...], w1v_ref[...], preferred_element_type=f32)
        v = _gelu(v + b1v_ref[c], exact_gelu)
        # Stats from the f32 value (pre bf16 cast): saves one (rows,Fc) convert.
        vsum_ref[...] += jnp.sum(v, axis=-1, keepdims=True)
        vsq_ref[...] += jnp.sum(v * v, axis=-1, keepdims=True)
        vcache_ref[c] = v.astype(bf16)

    # ---- phase 1, first chunk: finalize LN2 stats, zero output accumulator --
    @pl.when((p == 1) & (c == 0))
    def _stats():
        mu = vsum_ref[...] * (1.0 / d_ffn)
        var = vsq_ref[...] * (1.0 / d_ffn) - mu * mu
        vsum_ref[...] = mu                                  # reused as mean
        vsq_ref[...] = jax.lax.rsqrt(var + LN_EPS)          # reused as rstd
        acc_ref[...] = jnp.zeros_like(acc_ref)

    # ---- phase 1: u chunk, SGU (LN2 + spatial matmul + gate), proj2 accum ---
    @pl.when(p == 1)
    def _phase1():
        u = jnp.dot(xn_ref[...], w1u_ref[...], preferred_element_type=f32)
        u = _gelu(u + b1u_ref[c], exact_gelu)
        vq = vcache_ref[c].astype(f32)
        vn = (vq - vsum_ref[...]) * vsq_ref[...] * ln2_g_ref[c] + ln2_b_ref[c]
        vn = vn.astype(bf16)
        # Conv1d(seq_len, seq_len, 1): out[b,i,:] = sum_j W[i,j] * vn[b,j,:] + b[i]
        if Bb == 1:
            vs = jnp.dot(ws_ref[...], vn, preferred_element_type=f32) + bs_ref[...]
        else:
            vs = jnp.concatenate(
                [jnp.dot(ws_ref[...], vn[i * S:(i + 1) * S],
                         preferred_element_type=f32) + bs_ref[...]
                 for i in range(Bb)], axis=0)
        g = (u * vs).astype(bf16)
        acc_ref[...] += jnp.dot(g, w2_ref[...], preferred_element_type=f32)

    # ---- phase 1, last chunk: bias + residual, write output -----------------
    @pl.when((p == 1) & (c == nc - 1))
    def _finalize():
        o_ref[0] = (acc_ref[...] + b2_ref[...]
                    + x_ref[0].astype(f32)).astype(o_ref.dtype)


# --------------------------------------------------------------------------- #
# Sizing helpers
# --------------------------------------------------------------------------- #
def _buf_bytes(shape, dtype):
    """Rough VMEM footprint of one buffer with (8,128) tile padding."""
    shape = tuple(shape)
    if len(shape) < 2:
        shape = (1,) * (2 - len(shape)) + shape
    lead = math.prod(shape[:-2]) if len(shape) > 2 else 1
    r = -(-shape[-2] // 8) * 8
    c = -(-shape[-1] // 128) * 128
    return lead * r * c * jnp.dtype(dtype).itemsize


def _vmem_capacity_bytes():
    try:
        info = pltpu.get_tpu_info()
        for attr in ("vmem_capacity_bytes", "vmem_size_bytes", "vmem_bytes"):
            v = getattr(info, attr, None)
            if v:
                return int(v)
    except Exception:
        pass
    return 64 << 20   # conservative fallback: v7x per-TC VMEM


def _vmem_estimate(Bb, S, D, Fd, Fc, xdtype):
    """Double-buffered I/O blocks + persistent scratch."""
    bf16, f32 = jnp.bfloat16, jnp.float32
    NC = Fd // Fc
    blocks = [
        ((1, Bb * S, D), xdtype),                         # x
        ((1, D), f32), ((1, D), f32),                     # ln1 gamma / beta
        ((D, Fc), bf16), ((D, Fc), bf16),                 # w1 u / v chunks
        ((NC, 1, Fc), f32), ((NC, 1, Fc), f32),           # b1 u / v (resident)
        ((NC, 1, Fc), f32), ((NC, 1, Fc), f32),           # ln2 gamma / beta
        ((S, S), bf16), ((S, 1), f32),                    # spatial W / bias
        ((Fc, D), bf16), ((1, D), f32),                   # w2 chunk / b2
        ((1, Bb * S, D), xdtype),                         # out
    ]
    est = 2 * sum(_buf_bytes(s, d) for s, d in blocks)
    est += (_buf_bytes((Bb * S, D), bf16)                 # cached LN1(x)
            + NC * _buf_bytes((Bb * S, Fc), bf16)         # cached v chunks
            + 2 * _buf_bytes((Bb * S, 1), f32)            # LN2 running stats
            + _buf_bytes((Bb * S, D), f32))               # output accumulator
    return est


def _pick_fc(Fd, max_chunk, fits):
    """Largest divisor of Fd <= max_chunk that fits, preferring 256-aligned."""
    cands = ([fc for fc in range(128, Fd + 1, 128) if Fd % fc == 0]
             if Fd % 128 == 0 else [])
    cands = cands or [Fd]
    pref = ([fc for fc in cands if fc <= max_chunk and fc % 256 == 0]
            or [fc for fc in cands if fc <= max_chunk]
            or cands)
    for fc in sorted(pref, reverse=True):
        if fits(fc):
            return fc
    return min(cands)


def _pick_bb(B, fits):
    """Largest batch block that fits VMEM while keeping >=2 batch groups
    (so the megacore-parallel grid axis can feed both v7x TensorCores)."""
    divs = [d for d in range(1, B + 1) if B % d == 0]
    fitting = [d for d in divs if fits(d)]
    if not fitting:
        return 1
    pref = [d for d in fitting if B // d >= 2] or fitting
    return max(pref)


# --------------------------------------------------------------------------- #
# Wrapper
# --------------------------------------------------------------------------- #
def gmlp_block(x, params, *, max_chunk=None, batch_block=None, exact_gelu=False):
    B, S, D = x.shape
    Fd = params["w2"].shape[0]
    assert params["w1"].shape == (D, 2 * Fd)

    bf16, f32 = jnp.bfloat16, jnp.float32

    cap = _vmem_capacity_bytes()
    budget = cap // 2                 # keep the working set under ~half of VMEM
    if max_chunk is None:
        # Generation-aware: v7x (64 MiB VMEM) -> smaller chunks than v5e/v6e.
        max_chunk = 512 if cap <= (64 << 20) else 1024

    Fc = _pick_fc(Fd, max_chunk,
                  lambda fc: _vmem_estimate(1, S, D, Fd, fc, x.dtype) <= budget)
    NC = Fd // Fc

    if batch_block is None:
        Bb = _pick_bb(B, lambda bb: _vmem_estimate(bb, S, D, Fd, Fc, x.dtype)
                      <= budget)
    else:
        Bb = batch_block
    assert B % Bb == 0
    G = B // Bb

    est = _vmem_estimate(Bb, S, D, Fd, Fc, x.dtype)
    # Headroom below physical VMEM: never request the full capacity (esp. v7x).
    vmem_limit = int(min(max(2 * est, 32 << 20), int(0.75 * cap)))

    # bf16 MXU operands; bias / LN vectors stay f32 and fully VMEM-resident,
    # reshaped so the chunk index is a leading (cheap-to-index) dimension.
    w1u = params["w1"][:, :Fd].astype(bf16)
    w1v = params["w1"][:, Fd:].astype(bf16)
    w2 = params["w2"].astype(bf16)
    ws = params["w_spatial"].astype(bf16)
    b1u = params["b1"][:, :Fd].reshape(NC, 1, Fc)
    b1v = params["b1"][:, Fd:].reshape(NC, 1, Fc)
    ln2_g = params["ln2_g"].reshape(NC, 1, Fc)
    ln2_b = params["ln2_b"].reshape(NC, 1, Fc)

    # Phase-aware index maps: "u-side" chunks (w1u / w2) are consumed in
    # phase 1 and pinned at chunk 0 during phase 0; "v-side" chunks (w1v) are
    # consumed in phase 0 and pinned at the last chunk during phase 1, so each
    # weight chunk is DMA'd exactly once per batch group of Bb elements.
    u_side = lambda g, p, c: (0, c * p)
    u_side_t = lambda g, p, c: (c * p, 0)                       # w2 is (Fd, D)
    v_side = lambda g, p, c: (0, c * (1 - p) + (NC - 1) * p)
    const = lambda shape: pl.BlockSpec(shape, lambda g, p, c: (0,) * len(shape))

    in_specs = [
        pl.BlockSpec((1, Bb * S, D), lambda g, p, c: (g, 0, 0)),  # x (per group)
        const((1, D)), const((1, D)),                             # ln1 gamma/beta
        pl.BlockSpec((D, Fc), u_side),                            # w1 u-half chunk
        pl.BlockSpec((D, Fc), v_side),                            # w1 v-half chunk
        const((NC, 1, Fc)), const((NC, 1, Fc)),                   # b1 u / v (resident)
        const((NC, 1, Fc)), const((NC, 1, Fc)),                   # ln2 gamma / beta
        const((S, S)), const((S, 1)),                             # spatial W / bias
        pl.BlockSpec((Fc, D), u_side_t),                          # w2 chunk
        const((1, D)),                                            # b2
    ]
    out_spec = pl.BlockSpec((1, Bb * S, D), lambda g, p, c: (g, 0, 0))

    scratch = [
        pltpu.VMEM((Bb * S, D), bf16),        # cached LN1(x)
        pltpu.VMEM((NC, Bb * S, Fc), bf16),   # cached v chunks (pre-LN2)
        pltpu.VMEM((Bb * S, 1), f32),         # running sum(v)   -> mean
        pltpu.VMEM((Bb * S, 1), f32),         # running sum(v^2) -> rstd
        pltpu.VMEM((Bb * S, D), f32),         # proj2 accumulator
    ]

    xg = x.reshape(G, Bb * S, D)              # host-side view: batch groups
    out = pl.pallas_call(
        partial(gmlp_kernel, exact_gelu=exact_gelu),
        out_shape=jax.ShapeDtypeStruct((G, Bb * S, D), x.dtype),
        grid_spec=pltpu.PrefetchScalarGridSpec(
            num_scalar_prefetch=0,
            grid=(G, 2, NC),
            in_specs=in_specs,
            out_specs=out_spec,
            scratch_shapes=scratch,
        ),
        compiler_params=pltpu.CompilerParams(
            dimension_semantics=("parallel", "arbitrary", "arbitrary"),
            vmem_limit_bytes=vmem_limit,
        ),
    )(xg,
      params["ln1_g"], params["ln1_b"],
      w1u, w1v, b1u, b1v,
      ln2_g, ln2_b,
      ws, params["b_spatial"],
      w2, params["b2"])
    return out.reshape(B, S, D)


# --------------------------------------------------------------------------- #
# Params + references
# --------------------------------------------------------------------------- #
def make_params(key, d_model, d_ffn, seq_len):
    ks = jax.random.split(key, 5)
    scale = 0.05
    return {
        "ln1_g": jnp.ones((1, d_model), jnp.float32),
        "ln1_b": jnp.zeros((1, d_model), jnp.float32),
        "w1": scale * jax.random.normal(ks[0], (d_model, 2 * d_ffn), jnp.float32),
        "b1": scale * jax.random.normal(ks[1], (1, 2 * d_ffn), jnp.float32),
        "ln2_g": jnp.ones((1, d_ffn), jnp.float32),
        "ln2_b": jnp.zeros((1, d_ffn), jnp.float32),
        "w_spatial": scale * jax.random.normal(ks[2], (seq_len, seq_len), jnp.float32),
        "b_spatial": jnp.ones((seq_len, 1), jnp.float32),   # Conv1d bias init = 1.0
        "w2": scale * jax.random.normal(ks[3], (d_ffn, d_model), jnp.float32),
        "b2": scale * jax.random.normal(ks[4], (1, d_model), jnp.float32),
    }


def _layernorm(x, gamma, beta, eps=LN_EPS):
    mu = jnp.mean(x, axis=-1, keepdims=True)
    var = jnp.mean(jnp.square(x - mu), axis=-1, keepdims=True)
    return (x - mu) * jax.lax.rsqrt(var + eps) * gamma + beta


def gmlp_block_ref_f32(x, p):
    """Plain-JAX f32 reference mirroring the PyTorch forward (exact erf GELU)."""
    Fd = p["w2"].shape[0]
    xn = _layernorm(x, p["ln1_g"][0], p["ln1_b"][0])
    h = jax.nn.gelu(xn @ p["w1"] + p["b1"][0], approximate=False)
    u, v = h[..., :Fd], h[..., Fd:]
    vn = _layernorm(v, p["ln2_g"][0], p["ln2_b"][0])
    vs = jnp.einsum("ij,bjf->bif", p["w_spatial"], vn) + p["b_spatial"][None]
    return (u * vs) @ p["w2"] + p["b2"][0] + x


def gmlp_block_ref_mixed(x, p, *, exact_gelu=False):
    """Reference mirroring the kernel's mixed precision: bf16 MXU operands,
    f32 accumulation, LN2 stats from the f32 v, normalization of the bf16
    cached v."""
    bf16, f32 = jnp.bfloat16, jnp.float32
    Fd = p["w2"].shape[0]
    xn = _layernorm(x, p["ln1_g"][0], p["ln1_b"][0]).astype(bf16)
    w1u, w1v = p["w1"][:, :Fd].astype(bf16), p["w1"][:, Fd:].astype(bf16)
    u = _gelu(jnp.dot(xn, w1u, preferred_element_type=f32) + p["b1"][:, :Fd],
              exact_gelu)
    v = _gelu(jnp.dot(xn, w1v, preferred_element_type=f32) + p["b1"][:, Fd:],
              exact_gelu)
    mu = jnp.mean(v, axis=-1, keepdims=True)
    var = jnp.mean(v * v, axis=-1, keepdims=True) - mu * mu
    vq = v.astype(bf16).astype(f32)
    vn = (vq - mu) * jax.lax.rsqrt(var + LN_EPS) * p["ln2_g"][0] + p["ln2_b"][0]
    vs = jnp.einsum("ij,bjf->bif", p["w_spatial"].astype(bf16), vn.astype(bf16),
                    preferred_element_type=f32) + p["b_spatial"][None]
    g = (u * vs).astype(bf16)
    return jnp.dot(g, p["w2"].astype(bf16), preferred_element_type=f32) + p["b2"][0] + x


# --------------------------------------------------------------------------- #
# Demo / test
# --------------------------------------------------------------------------- #
if __name__ == "__main__":
    # Small but MXU/lane-aligned shapes: batch=4, seq_len=128, d_model=128, d_ffn=256.
    B, S, D, Fd = 4, 128, 128, 256

    key = jax.random.PRNGKey(0)
    kx, kp = jax.random.split(key)
    x = jax.random.normal(kx, (B, S, D), jnp.float32)
    params = make_params(kp, D, Fd, S)

    ref_f32 = gmlp_block_ref_f32(x, params)       # true module semantics (f32, erf)

    # 1) max_chunk=128 -> 2 d_ffn chunks + batch-blocked groups (Bb=2):
    #    exercises the chunked accumulation path with tanh GELU (default).
    out = jax.block_until_ready(gmlp_block(x, params, max_chunk=128))
    assert out.shape == (B, S, D)
    ref_mixed = gmlp_block_ref_mixed(x, params)   # same numerics as the kernel
    assert jnp.allclose(out, ref_mixed, atol=2e-3, rtol=2e-3), \
        "mismatch vs mixed-precision reference (tanh GELU)"
    assert jnp.allclose(out, ref_f32, atol=1e-1, rtol=1e-1), \
        "mismatch vs f32 reference"

    # 2) Auto-configured chunk/batch-block, exact erf GELU for PyTorch parity.
    out2 = jax.block_until_ready(gmlp_block(x, params, exact_gelu=True))
    ref_mixed_exact = gmlp_block_ref_mixed(x, params, exact_gelu=True)
    assert jnp.allclose(out2, ref_mixed_exact, atol=2e-3, rtol=2e-3), \
        "mismatch vs mixed-precision reference (erf GELU)"
    assert jnp.allclose(out2, ref_f32, atol=1e-1, rtol=1e-1), \
        "mismatch vs f32 reference (erf GELU)"

    print("KERNEL_OK")
</pallas_src>

<mosaic_0001>
module attributes {stable_mosaic.version = 11 : i64} {
  func.func @gmlp_kernel(%arg0: i32, %arg1: i32, %arg2: i32, %arg3: memref<1x256x128xf32, #tpu.memory_space<vmem>>, %arg4: memref<1x128xf32, #tpu.memory_space<vmem>>, %arg5: memref<1x128xf32, #tpu.memory_space<vmem>>, %arg6: memref<128x128xbf16, #tpu.memory_space<vmem>>, %arg7: memref<128x128xbf16, #tpu.memory_space<vmem>>, %arg8: memref<2x1x128xf32, #tpu.memory_space<vmem>>, %arg9: memref<2x1x128xf32, #tpu.memory_space<vmem>>, %arg10: memref<2x1x128xf32, #tpu.memory_space<vmem>>, %arg11: memref<2x1x128xf32, #tpu.memory_space<vmem>>, %arg12: memref<128x128xbf16, #tpu.memory_space<vmem>>, %arg13: memref<128x1xf32, #tpu.memory_space<vmem>>, %arg14: memref<128x128xbf16, #tpu.memory_space<vmem>>, %arg15: memref<1x128xf32, #tpu.memory_space<vmem>>, %arg16: memref<1x256x128xf32, #tpu.memory_space<vmem>>, %arg17: memref<256x128xbf16, #tpu.memory_space<vmem>>, %arg18: memref<2x256x128xbf16, #tpu.memory_space<vmem>>, %arg19: memref<256x1xf32, #tpu.memory_space<vmem>>, %arg20: memref<256x1xf32, #tpu.memory_space<vmem>>, %arg21: memref<256x128xf32, #tpu.memory_space<vmem>>) attributes {dimension_semantics = [#tpu.dimension_semantics<parallel>, #tpu.dimension_semantics<arbitrary>, #tpu.dimension_semantics<arbitrary>], iteration_bounds = array<i64: 2, 2, 2>, scalar_prefetch = 0 : i64, scratch_operands = 5 : i64, tpu.core_type = #tpu.core_type<tc>, window_params = [{transform_indices = @transform_0, window_bounds = array<i64: 1, 256, 128>}, {pipeline_mode = #tpu.pipeline_mode<synchronous>, transform_indices = @transform_1, window_bounds = array<i64: 1, 128>}, {pipeline_mode = #tpu.pipeline_mode<synchronous>, transform_indices = @transform_2, window_bounds = array<i64: 1, 128>}, {transform_indices = @transform_3, window_bounds = array<i64: 128, 128>}, {transform_indices = @transform_4, window_bounds = array<i64: 128, 128>}, {pipeline_mode = #tpu.pipeline_mode<synchronous>, transform_indices = @transform_5, window_bounds = array<i64: 2, 1, 128>}, {pipeline_mode = #tpu.pipeline_mode<synchronous>, transform_indices = @transform_6, window_bounds = array<i64: 2, 1, 128>}, {pipeline_mode = #tpu.pipeline_mode<synchronous>, transform_indices = @transform_7, window_bounds = array<i64: 2, 1, 128>}, {pipeline_mode = #tpu.pipeline_mode<synchronous>, transform_indices = @transform_8, window_bounds = array<i64: 2, 1, 128>}, {pipeline_mode = #tpu.pipeline_mode<synchronous>, transform_indices = @transform_9, window_bounds = array<i64: 128, 128>}, {pipeline_mode = #tpu.pipeline_mode<synchronous>, transform_indices = @transform_10, window_bounds = array<i64: 128, 1>}, {transform_indices = @transform_11, window_bounds = array<i64: 128, 128>}, {pipeline_mode = #tpu.pipeline_mode<synchronous>, transform_indices = @transform_12, window_bounds = array<i64: 1, 128>}, {transform_indices = @transform_13, window_bounds = array<i64: 1, 256, 128>}]} {
    %c0_i32 = arith.constant 0 : i32
    %0 = arith.cmpi eq, %arg1, %c0_i32 : i32
    %c0_i32_0 = arith.constant 0 : i32
    %1 = arith.cmpi eq, %arg2, %c0_i32_0 : i32
    %2 = arith.andi %0, %1 : i1
    %3 = arith.extui %2 : i1 to i32
    %c0_i32_1 = arith.constant 0 : i32
    %4 = arith.cmpi ne, %3, %c0_i32_1 : i32
    scf.if %4 {
      %c0 = arith.constant 0 : index
      %c0_11 = arith.constant 0 : index
      %c0_12 = arith.constant 0 : index
      %21 = vector.load %arg3[%c0, %c0_11, %c0_12] : memref<1x256x128xf32, #tpu.memory_space<vmem>>, vector<1x256x128xf32>
      %22 = vector.shape_cast %21 : vector<1x256x128xf32> to vector<256x128xf32>
      %cst = arith.constant dense<0.000000e+00> : vector<256xf32>
      %23 = vector.multi_reduction <add>, %22, %cst [1] : vector<256x128xf32> to vector<256xf32>
      %24 = vector.shape_cast %23 : vector<256xf32> to vector<256x1xf32>
      %cst_13 = arith.constant 1.280000e+02 : f32
      %25 = vector.broadcast %cst_13 : f32 to vector<256x1xf32>
      %26 = arith.divf %24, %25 : vector<256x1xf32>
      %27 = vector.broadcast %26 : vector<256x1xf32> to vector<256x128xf32>
      %28 = arith.subf %22, %27 : vector<256x128xf32>
      %29 = arith.mulf %28, %28 : vector<256x128xf32>
      %cst_14 = arith.constant dense<0.000000e+00> : vector<256xf32>
      %30 = vector.multi_reduction <add>, %29, %cst_14 [1] : vector<256x128xf32> to vector<256xf32>
      %31 = vector.shape_cast %30 : vector<256xf32> to vector<256x1xf32>
      %cst_15 = arith.constant 1.280000e+02 : f32
      %32 = vector.broadcast %cst_15 : f32 to vector<256x1xf32>
      %33 = arith.divf %31, %32 : vector<256x1xf32>
      %cst_16 = arith.constant 9.99999974E-6 : f32
      %34 = vector.broadcast %cst_16 : f32 to vector<256x1xf32>
      %35 = arith.addf %33, %34 : vector<256x1xf32>
      %36 = math.rsqrt %35 : vector<256x1xf32>
      %37 = vector.broadcast %36 : vector<256x1xf32> to vector<256x128xf32>
      %38 = arith.mulf %28, %37 : vector<256x128xf32>
      %c0_17 = arith.constant 0 : index
      %c0_18 = arith.constant 0 : index
      %39 = vector.load %arg4[%c0_17, %c0_18] : memref<1x128xf32, #tpu.memory_space<vmem>>, vector<1x128xf32>
      %40 = vector.broadcast %39 : vector<1x128xf32> to vector<256x128xf32>
      %41 = arith.mulf %38, %40 : vector<256x128xf32>
      %c0_19 = arith.constant 0 : index
      %c0_20 = arith.constant 0 : index
      %42 = vector.load %arg5[%c0_19, %c0_20] : memref<1x128xf32, #tpu.memory_space<vmem>>, vector<1x128xf32>
      %43 = vector.broadcast %42 : vector<1x128xf32> to vector<256x128xf32>
      %44 = arith.addf %41, %43 : vector<256x128xf32>
      %45 = arith.truncf %44 : vector<256x128xf32> to vector<256x128xbf16>
      %c0_21 = arith.constant 0 : index
      %c0_22 = arith.constant 0 : index
      %46 = vector.load %arg17[%c0_21, %c0_22] : memref<256x128xbf16, #tpu.memory_space<vmem>>, vector<256x128xbf16>
      tpu.vector_store %arg17[%c0_21, %c0_22], %45 {strides = array<i32>} : memref<256x128xbf16, #tpu.memory_space<vmem>>, vector<256x128xbf16>,
      %cst_23 = arith.constant 0.000000e+00 : f32
      %47 = vector.broadcast %cst_23 : f32 to vector<256x1xf32>
      %c0_24 = arith.constant 0 : index
      %c0_25 = arith.constant 0 : index
      %48 = vector.load %arg19[%c0_24, %c0_25] : memref<256x1xf32, #tpu.memory_space<vmem>>, vector<256x1xf32>
      tpu.vector_store %arg19[%c0_24, %c0_25], %47 {strides = array<i32>} : memref<256x1xf32, #tpu.memory_space<vmem>>, vector<256x1xf32>,
      %cst_26 = arith.constant 0.000000e+00 : f32
      %49 = vector.broadcast %cst_26 : f32 to vector<256x1xf32>
      %c0_27 = arith.constant 0 : index
      %c0_28 = arith.constant 0 : index
      %50 = vector.load %arg20[%c0_27, %c0_28] : memref<256x1xf32, #tpu.memory_space<vmem>>, vector<256x1xf32>
      tpu.vector_store %arg20[%c0_27, %c0_28], %49 {strides = array<i32>} : memref<256x1xf32, #tpu.memory_space<vmem>>, vector<256x1xf32>,
    } else {
    }
    %c0_i32_2 = arith.constant 0 : i32
    %5 = arith.cmpi eq, %arg1, %c0_i32_2 : i32
    %6 = arith.extui %5 : i1 to i32
    %c0_i32_3 = arith.constant 0 : i32
    %7 = arith.cmpi ne, %6, %c0_i32_3 : i32
    scf.if %7 {
      %c0 = arith.constant 0 : index
      %c0_11 = arith.constant 0 : index
      %21 = vector.load %arg17[%c0, %c0_11] : memref<256x128xbf16, #tpu.memory_space<vmem>>, vector<256x128xbf16>
      %c0_12 = arith.constant 0 : index
      %c0_13 = arith.constant 0 : index
      %22 = vector.load %arg7[%c0_12, %c0_13] : memref<128x128xbf16, #tpu.memory_space<vmem>>, vector<128x128xbf16>
      %cst = arith.constant dense<0.000000e+00> : vector<256x128xf32>
      %23 = tpu.matmul %21, %22, %cst {dimension_numbers = #tpu.dot_dimension_numbers<[1], [0], [0], [1], [0, 0, 1, 1], [], []>} : vector<256x128xbf16>, vector<128x128xbf16>, vector<256x128xf32> -> vector<256x128xf32>
      %24 = arith.index_cast %arg2 : i32 to index
      %c0_14 = arith.constant 0 : index
      %c0_15 = arith.constant 0 : index
      %25 = vector.load %arg9[%24, %c0_14, %c0_15] : memref<2x1x128xf32, #tpu.memory_space<vmem>>, vector<1x1x128xf32>
      %26 = vector.shape_cast %25 : vector<1x1x128xf32> to vector<1x128xf32>
      %27 = vector.broadcast %26 : vector<1x128xf32> to vector<256x128xf32>
      %28 = arith.addf %23, %27 : vector<256x128xf32>
      %29 = arith.mulf %28, %28 : vector<256x128xf32>
      %30 = arith.mulf %28, %29 : vector<256x128xf32>
      %cst_16 = arith.constant 4.471500e-02 : f32
      %31 = vector.broadcast %cst_16 : f32 to vector<256x128xf32>
      %32 = arith.mulf %31, %30 : vector<256x128xf32>
      %33 = arith.addf %28, %32 : vector<256x128xf32>
      %cst_17 = arith.constant 0.797884583 : f32
      %34 = vector.broadcast %cst_17 : f32 to vector<256x128xf32>
      %35 = arith.mulf %34, %33 : vector<256x128xf32>
      %36 = math.tanh %35 : vector<256x128xf32>
      %cst_18 = arith.constant 1.000000e+00 : f32
      %37 = vector.broadcast %cst_18 : f32 to vector<256x128xf32>
      %38 = arith.addf %37, %36 : vector<256x128xf32>
      %cst_19 = arith.constant 5.000000e-01 : f32
      %39 = vector.broadcast %cst_19 : f32 to vector<256x128xf32>
      %40 = arith.mulf %39, %38 : vector<256x128xf32>
      %41 = arith.mulf %28, %40 : vector<256x128xf32>
      %c0_20 = arith.constant 0 : index
      %c0_21 = arith.constant 0 : index
      %42 = vector.load %arg19[%c0_20, %c0_21] : memref<256x1xf32, #tpu.memory_space<vmem>>, vector<256x1xf32>
      %cst_22 = arith.constant dense<0.000000e+00> : vector<256xf32>
      %43 = vector.multi_reduction <add>, %41, %cst_22 [1] : vector<256x128xf32> to vector<256xf32>
      %44 = vector.shape_cast %43 : vector<256xf32> to vector<256x1xf32>
      %45 = arith.addf %42, %44 : vector<256x1xf32>
      %c0_23 = arith.constant 0 : index
      %c0_24 = arith.constant 0 : index
      %46 = vector.load %arg19[%c0_23, %c0_24] : memref<256x1xf32, #tpu.memory_space<vmem>>, vector<256x1xf32>
      tpu.vector_store %arg19[%c0_23, %c0_24], %45 {strides = array<i32>} : memref<256x1xf32, #tpu.memory_space<vmem>>, vector<256x1xf32>,
      %c0_25 = arith.constant 0 : index
      %c0_26 = arith.constant 0 : index
      %47 = vector.load %arg20[%c0_25, %c0_26] : memref<256x1xf32, #tpu.memory_space<vmem>>, vector<256x1xf32>
      %48 = arith.mulf %41, %41 : vector<256x128xf32>
      %cst_27 = arith.constant dense<0.000000e+00> : vector<256xf32>
      %49 = vector.multi_reduction <add>, %48, %cst_27 [1] : vector<256x128xf32> to vector<256xf32>
      %50 = vector.shape_cast %49 : vector<256xf32> to vector<256x1xf32>
      %51 = arith.addf %47, %50 : vector<256x1xf32>
      %c0_28 = arith.constant 0 : index
      %c0_29 = arith.constant 0 : index
      %52 = vector.load %arg20[%c0_28, %c0_29] : memref<256x1xf32, #tpu.memory_space<vmem>>, vector<256x1xf32>
      tpu.vector_store %arg20[%c0_28, %c0_29], %51 {strides = array<i32>} : memref<256x1xf32, #tpu.memory_space<vmem>>, vector<256x1xf32>,
      %53 = arith.truncf %41 : vector<256x128xf32> to vector<256x128xbf16>
      %54 = arith.index_cast %arg2 : i32 to index
      %c0_30 = arith.constant 0 : index
      %c0_31 = arith.constant 0 : index
      %55 = vector.load %arg18[%54, %c0_30, %c0_31] : memref<2x256x128xbf16, #tpu.memory_space<vmem>>, vector<1x256x128xbf16>
      %56 = vector.shape_cast %55 : vector<1x256x128xbf16> to vector<256x128xbf16>
      %57 = vector.shape_cast %53 : vector<256x128xbf16> to vector<1x256x128xbf16>
      tpu.vector_store %arg18[%54, %c0_30, %c0_31], %57 {strides = array<i32>} : memref<2x256x128xbf16, #tpu.memory_space<vmem>>, vector<1x256x128xbf16>,
    } else {
    }
    %c1_i32 = arith.constant 1 : i32
    %8 = arith.cmpi eq, %arg1, %c1_i32 : i32
    %c0_i32_4 = arith.constant 0 : i32
    %9 = arith.cmpi eq, %arg2, %c0_i32_4 : i32
    %10 = arith.andi %8, %9 : i1
    %11 = arith.extui %10 : i1 to i32
    %c0_i32_5 = arith.constant 0 : i32
    %12 = arith.cmpi ne, %11, %c0_i32_5 : i32
    scf.if %12 {
      %c0 = arith.constant 0 : index
      %c0_11 = arith.constant 0 : index
      %21 = vector.load %arg19[%c0, %c0_11] : memref<256x1xf32, #tpu.memory_space<vmem>>, vector<256x1xf32>
      %cst = arith.constant 3.906250e-03 : f32
      %22 = vector.broadcast %cst : f32 to vector<256x1xf32>
      %23 = arith.mulf %21, %22 : vector<256x1xf32>
      %c0_12 = arith.constant 0 : index
      %c0_13 = arith.constant 0 : index
      %24 = vector.load %arg20[%c0_12, %c0_13] : memref<256x1xf32, #tpu.memory_space<vmem>>, vector<256x1xf32>
      %cst_14 = arith.constant 3.906250e-03 : f32
      %25 = vector.broadcast %cst_14 : f32 to vector<256x1xf32>
      %26 = arith.mulf %24, %25 : vector<256x1xf32>
      %27 = arith.mulf %23, %23 : vector<256x1xf32>
      %28 = arith.subf %26, %27 : vector<256x1xf32>
      %c0_15 = arith.constant 0 : index
      %c0_16 = arith.constant 0 : index
      %29 = vector.load %arg19[%c0_15, %c0_16] : memref<256x1xf32, #tpu.memory_space<vmem>>, vector<256x1xf32>
      tpu.vector_store %arg19[%c0_15, %c0_16], %23 {strides = array<i32>} : memref<256x1xf32, #tpu.memory_space<vmem>>, vector<256x1xf32>,
      %cst_17 = arith.constant 9.99999974E-6 : f32
      %30 = vector.broadcast %cst_17 : f32 to vector<256x1xf32>
      %31 = arith.addf %28, %30 : vector<256x1xf32>
      %32 = math.rsqrt %31 : vector<256x1xf32>
      %c0_18 = arith.constant 0 : index
      %c0_19 = arith.constant 0 : index
      %33 = vector.load %arg20[%c0_18, %c0_19] : memref<256x1xf32, #tpu.memory_space<vmem>>, vector<256x1xf32>
      tpu.vector_store %arg20[%c0_18, %c0_19], %32 {strides = array<i32>} : memref<256x1xf32, #tpu.memory_space<vmem>>, vector<256x1xf32>,
      %cst_20 = arith.constant 0.000000e+00 : f32
      %34 = vector.broadcast %cst_20 : f32 to vector<256x128xf32>
      %c0_21 = arith.constant 0 : index
      %c0_22 = arith.constant 0 : index
      %35 = vector.load %arg21[%c0_21, %c0_22] : memref<256x128xf32, #tpu.memory_space<vmem>>, vector<256x128xf32>
      tpu.vector_store %arg21[%c0_21, %c0_22], %34 {strides = array<i32>} : memref<256x128xf32, #tpu.memory_space<vmem>>, vector<256x128xf32>,
    } else {
    }
    %c1_i32_6 = arith.constant 1 : i32
    %13 = arith.cmpi eq, %arg1, %c1_i32_6 : i32
    %14 = arith.extui %13 : i1 to i32
    %c0_i32_7 = arith.constant 0 : i32
    %15 = arith.cmpi ne, %14, %c0_i32_7 : i32
    scf.if %15 {
      %c0 = arith.constant 0 : index
      %c0_11 = arith.constant 0 : index
      %21 = vector.load %arg17[%c0, %c0_11] : memref<256x128xbf16, #tpu.memory_space<vmem>>, vector<256x128xbf16>
      %c0_12 = arith.constant 0 : index
      %c0_13 = arith.constant 0 : index
      %22 = vector.load %arg6[%c0_12, %c0_13] : memref<128x128xbf16, #tpu.memory_space<vmem>>, vector<128x128xbf16>
      %cst = arith.constant dense<0.000000e+00> : vector<256x128xf32>
      %23 = tpu.matmul %21, %22, %cst {dimension_numbers = #tpu.dot_dimension_numbers<[1], [0], [0], [1], [0, 0, 1, 1], [], []>} : vector<256x128xbf16>, vector<128x128xbf16>, vector<256x128xf32> -> vector<256x128xf32>
      %24 = arith.index_cast %arg2 : i32 to index
      %c0_14 = arith.constant 0 : index
      %c0_15 = arith.constant 0 : index
      %25 = vector.load %arg8[%24, %c0_14, %c0_15] : memref<2x1x128xf32, #tpu.memory_space<vmem>>, vector<1x1x128xf32>
      %26 = vector.shape_cast %25 : vector<1x1x128xf32> to vector<1x128xf32>
      %27 = vector.broadcast %26 : vector<1x128xf32> to vector<256x128xf32>
      %28 = arith.addf %23, %27 : vector<256x128xf32>
      %29 = arith.mulf %28, %28 : vector<256x128xf32>
      %30 = arith.mulf %28, %29 : vector<256x128xf32>
      %cst_16 = arith.constant 4.471500e-02 : f32
      %31 = vector.broadcast %cst_16 : f32 to vector<256x128xf32>
      %32 = arith.mulf %31, %30 : vector<256x128xf32>
      %33 = arith.addf %28, %32 : vector<256x128xf32>
      %cst_17 = arith.constant 0.797884583 : f32
      %34 = vector.broadcast %cst_17 : f32 to vector<256x128xf32>
      %35 = arith.mulf %34, %33 : vector<256x128xf32>
      %36 = math.tanh %35 : vector<256x128xf32>
      %cst_18 = arith.constant 1.000000e+00 : f32
      %37 = vector.broadcast %cst_18 : f32 to vector<256x128xf32>
      %38 = arith.addf %37, %36 : vector<256x128xf32>
      %cst_19 = arith.constant 5.000000e-01 : f32
      %39 = vector.broadcast %cst_19 : f32 to vector<256x128xf32>
      %40 = arith.mulf %39, %38 : vector<256x128xf32>
      %41 = arith.mulf %28, %40 : vector<256x128xf32>
      %42 = arith.index_cast %arg2 : i32 to index
      %c0_20 = arith.constant 0 : index
      %c0_21 = arith.constant 0 : index
      %43 = vector.load %arg18[%42, %c0_20, %c0_21] : memref<2x256x128xbf16, #tpu.memory_space<vmem>>, vector<1x256x128xbf16>
      %44 = vector.shape_cast %43 : vector<1x256x128xbf16> to vector<256x128xbf16>
      %45 = arith.extf %44 : vector<256x128xbf16> to vector<256x128xf32>
      %c0_22 = arith.constant 0 : index
      %c0_23 = arith.constant 0 : index
      %46 = vector.load %arg19[%c0_22, %c0_23] : memref<256x1xf32, #tpu.memory_space<vmem>>, vector<256x1xf32>
      %47 = vector.broadcast %46 : vector<256x1xf32> to vector<256x128xf32>
      %48 = arith.subf %45, %47 : vector<256x128xf32>
      %c0_24 = arith.constant 0 : index
      %c0_25 = arith.constant 0 : index
      %49 = vector.load %arg20[%c0_24, %c0_25] : memref<256x1xf32, #tpu.memory_space<vmem>>, vector<256x1xf32>
      %50 = vector.broadcast %49 : vector<256x1xf32> to vector<256x128xf32>
      %51 = arith.mulf %48, %50 : vector<256x128xf32>
      %52 = arith.index_cast %arg2 : i32 to index
      %c0_26 = arith.constant 0 : index
      %c0_27 = arith.constant 0 : index
      %53 = vector.load %arg10[%52, %c0_26, %c0_27] : memref<2x1x128xf32, #tpu.memory_space<vmem>>, vector<1x1x128xf32>
      %54 = vector.shape_cast %53 : vector<1x1x128xf32> to vector<1x128xf32>
      %55 = vector.broadcast %54 : vector<1x128xf32> to vector<256x128xf32>
      %56 = arith.mulf %51, %55 : vector<256x128xf32>
      %57 = arith.index_cast %arg2 : i32 to index
      %c0_28 = arith.constant 0 : index
      %c0_29 = arith.constant 0 : index
      %58 = vector.load %arg11[%57, %c0_28, %c0_29] : memref<2x1x128xf32, #tpu.memory_space<vmem>>, vector<1x1x128xf32>
      %59 = vector.shape_cast %58 : vector<1x1x128xf32> to vector<1x128xf32>
      %60 = vector.broadcast %59 : vector<1x128xf32> to vector<256x128xf32>
      %61 = arith.addf %56, %60 : vector<256x128xf32>
      %62 = arith.truncf %61 : vector<256x128xf32> to vector<256x128xbf16>
      %c0_30 = arith.constant 0 : index
      %c0_31 = arith.constant 0 : index
      %63 = vector.load %arg12[%c0_30, %c0_31] : memref<128x128xbf16, #tpu.memory_space<vmem>>, vector<128x128xbf16>
      %64 = vector.extract_strided_slice %62 {offsets = [0, 0], sizes = [128, 128], strides = [1, 1]} : vector<256x128xbf16> to vector<128x128xbf16>
      %cst_32 = arith.constant dense<0.000000e+00> : vector<128x128xf32>
      %65 = tpu.matmul %63, %64, %cst_32 {dimension_numbers = #tpu.dot_dimension_numbers<[1], [0], [0], [1], [0, 0, 1, 1], [], []>} : vector<128x128xbf16>, vector<128x128xbf16>, vector<128x128xf32> -> vector<128x128xf32>
      %c0_33 = arith.constant 0 : index
      %c0_34 = arith.constant 0 : index
      %66 = vector.load %arg13[%c0_33, %c0_34] : memref<128x1xf32, #tpu.memory_space<vmem>>, vector<128x1xf32>
      %67 = vector.broadcast %66 : vector<128x1xf32> to vector<128x128xf32>
      %68 = arith.addf %65, %67 : vector<128x128xf32>
      %c0_35 = arith.constant 0 : index
      %c0_36 = arith.constant 0 : index
      %69 = vector.load %arg12[%c0_35, %c0_36] : memref<128x128xbf16, #tpu.memory_space<vmem>>, vector<128x128xbf16>
      %70 = vector.extract_strided_slice %62 {offsets = [128, 0], sizes = [128, 128], strides = [1, 1]} : vector<256x128xbf16> to vector<128x128xbf16>
      %cst_37 = arith.constant dense<0.000000e+00> : vector<128x128xf32>
      %71 = tpu.matmul %69, %70, %cst_37 {dimension_numbers = #tpu.dot_dimension_numbers<[1], [0], [0], [1], [0, 0, 1, 1], [], []>} : vector<128x128xbf16>, vector<128x128xbf16>, vector<128x128xf32> -> vector<128x128xf32>
      %c0_38 = arith.constant 0 : index
      %c0_39 = arith.constant 0 : index
      %72 = vector.load %arg13[%c0_38, %c0_39] : memref<128x1xf32, #tpu.memory_space<vmem>>, vector<128x1xf32>
      %73 = vector.broadcast %72 : vector<128x1xf32> to vector<128x128xf32>
      %74 = arith.addf %71, %73 : vector<128x128xf32>
      %75 = tpu.concatenate %68, %74 in 0 : vector<128x128xf32>, vector<128x128xf32> -> vector<256x128xf32>
      %76 = arith.mulf %41, %75 : vector<256x128xf32>
      %77 = arith.truncf %76 : vector<256x128xf32> to vector<256x128xbf16>
      %c0_40 = arith.constant 0 : index
      %c0_41 = arith.constant 0 : index
      %78 = vector.load %arg21[%c0_40, %c0_41] : memref<256x128xf32, #tpu.memory_space<vmem>>, vector<256x128xf32>
      %c0_42 = arith.constant 0 : index
      %c0_43 = arith.constant 0 : index
      %79 = vector.load %arg14[%c0_42, %c0_43] : memref<128x128xbf16, #tpu.memory_space<vmem>>, vector<128x128xbf16>
      %cst_44 = arith.constant dense<0.000000e+00> : vector<256x128xf32>
      %80 = tpu.matmul %77, %79, %cst_44 {dimension_numbers = #tpu.dot_dimension_numbers<[1], [0], [0], [1], [0, 0, 1, 1], [], []>} : vector<256x128xbf16>, vector<128x128xbf16>, vector<256x128xf32> -> vector<256x128xf32>
      %81 = arith.addf %78, %80 : vector<256x128xf32>
      %c0_45 = arith.constant 0 : index
      %c0_46 = arith.constant 0 : index
      %82 = vector.load %arg21[%c0_45, %c0_46] : memref<256x128xf32, #tpu.memory_space<vmem>>, vector<256x128xf32>
      tpu.vector_store %arg21[%c0_45, %c0_46], %81 {strides = array<i32>} : memref<256x128xf32, #tpu.memory_space<vmem>>, vector<256x128xf32>,
    } else {
    }
    %c1_i32_8 = arith.constant 1 : i32
    %16 = arith.cmpi eq, %arg1, %c1_i32_8 : i32
    %c1_i32_9 = arith.constant 1 : i32
    %17 = arith.cmpi eq, %arg2, %c1_i32_9 : i32
    %18 = arith.andi %16, %17 : i1
    %19 = arith.extui %18 : i1 to i32
    %c0_i32_10 = arith.constant 0 : i32
    %20 = arith.cmpi ne, %19, %c0_i32_10 : i32
    scf.if %20 {
      %c0 = arith.constant 0 : index
      %c0_11 = arith.constant 0 : index
      %21 = vector.load %arg21[%c0, %c0_11] : memref<256x128xf32, #tpu.memory_space<vmem>>, vector<256x128xf32>
      %c0_12 = arith.constant 0 : index
      %c0_13 = arith.constant 0 : index
      %22 = vector.load %arg15[%c0_12, %c0_13] : memref<1x128xf32, #tpu.memory_space<vmem>>, vector<1x128xf32>
      %23 = vector.broadcast %22 : vector<1x128xf32> to vector<256x128xf32>
      %24 = arith.addf %21, %23 : vector<256x128xf32>
      %c0_14 = arith.constant 0 : index
      %c0_15 = arith.constant 0 : index
      %c0_16 = arith.constant 0 : index
      %25 = vector.load %arg3[%c0_14, %c0_15, %c0_16] : memref<1x256x128xf32, #tpu.memory_space<vmem>>, vector<1x256x128xf32>
      %26 = vector.shape_cast %25 : vector<1x256x128xf32> to vector<256x128xf32>
      %27 = arith.addf %24, %26 : vector<256x128xf32>
      %c0_17 = arith.constant 0 : index
      %c0_18 = arith.constant 0 : index
      %c0_19 = arith.constant 0 : index
      %28 = vector.load %arg16[%c0_17, %c0_18, %c0_19] : memref<1x256x128xf32, #tpu.memory_space<vmem>>, vector<1x256x128xf32>
      %29 = vector.shape_cast %28 : vector<1x256x128xf32> to vector<256x128xf32>
      %30 = vector.shape_cast %27 : vector<256x128xf32> to vector<1x256x128xf32>
      tpu.vector_store %arg16[%c0_17, %c0_18, %c0_19], %30 {strides = array<i32>} : memref<1x256x128xf32, #tpu.memory_space<vmem>>, vector<1x256x128xf32>,
    } else {
    }
    return
  }
  func.func @transform_0(%arg0: i32, %arg1: i32, %arg2: i32) -> (i32, i32, i32) {
    %c0_i32 = arith.constant 0 : i32
    %c0_i32_0 = arith.constant 0 : i32
    %c0_i32_1 = arith.constant 0 : i32
    return %arg0, %c0_i32, %c0_i32_0 : i32, i32, i32
  }
  func.func @transform_1(%arg0: i32, %arg1: i32, %arg2: i32) -> (i32, i32) {
    %c0_i32 = arith.constant 0 : i32
    %c0_i32_0 = arith.constant 0 : i32
    %c0_i32_1 = arith.constant 0 : i32
    return %c0_i32, %c0_i32_0 : i32, i32
  }
  func.func @transform_2(%arg0: i32, %arg1: i32, %arg2: i32) -> (i32, i32) {
    %c0_i32 = arith.constant 0 : i32
    %c0_i32_0 = arith.constant 0 : i32
    %c0_i32_1 = arith.constant 0 : i32
    return %c0_i32, %c0_i32_0 : i32, i32
  }
  func.func @transform_3(%arg0: i32, %arg1: i32, %arg2: i32) -> (i32, i32) {
    %0 = arith.muli %arg2, %arg1 : i32
    %c0_i32 = arith.constant 0 : i32
    %c0_i32_0 = arith.constant 0 : i32
    return %c0_i32, %0 : i32, i32
  }
  func.func @transform_4(%arg0: i32, %arg1: i32, %arg2: i32) -> (i32, i32) {
    %c1_i32 = arith.constant 1 : i32
    %0 = arith.subi %c1_i32, %arg1 : i32
    %1 = arith.muli %arg2, %0 : i32
    %c1_i32_0 = arith.constant 1 : i32
    %2 = arith.muli %c1_i32_0, %arg1 : i32
    %3 = arith.addi %1, %2 : i32
    %c0_i32 = arith.constant 0 : i32
    %c0_i32_1 = arith.constant 0 : i32
    return %c0_i32, %3 : i32, i32
  }
  func.func @transform_5(%arg0: i32, %arg1: i32, %arg2: i32) -> (i32, i32, i32) {
    %c0_i32 = arith.constant 0 : i32
    %c0_i32_0 = arith.constant 0 : i32
    %c0_i32_1 = arith.constant 0 : i32
    %c0_i32_2 = arith.constant 0 : i32
    return %c0_i32, %c0_i32_0, %c0_i32_1 : i32, i32, i32
  }
  func.func @transform_6(%arg0: i32, %arg1: i32, %arg2: i32) -> (i32, i32, i32) {
    %c0_i32 = arith.constant 0 : i32
    %c0_i32_0 = arith.constant 0 : i32
    %c0_i32_1 = arith.constant 0 : i32
    %c0_i32_2 = arith.constant 0 : i32
    return %c0_i32, %c0_i32_0, %c0_i32_1 : i32, i32, i32
  }
  func.func @transform_7(%arg0: i32, %arg1: i32, %arg2: i32) -> (i32, i32, i32) {
    %c0_i32 = arith.constant 0 : i32
    %c0_i32_0 = arith.constant 0 : i32
    %c0_i32_1 = arith.constant 0 : i32
    %c0_i32_2 = arith.constant 0 : i32
    return %c0_i32, %c0_i32_0, %c0_i32_1 : i32, i32, i32
  }
  func.func @transform_8(%arg0: i32, %arg1: i32, %arg2: i32) -> (i32, i32, i32) {
    %c0_i32 = arith.constant 0 : i32
    %c0_i32_0 = arith.constant 0 : i32
    %c0_i32_1 = arith.constant 0 : i32
    %c0_i32_2 = arith.constant 0 : i32
    return %c0_i32, %c0_i32_0, %c0_i32_1 : i32, i32, i32
  }
  func.func @transform_9(%arg0: i32, %arg1: i32, %arg2: i32) -> (i32, i32) {
    %c0_i32 = arith.constant 0 : i32
    %c0_i32_0 = arith.constant 0 : i32
    %c0_i32_1 = arith.constant 0 : i32
    return %c0_i32, %c0_i32_0 : i32, i32
  }
  func.func @transform_10(%arg0: i32, %arg1: i32, %arg2: i32) -> (i32, i32) {
    %c0_i32 = arith.constant 0 : i32
    %c0_i32_0 = arith.constant 0 : i32
    %c0_i32_1 = arith.constant 0 : i32
    return %c0_i32, %c0_i32_0 : i32, i32
  }
  func.func @transform_11(%arg0: i32, %arg1: i32, %arg2: i32) -> (i32, i32) {
    %0 = arith.muli %arg2, %arg1 : i32
    %c0_i32 = arith.constant 0 : i32
    %c0_i32_0 = arith.constant 0 : i32
    return %0, %c0_i32 : i32, i32
  }
  func.func @transform_12(%arg0: i32, %arg1: i32, %arg2: i32) -> (i32, i32) {
    %c0_i32 = arith.constant 0 : i32
    %c0_i32_0 = arith.constant 0 : i32
    %c0_i32_1 = arith.constant 0 : i32
    return %c0_i32, %c0_i32_0 : i32, i32
  }
  func.func @transform_13(%arg0: i32, %arg1: i32, %arg2: i32) -> (i32, i32, i32) {
    %c0_i32 = arith.constant 0 : i32
    %c0_i32_0 = arith.constant 0 : i32
    %c0_i32_1 = arith.constant 0 : i32
    return %arg0, %c0_i32, %c0_i32_0 : i32, i32, i32
  }
}

</mosaic_0001>

<llo_original>
// kernel: tpu_custom_call.1
$region0: #{tpu_custom_call.1}
  #allocation0 [shape = 'u32[]', space=smem, size = 0x4, offset = 0x4, fixed_abs, tag = 'smem constant byte address 0x4 - core index']
  #allocation1 [shape = 'u32[72,128]{1,0:T(1,128)}', space=vmem, size = 0x9000, scoped, tag = 'internal scratch']
  #allocation2 [shape = 'bf16[256,128]{1,0:T(8,128)(2,1)}', space=vmem, size = 0x10000, scoped, tag = 'scratch operand']
  #allocation3 [shape = 'bf16[2,256,128]{2,1,0:T(8,128)(2,1)}', space=vmem, size = 0x20000, scoped, tag = 'scratch operand']
  #allocation4 [shape = 'f32[256,1]{1,0:T(8,128)}', space=vmem, size = 0x20000, scoped, tag = 'scratch operand']
  #allocation5 [shape = 'f32[256,1]{1,0:T(8,128)}', space=vmem, size = 0x20000, scoped, tag = 'scratch operand']
  #allocation6 [shape = 'f32[256,128]{1,0:T(8,128)}', space=vmem, size = 0x20000, scoped, tag = 'scratch operand']
  %s0 = inlined_call_operand.hbm [shape: f32[2,256,128], index: 0, kind: input, shape index: {}]
  %s1 = inlined_call_operand.vmem [shape: f32[1,128], index: 1, kind: input, shape index: {}]
  %s2 = inlined_call_operand.hbm [shape: f32[1,128], index: 2, kind: input, shape index: {}]
  %s3 = inlined_call_operand.vmem [shape: bf16[128,256], index: 3, kind: input, shape index: {}]
  %s4 = inlined_call_operand.hbm [shape: bf16[128,256], index: 4, kind: input, shape index: {}]
  %s5 = inlined_call_operand.vmem [shape: f32[2,1,128], index: 5, kind: input, shape index: {}]
  %s6 = inlined_call_operand.vmem [shape: f32[2,1,128], index: 6, kind: input, shape index: {}]
  %s7 = inlined_call_operand.hbm [shape: f32[2,1,128], index: 7, kind: input, shape index: {}]
  %s8 = inlined_call_operand.vmem [shape: f32[2,1,128], index: 8, kind: input, shape index: {}]
  %s9 = inlined_call_operand.hbm [shape: bf16[128,128], index: 9, kind: input, shape index: {}]
  %s10 = inlined_call_operand.vmem [shape: f32[128,1], index: 10, kind: input, shape index: {}]
  %s11 = inlined_call_operand.hbm [shape: bf16[256,128], index: 11, kind: input, shape index: {}]
  %s12 = inlined_call_operand.vmem [shape: f32[1,128], index: 12, kind: input, shape index: {}]
  %s13 = inlined_call_operand.hbm [shape: f32[2,256,128], index: 13, kind: output, shape index: {}]
  %s14 = sld [smem:[#allocation0]]
  $region170: #{tpu_custom_call.1} parent=0
    _
  %s16 = ssub.s32 1, %s14
  %s17 = scalar_select 0, %s16, %s14
  $region1: #{tpu_custom_call.1} parent=0
    #allocation7 [shape = 'u8[262144]{0}', space=vmem, size = 0x40000, scoped, tag = 'input window, operand 0']
    #allocation8 [shape = 's32[2]{0}', space=sflag, size = 0x8, scoped, tag = 'scoped memory for tpu_custom_call.1']
    #allocation9 [shape = 's32[2]{0}', space=sflag, size = 0x8, scoped, tag = 'scoped memory for tpu_custom_call.1']
    #allocation10 [shape = 'u8[512]{0}', space=vmem, size = 0x400, scoped, tag = 'input window, operand 2, single buffered']
    #allocation11 [shape = 's32[1]{0}', space=sflag, size = 0x4, scoped, tag = 'scoped memory for tpu_custom_call.1']
    #allocation12 [shape = 'u8[65536]{0}', space=vmem, size = 0x10000, scoped, tag = 'input window, operand 3']
    #allocation13 [shape = 'u8[65536]{0}', space=vmem, size = 0x10000, scoped, tag = 'input window, operand 4']
    #allocation14 [shape = 'u8[1024]{0}', space=vmem, size = 0x400, scoped, tag = 'input window, operand 7, single buffered']
    #allocation15 [shape = 'u8[32768]{0}', space=vmem, size = 0x8000, scoped, tag = 'input window, operand 9, single buffered']
    #allocation16 [shape = 's32[1]{0}', space=sflag, size = 0x4, scoped, tag = 'scoped memory for tpu_custom_call.1']
    #allocation17 [shape = 'u8[65536]{0}', space=vmem, size = 0x10000, scoped, tag = 'input window, operand 11']
    #allocation18 [shape = 'u8[262144]{0}', space=vmem, size = 0x40000, scoped, tag = 'output window, operand 0']
    %18 = vsyncpa [#allocation8], 0
    %s19 = scalar_lea.sflag [#allocation8], 1
    %20 = vsyncpa %s19, 0
    %21 = vsyncpa [#allocation11], 0
    %22 = vsyncpa [#allocation16], 0
    %23 = vsyncpa [#allocation9], 0
    %s24 = scalar_lea.sflag [#allocation9], 1
    %25 = vsyncpa %s24, 0
    loop: start=0, step=1, limit=10
    $region2: #{tpu_custom_call.1} parent=1 // loop_pre_header
      _
    $region3: #{tpu_custom_call.1} parent=1 // loop_header
      %s27 = sphi 0, %s31
      %p28 = scmp.ge.s32.totalorder %s27, 10
      %s34 = sphi 0, %s53
      %s35 = sphi 0, %s49
      %s36 = sphi 0, %s45
      %s37 = sphi 0, %s34
      %s38 = sphi 0, %s35
      %s39 = sphi 0, %s36
      %s40 = sphi 0, %s37
      %s41 = sphi 0, %s38
      %s42 = sphi 0, %s39
      %s56 = sphi 0, %s58
      %s59 = sphi 0, %s56
      %s60 = sphi 0, %s59
      %s76 = sphi 0, %s60
      %s80 = sphi 0, %s80
      %s82 = sphi 0, %s80
      %s83 = sphi 0, %s82
      %s97 = sphi 0, %s83
      %s101 = sphi 0, %s101
      %s103 = sphi 0, %s101
      %s104 = sphi 0, %s103
      %s118 = sphi 0, %s104
      %s126 = sphi 0, %s128
      %s129 = sphi 0, %s126
      %s130 = sphi 0, %s129
      %s146 = sphi 0, %s130
      %s158 = sphi 0, %s160
      %s161 = sphi 0, %s158
      %s162 = sphi 0, %s161
      %s178 = sphi 0, %s162
      %s182 = sphi 0, %s182
      %s184 = sphi 0, %s182
      %s185 = sphi 0, %s184
      %s199 = sphi 0, %s185
      %s203 = sphi 0, %s203
      %s205 = sphi 0, %s203
      %s206 = sphi 0, %s205
      %s220 = sphi 0, %s206
      %s224 = sphi 0, %s224
      %s226 = sphi 0, %s224
      %s227 = sphi 0, %s226
      %s241 = sphi 0, %s227
      %s245 = sphi 0, %s245
      %s247 = sphi 0, %s245
      %s248 = sphi 0, %s247
      %s262 = sphi 0, %s248
      %s266 = sphi 0, %s266
      %s268 = sphi 0, %s266
      %s269 = sphi 0, %s268
      %s283 = sphi 0, %s269
      %s287 = sphi 0, %s287
      %s289 = sphi 0, %s287
      %s290 = sphi 0, %s289
      %s304 = sphi 0, %s290
      %s312 = sphi 0, %s314
      %s315 = sphi 0, %s312
      %s316 = sphi 0, %s315
      %s332 = sphi 0, %s316
      %s336 = sphi 0, %s336
      %s338 = sphi 0, %s336
      %s339 = sphi 0, %s338
      %s353 = sphi 0, %s339
      %s359 = sphi 0, %s361
      %s362 = sphi 0, %s359
      %s363 = sphi 0, %s362
      %s379 = sphi 0, %s363
    $region4: #{tpu_custom_call.1} parent=1 // loop_header_branch
      %30 = sbr.rel (%p28) target = $region8
    $region5: #{tpu_custom_call.1} parent=1 // loop_body
      %s32 = ssub.s32 %s27, 1
      %s33 = ssub.s32 %s27, 2
      %s43 = sadd.s32 1, %s36
      %p44 = scmp.ge.s32.totalorder %s43, 2
      %s45 = scalar_select %p44, 0, %s43
      %s46 = sadd.s32 1, %s35
      %s47 = scalar_select %p44, %s46, %s35
      %p48 = scmp.ge.s32.totalorder %s47, 2
      %s49 = scalar_select %p48, 0, %s47
      %s50 = sadd.s32 1, %s34
      %s51 = scalar_select %p48, %s50, %s34
      %p52 = scmp.ge.s32.totalorder %s51, 2
      %s53 = scalar_select %p52, 0, %s51
      %s54 = ssub.s32 %s34, %s53
      %p55 = scmp.eq.s32.totalorder %s54, 0
      %s57 = sadd.s32 %s56, 1
      %s58 = scalar_select %p55, %s56, %s57
      %p61 = pneg %p55
      %p62 = scmp.eq.s32.totalorder %s27, 7
      %p63 = por %p61, %p62
      %p64 = scmp.ne.s32.totalorder %s56, %s59
      %p65 = scmp.eq.s32.totalorder %s27, 0
      %p66 = por %p64, %p65
      %p67 = scmp.ne.s32.totalorder %s56, %s59
      %p68 = scmp.eq.s32.totalorder %s32, 7
      %p69 = por %p67, %p68
      %p70 = scmp.ne.s32.totalorder %s59, %s60
      %p71 = scmp.eq.s32.totalorder %s32, 0
      %p72 = por %p70, %p71
      %p73 = scmp.ne.s32.totalorder %s59, %s60
      %p74 = scmp.eq.s32.totalorder %s33, 7
      %p75 = por %p73, %p74
      %p77 = scmp.ne.s32.totalorder %s60, %s76
      %p78 = scmp.eq.s32.totalorder %s33, 0
      %p79 = por %p77, %p78
      %s81 = sadd.s32 %s80, 1
      %p84 = scmp.eq.s32.totalorder %s27, 7
      %p85 = scmp.ne.s32.totalorder %s80, %s82
      %p86 = scmp.eq.s32.totalorder %s27, 0
      %p87 = por %p85, %p86
      %p88 = scmp.ne.s32.totalorder %s80, %s82
      %p89 = scmp.eq.s32.totalorder %s32, 7
      %p90 = por %p88, %p89
      %p91 = scmp.ne.s32.totalorder %s82, %s83
      %p92 = scmp.eq.s32.totalorder %s32, 0
      %p93 = por %p91, %p92
      %p94 = scmp.ne.s32.totalorder %s82, %s83
      %p95 = scmp.eq.s32.totalorder %s33, 7
      %p96 = por %p94, %p95
      %p98 = scmp.ne.s32.totalorder %s83, %s97
      %p99 = scmp.eq.s32.totalorder %s33, 0
      %p100 = por %p98, %p99
      %s102 = sadd.s32 %s101, 1
      %p105 = scmp.eq.s32.totalorder %s27, 7
      %p106 = scmp.ne.s32.totalorder %s101, %s103
      %p107 = scmp.eq.s32.totalorder %s27, 0
      %p108 = por %p106, %p107
      %p109 = scmp.ne.s32.totalorder %s101, %s103
      %p110 = scmp.eq.s32.totalorder %s32, 7
      %p111 = por %p109, %p110
      %p112 = scmp.ne.s32.totalorder %s103, %s104
      %p113 = scmp.eq.s32.totalorder %s32, 0
      %p114 = por %p112, %p113
      %p115 = scmp.ne.s32.totalorder %s103, %s104
      %p116 = scmp.eq.s32.totalorder %s33, 7
      %p117 = por %p115, %p116
      %p119 = scmp.ne.s32.totalorder %s104, %s118
      %p120 = scmp.eq.s32.totalorder %s33, 0
      %p121 = por %p119, %p120
      %s122 = smul.u32 %s36, %s35
      %s123 = smul.u32 %s45, %s49
      %s124 = ssub.s32 %s122, %s123
      %p125 = scmp.eq.s32.totalorder %s124, 0
      %s127 = sadd.s32 %s126, 1
      %s128 = scalar_select %p125, %s126, %s127
      %p131 = pneg %p125
      %p132 = scmp.eq.s32.totalorder %s27, 7
      %p133 = por %p131, %p132
      %p134 = scmp.ne.s32.totalorder %s126, %s129
      %p135 = scmp.eq.s32.totalorder %s27, 0
      %p136 = por %p134, %p135
      %p137 = scmp.ne.s32.totalorder %s126, %s129
      %p138 = scmp.eq.s32.totalorder %s32, 7
      %p139 = por %p137, %p138
      %p140 = scmp.ne.s32.totalorder %s129, %s130
      %p141 = scmp.eq.s32.totalorder %s32, 0
      %p142 = por %p140, %p141
      %p143 = scmp.ne.s32.totalorder %s129, %s130
      %p144 = scmp.eq.s32.totalorder %s33, 7
      %p145 = por %p143, %p144
      %p147 = scmp.ne.s32.totalorder %s130, %s146
      %p148 = scmp.eq.s32.totalorder %s33, 0
      %p149 = por %p147, %p148
      %s150 = ssub.s32 1, %s35
      %s151 = smul.u32 %s36, %s150
      %s152 = sadd.s32 %s151, %s35
      %s153 = ssub.s32 1, %s49
      %s154 = smul.u32 %s45, %s153
      %s155 = sadd.s32 %s154, %s49
      %s156 = ssub.s32 %s152, %s155
      %p157 = scmp.eq.s32.totalorder %s156, 0
      %s159 = sadd.s32 %s158, 1
      %s160 = scalar_select %p157, %s158, %s159
      %p163 = pneg %p157
      %p164 = scmp.eq.s32.totalorder %s27, 7
      %p165 = por %p163, %p164
      %p166 = scmp.ne.s32.totalorder %s158, %s161
      %p167 = scmp.eq.s32.totalorder %s27, 0
      %p168 = por %p166, %p167
      %p169 = scmp.ne.s32.totalorder %s158, %s161
      %p170 = scmp.eq.s32.totalorder %s32, 7
      %p171 = por %p169, %p170
      %p172 = scmp.ne.s32.totalorder %s161, %s162
      %p173 = scmp.eq.s32.totalorder %s32, 0
      %p174 = por %p172, %p173
      %p175 = scmp.ne.s32.totalorder %s161, %s162
      %p176 = scmp.eq.s32.totalorder %s33, 7
      %p177 = por %p175, %p176
      %p179 = scmp.ne.s32.totalorder %s162, %s178
      %p180 = scmp.eq.s32.totalorder %s33, 0
      %p181 = por %p179, %p180
      %s183 = sadd.s32 %s182, 1
      %p186 = scmp.eq.s32.totalorder %s27, 7
      %p187 = scmp.ne.s32.totalorder %s182, %s184
      %p188 = scmp.eq.s32.totalorder %s27, 0
      %p189 = por %p187, %p188
      %p190 = scmp.ne.s32.totalorder %s182, %s184
      %p191 = scmp.eq.s32.totalorder %s32, 7
      %p192 = por %p190, %p191
      %p193 = scmp.ne.s32.totalorder %s184, %s185
      %p194 = scmp.eq.s32.totalorder %s32, 0
      %p195 = por %p193, %p194
      %p196 = scmp.ne.s32.totalorder %s184, %s185
      %p197 = scmp.eq.s32.totalorder %s33, 7
      %p198 = por %p196, %p197
      %p200 = scmp.ne.s32.totalorder %s185, %s199
      %p201 = scmp.eq.s32.totalorder %s33, 0
      %p202 = por %p200, %p201
      %s204 = sadd.s32 %s203, 1
      %p207 = scmp.eq.s32.totalorder %s27, 7
      %p208 = scmp.ne.s32.totalorder %s203, %s205
      %p209 = scmp.eq.s32.totalorder %s27, 0
      %p210 = por %p208, %p209
      %p211 = scmp.ne.s32.totalorder %s203, %s205
      %p212 = scmp.eq.s32.totalorder %s32, 7
      %p213 = por %p211, %p212
      %p214 = scmp.ne.s32.totalorder %s205, %s206
      %p215 = scmp.eq.s32.totalorder %s32, 0
      %p216 = por %p214, %p215
      %p217 = scmp.ne.s32.totalorder %s205, %s206
      %p218 = scmp.eq.s32.totalorder %s33, 7
      %p219 = por %p217, %p218
      %p221 = scmp.ne.s32.totalorder %s206, %s220
      %p222 = scmp.eq.s32.totalorder %s33, 0
      %p223 = por %p221, %p222
      %s225 = sadd.s32 %s224, 1
      %p228 = scmp.eq.s32.totalorder %s27, 7
      %p229 = scmp.ne.s32.totalorder %s224, %s226
      %p230 = scmp.eq.s32.totalorder %s27, 0
      %p231 = por %p229, %p230
      %p232 = scmp.ne.s32.totalorder %s224, %s226
      %p233 = scmp.eq.s32.totalorder %s32, 7
      %p234 = por %p232, %p233
      %p235 = scmp.ne.s32.totalorder %s226, %s227
      %p236 = scmp.eq.s32.totalorder %s32, 0
      %p237 = por %p235, %p236
      %p238 = scmp.ne.s32.totalorder %s226, %s227
      %p239 = scmp.eq.s32.totalorder %s33, 7
      %p240 = por %p238, %p239
      %p242 = scmp.ne.s32.totalorder %s227, %s241
      %p243 = scmp.eq.s32.totalorder %s33, 0
      %p244 = por %p242, %p243
      %s246 = sadd.s32 %s245, 1
      %p249 = scmp.eq.s32.totalorder %s27, 7
      %p250 = scmp.ne.s32.totalorder %s245, %s247
      %p251 = scmp.eq.s32.totalorder %s27, 0
      %p252 = por %p250, %p251
      %p253 = scmp.ne.s32.totalorder %s245, %s247
      %p254 = scmp.eq.s32.totalorder %s32, 7
      %p255 = por %p253, %p254
      %p256 = scmp.ne.s32.totalorder %s247, %s248
      %p257 = scmp.eq.s32.totalorder %s32, 0
      %p258 = por %p256, %p257
      %p259 = scmp.ne.s32.totalorder %s247, %s248
      %p260 = scmp.eq.s32.totalorder %s33, 7
      %p261 = por %p259, %p260
      %p263 = scmp.ne.s32.totalorder %s248, %s262
      %p264 = scmp.eq.s32.totalorder %s33, 0
      %p265 = por %p263, %p264
      %s267 = sadd.s32 %s266, 1
      %p270 = scmp.eq.s32.totalorder %s27, 7
      %p271 = scmp.ne.s32.totalorder %s266, %s268
      %p272 = scmp.eq.s32.totalorder %s27, 0
      %p273 = por %p271, %p272
      %p274 = scmp.ne.s32.totalorder %s266, %s268
      %p275 = scmp.eq.s32.totalorder %s32, 7
      %p276 = por %p274, %p275
      %p277 = scmp.ne.s32.totalorder %s268, %s269
      %p278 = scmp.eq.s32.totalorder %s32, 0
      %p279 = por %p277, %p278
      %p280 = scmp.ne.s32.totalorder %s268, %s269
      %p281 = scmp.eq.s32.totalorder %s33, 7
      %p282 = por %p280, %p281
      %p284 = scmp.ne.s32.totalorder %s269, %s283
      %p285 = scmp.eq.s32.totalorder %s33, 0
      %p286 = por %p284, %p285
      %s288 = sadd.s32 %s287, 1
      %p291 = scmp.eq.s32.totalorder %s27, 7
      %p292 = scmp.ne.s32.totalorder %s287, %s289
      %p293 = scmp.eq.s32.totalorder %s27, 0
      %p294 = por %p292, %p293
      %p295 = scmp.ne.s32.totalorder %s287, %s289
      %p296 = scmp.eq.s32.totalorder %s32, 7
      %p297 = por %p295, %p296
      %p298 = scmp.ne.s32.totalorder %s289, %s290
      %p299 = scmp.eq.s32.totalorder %s32, 0
      %p300 = por %p298, %p299
      %p301 = scmp.ne.s32.totalorder %s289, %s290
      %p302 = scmp.eq.s32.totalorder %s33, 7
      %p303 = por %p301, %p302
      %p305 = scmp.ne.s32.totalorder %s290, %s304
      %p306 = scmp.eq.s32.totalorder %s33, 0
      %p307 = por %p305, %p306
      %s308 = smul.u32 %s36, %s35
      %s309 = smul.u32 %s45, %s49
      %s310 = ssub.s32 %s308, %s309
      %p311 = scmp.eq.s32.totalorder %s310, 0
      %s313 = sadd.s32 %s312, 1
      %s314 = scalar_select %p311, %s312, %s313
      %p317 = pneg %p311
      %p318 = scmp.eq.s32.totalorder %s27, 7
      %p319 = por %p317, %p318
      %p320 = scmp.ne.s32.totalorder %s312, %s315
      %p321 = scmp.eq.s32.totalorder %s27, 0
      %p322 = por %p320, %p321
      %p323 = scmp.ne.s32.totalorder %s312, %s315
      %p324 = scmp.eq.s32.totalorder %s32, 7
      %p325 = por %p323, %p324
      %p326 = scmp.ne.s32.totalorder %s315, %s316
      %p327 = scmp.eq.s32.totalorder %s32, 0
      %p328 = por %p326, %p327
      %p329 = scmp.ne.s32.totalorder %s315, %s316
      %p330 = scmp.eq.s32.totalorder %s33, 7
      %p331 = por %p329, %p330
      %p333 = scmp.ne.s32.totalorder %s316, %s332
      %p334 = scmp.eq.s32.totalorder %s33, 0
      %p335 = por %p333, %p334
      %s337 = sadd.s32 %s336, 1
      %p340 = scmp.eq.s32.totalorder %s27, 7
      %p341 = scmp.ne.s32.totalorder %s336, %s338
      %p342 = scmp.eq.s32.totalorder %s27, 0
      %p343 = por %p341, %p342
      %p344 = scmp.ne.s32.totalorder %s336, %s338
      %p345 = scmp.eq.s32.totalorder %s32, 7
      %p346 = por %p344, %p345
      %p347 = scmp.ne.s32.totalorder %s338, %s339
      %p348 = scmp.eq.s32.totalorder %s32, 0
      %p349 = por %p347, %p348
      %p350 = scmp.ne.s32.totalorder %s338, %s339
      %p351 = scmp.eq.s32.totalorder %s33, 7
      %p352 = por %p350, %p351
      %p354 = scmp.ne.s32.totalorder %s339, %s353
      %p355 = scmp.eq.s32.totalorder %s33, 0
      %p356 = por %p354, %p355
      %s357 = ssub.s32 %s34, %s53
      %p358 = scmp.eq.s32.totalorder %s357, 0
      %s360 = sadd.s32 %s359, 1
      %s361 = scalar_select %p358, %s359, %s360
      %p364 = pneg %p358
      %p365 = scmp.eq.s32.totalorder %s27, 7
      %p366 = por %p364, %p365
      %p367 = scmp.ne.s32.totalorder %s359, %s362
      %p368 = scmp.eq.s32.totalorder %s27, 0
      %p369 = por %p367, %p368
      %p370 = scmp.ne.s32.totalorder %s359, %s362
      %p371 = scmp.eq.s32.totalorder %s32, 7
      %p372 = por %p370, %p371
      %p373 = scmp.ne.s32.totalorder %s362, %s363
      %p374 = scmp.eq.s32.totalorder %s32, 0
      %p375 = por %p373, %p374
      %p376 = scmp.ne.s32.totalorder %s362, %s363
      %p377 = scmp.eq.s32.totalorder %s33, 7
      %p378 = por %p376, %p377
      %p380 = scmp.ne.s32.totalorder %s363, %s379
      %p381 = scmp.eq.s32.totalorder %s33, 0
      %p382 = por %p380, %p381
      %p383 = scmp.le.s32.totalorder 1, %s27
      %p384 = scmp.lt.s32.totalorder %s27, 9
      %p385 = pnand %p383, %p384
      %p386 = pneg %p385
      // Predicated region
      $region9: #{tpu_custom_call.1} parent=5 // pred_check
        _
      $region10: #{tpu_custom_call.1} parent=5 // pred_check_branch
        %388 = sbr.rel (%p385) target = $region12
      $region11: #{tpu_custom_call.1} parent=5 // pred_region
        %s389 = ssub.s32 %s27, 1
        // Predicated region
        $region13: #{tpu_custom_call.1} parent=11 // pred_check
          %p390 = pneg %p93
        $region14: #{tpu_custom_call.1} parent=11 // pred_check_branch
          %392 = sbr.rel (%p390) target = $region16
        $region15: #{tpu_custom_call.1} parent=11 // pred_region
          _
        $region16: #{tpu_custom_call.1} parent=11 // pred_fallthru
          _
        // Predicated region
        $region17: #{tpu_custom_call.1} parent=11 // pred_check
          %p393 = pneg %p114
        $region18: #{tpu_custom_call.1} parent=11 // pred_check_branch
          %395 = sbr.rel (%p393) target = $region20
        $region19: #{tpu_custom_call.1} parent=11 // pred_region
          %397 = vsyncadd [#allocation11], 0
          %s399 = sshll.u32 %s2, 4
          %s400 = int_to_ptr.hbm [resolvable:$true] %s399
          %s401 = sshll.u32 [#allocation10], 4
          %s402 = int_to_ptr.vmem [resolvable:$true] %s401
          %404 = dma.hbm_to_vmem [thread:$0]  %s400, 16, %s402, [#allocation11]
        $region20: #{tpu_custom_call.1} parent=11 // pred_fallthru
          _
        // Predicated region
        $region21: #{tpu_custom_call.1} parent=11 // pred_check
          %p405 = pneg %p195
        $region22: #{tpu_custom_call.1} parent=11 // pred_check_branch
          %407 = sbr.rel (%p405) target = $region24
        $region23: #{tpu_custom_call.1} parent=11 // pred_region
          _
        $region24: #{tpu_custom_call.1} parent=11 // pred_fallthru
          _
        // Predicated region
        $region25: #{tpu_custom_call.1} parent=11 // pred_check
          %p408 = pneg %p216
        $region26: #{tpu_custom_call.1} parent=11 // pred_check_branch
          %410 = sbr.rel (%p408) target = $region28
        $region27: #{tpu_custom_call.1} parent=11 // pred_region
          _
        $region28: #{tpu_custom_call.1} parent=11 // pred_fallthru
          _
        // Predicated region
        $region29: #{tpu_custom_call.1} parent=11 // pred_check
          %p411 = pneg %p237
        $region30: #{tpu_custom_call.1} parent=11 // pred_check_branch
          %413 = sbr.rel (%p411) target = $region32
        $region31: #{tpu_custom_call.1} parent=11 // pred_region
          %415 = vsyncadd [#allocation11], 0
          %s416 = sshll.u32 %s7, 4
          %s417 = int_to_ptr.hbm [resolvable:$true] %s416
          %s418 = sshll.u32 [#allocation14], 4
          %s419 = int_to_ptr.vmem [resolvable:$true] %s418
          %424 = dma.hbm_to_vmem [thread:$0]  %s417, 32, %s419, [#allocation11], 16, 16, 1
        $region32: #{tpu_custom_call.1} parent=11 // pred_fallthru
          _
        // Predicated region
        $region33: #{tpu_custom_call.1} parent=11 // pred_check
          %p425 = pneg %p258
        $region34: #{tpu_custom_call.1} parent=11 // pred_check_branch
          %427 = sbr.rel (%p425) target = $region36
        $region35: #{tpu_custom_call.1} parent=11 // pred_region
          _
        $region36: #{tpu_custom_call.1} parent=11 // pred_fallthru
          _
        // Predicated region
        $region37: #{tpu_custom_call.1} parent=11 // pred_check
          %p428 = pneg %p279
        $region38: #{tpu_custom_call.1} parent=11 // pred_check_branch
          %430 = sbr.rel (%p428) target = $region40
        $region39: #{tpu_custom_call.1} parent=11 // pred_region
          %432 = vsyncadd [#allocation16], 0
          %s433 = sshll.u32 %s9, 4
          %s434 = int_to_ptr.hbm [resolvable:$true] %s433
          %s435 = sshll.u32 [#allocation15], 4
          %s436 = int_to_ptr.vmem [resolvable:$true] %s435
          %441 = dma.hbm_to_vmem [thread:$0]  %s434, 1024, %s436, [#allocation16], 64, 64, 4
        $region40: #{tpu_custom_call.1} parent=11 // pred_fallthru
          _
        // Predicated region
        $region41: #{tpu_custom_call.1} parent=11 // pred_check
          %p442 = pneg %p300
        $region42: #{tpu_custom_call.1} parent=11 // pred_check_branch
          %444 = sbr.rel (%p442) target = $region44
        $region43: #{tpu_custom_call.1} parent=11 // pred_region
          _
        $region44: #{tpu_custom_call.1} parent=11 // pred_fallthru
          _
        // Predicated region
        $region45: #{tpu_custom_call.1} parent=11 // pred_check
          %p445 = pneg %p349
        $region46: #{tpu_custom_call.1} parent=11 // pred_check_branch
          %447 = sbr.rel (%p445) target = $region48
        $region47: #{tpu_custom_call.1} parent=11 // pred_region
          _
        $region48: #{tpu_custom_call.1} parent=11 // pred_fallthru
          _
      $region12: #{tpu_custom_call.1} parent=5 // pred_fallthru
        _
      %p448 = scmp.lt.s32.totalorder %s27, 8
      // Predicated region
      $region49: #{tpu_custom_call.1} parent=5 // pred_check
        %p449 = pneg %p448
      $region50: #{tpu_custom_call.1} parent=5 // pred_check_branch
        %451 = sbr.rel (%p449) target = $region52
      $region51: #{tpu_custom_call.1} parent=5 // pred_region
        // Predicated region
        $region53: #{tpu_custom_call.1} parent=51 // pred_check
          %p452 = pneg %p66
        $region54: #{tpu_custom_call.1} parent=51 // pred_check_branch
          %454 = sbr.rel (%p452) target = $region56
        $region55: #{tpu_custom_call.1} parent=51 // pred_region
          %s455 = sand.u32 %s27, 1
          %s456 = scalar_lea.sflag [#allocation8], %s455
          %s457 = sand.u32 %s56, 1
          %s458 = smul.addr %s457, 256
          %s459 = scalar_lea.vmem [#allocation7], %s458
          %461 = vsyncadd %s456, 0
          %s462 = smul.addr %s34, 32
          %s463 = smul.addr %s462, 8
          %s464 = scalar_lea.hbm %s0, %s463
          %s465 = sshll.u32 %s464, 4
          %s466 = int_to_ptr.hbm [resolvable:$true] %s465
          %s467 = sshll.u32 %s459, 4
          %s468 = int_to_ptr.vmem [resolvable:$true] %s467
          %473 = dma.hbm_to_vmem [thread:$0]  %s466, 4096, %s468, %s456, 128, 128, 8
        $region56: #{tpu_custom_call.1} parent=51 // pred_fallthru
          _
        // Predicated region
        $region57: #{tpu_custom_call.1} parent=51 // pred_check
          %p474 = pneg %p136
        $region58: #{tpu_custom_call.1} parent=51 // pred_check_branch
          %476 = sbr.rel (%p474) target = $region60
        $region59: #{tpu_custom_call.1} parent=51 // pred_region
          %s477 = sand.u32 %s126, 1
          %s478 = sand.u32 %s126, 1
          %s479 = smul.addr %s478, 64
          %s480 = scalar_lea.vmem [#allocation12], %s479
          %s481 = smul.u32 %s36, %s35
          %s482 = smul.addr %s481, 4
          %s483 = scalar_lea.vmem %s3, %s482
          // Predicated region
          $region61: #{tpu_custom_call.1} parent=59 // pred_check
            _
          $region62: #{tpu_custom_call.1} parent=59 // pred_check_branch
            %485 = sbr.rel (0) target = $region64
          $region63: #{tpu_custom_call.1} parent=59 // pred_region
            // Predicated region
            $region65: #{tpu_custom_call.1} parent=63 // pred_check
              _
            $region66: #{tpu_custom_call.1} parent=63 // pred_check_branch
              %487 = sbr.rel target = $region68
            $region67: #{tpu_custom_call.1} parent=63 // pred_region
              // Predicated region
              $region80: #{tpu_custom_call.1} parent=67 // pred_check
                _
              $region81: #{tpu_custom_call.1} parent=67 // pred_check_branch
                %533 = sbr.rel (0) target = $region83
              $region82: #{tpu_custom_call.1} parent=67 // pred_region
                loop: start=0, step=1, limit=1
                $region84: #{tpu_custom_call.1} parent=82 // loop_pre_header
                  _
                $region85: #{tpu_custom_call.1} parent=82 // loop_header
                  %s535 = sphi 0, %s539
                  %p536 = scmp.ge.s32.totalorder %s535, 1
                  %s540 = sphi %s483, %s483
                  %s541 = sphi %s480, %s480
                $region86: #{tpu_custom_call.1} parent=82 // loop_header_branch
                  %538 = sbr.rel (%p536) target = $region90
                $region87: #{tpu_custom_call.1} parent=82 // loop_body
                  _
                $region88: #{tpu_custom_call.1} parent=82 // loop_footer
                  %s539 = sadd.s32 1, %s535
                $region89: #{tpu_custom_call.1} parent=82 // loop_footer_branch
                  %534 = sbr.rel target = $region85
                $region90: #{tpu_custom_call.1} parent=82 // loop_exit
                  _
                %s543 = ssub.s32 16, 1
                loop: start=0, step=1, limit=1
                $region91: #{tpu_custom_call.1} parent=82 // loop_pre_header
                  _
                $region92: #{tpu_custom_call.1} parent=82 // loop_header
                  %s545 = sphi 0, %s549
                  %p546 = scmp.ge.s32.totalorder %s545, 1
                  %s550 = sphi %s483, %s483
                  %s551 = sphi %s480, %s480
                $region93: #{tpu_custom_call.1} parent=82 // loop_header_branch
                  %548 = sbr.rel (%p546) target = $region97
                $region94: #{tpu_custom_call.1} parent=82 // loop_body
                  %v552 = vld [vmem:[%s550] sm:%s543]
                  %553 = vst [vmem:[%s551] sm:%s543] %v552
                  %v554 = vld [vmem:[%s550 + $0x8] sm:%s543]
                  %555 = vst [vmem:[%s551 + $0x4] sm:%s543] %v554
                  %v556 = vld [vmem:[%s550 + $0x10] sm:%s543]
                  %557 = vst [vmem:[%s551 + $0x8] sm:%s543] %v556
                  %v558 = vld [vmem:[%s550 + $0x18] sm:%s543]
                  %559 = vst [vmem:[%s551 + $0xc] sm:%s543] %v558
                  %v560 = vld [vmem:[%s550 + $0x20] sm:%s543]
                  %561 = vst [vmem:[%s551 + $0x10] sm:%s543] %v560
                  %v562 = vld [vmem:[%s550 + $0x28] sm:%s543]
                  %563 = vst [vmem:[%s551 + $0x14] sm:%s543] %v562
                  %v564 = vld [vmem:[%s550 + $0x30] sm:%s543]
                  %565 = vst [vmem:[%s551 + $0x18] sm:%s543] %v564
                  %v566 = vld [vmem:[%s550 + $0x38] sm:%s543]
                  %567 = vst [vmem:[%s551 + $0x1c] sm:%s543] %v566
                  %v568 = vld [vmem:[%s550 + $0x40] sm:%s543]
                  %569 = vst [vmem:[%s551 + $0x20] sm:%s543] %v568
                  %v570 = vld [vmem:[%s550 + $0x48] sm:%s543]
                  %571 = vst [vmem:[%s551 + $0x24] sm:%s543] %v570
                  %v572 = vld [vmem:[%s550 + $0x50] sm:%s543]
                  %573 = vst [vmem:[%s551 + $0x28] sm:%s543] %v572
                  %v574 = vld [vmem:[%s550 + $0x58] sm:%s543]
                  %575 = vst [vmem:[%s551 + $0x2c] sm:%s543] %v574
                  %v576 = vld [vmem:[%s550 + $0x60] sm:%s543]
                  %577 = vst [vmem:[%s551 + $0x30] sm:%s543] %v576
                  %v578 = vld [vmem:[%s550 + $0x68] sm:%s543]
                  %579 = vst [vmem:[%s551 + $0x34] sm:%s543] %v578
                  %v580 = vld [vmem:[%s550 + $0x70] sm:%s543]
                  %581 = vst [vmem:[%s551 + $0x38] sm:%s543] %v580
                  %v582 = vld [vmem:[%s550 + $0x78] sm:%s543]
                  %583 = vst [vmem:[%s551 + $0x3c] sm:%s543] %v582
                $region95: #{tpu_custom_call.1} parent=82 // loop_footer
                  %s549 = sadd.s32 1, %s545
                $region96: #{tpu_custom_call.1} parent=82 // loop_footer_branch
                  %544 = sbr.rel target = $region92
                $region97: #{tpu_custom_call.1} parent=82 // loop_exit
                  _
              $region83: #{tpu_custom_call.1} parent=67 // pred_fallthru
                _
            $region68: #{tpu_custom_call.1} parent=63 // pred_fallthru
              _
            // Predicated region
            $region69: #{tpu_custom_call.1} parent=63 // pred_check
              _
            $region70: #{tpu_custom_call.1} parent=63 // pred_check_branch
              %489 = sbr.rel (0) target = $region72
            $region71: #{tpu_custom_call.1} parent=63 // pred_region
              %s491 = ssub.s32 16, 1
              loop: start=0, step=1, limit=1
              $region73: #{tpu_custom_call.1} parent=71 // loop_pre_header
                _
              $region74: #{tpu_custom_call.1} parent=71 // loop_header
                %s493 = sphi 0, %s497
                %p494 = scmp.ge.s32.totalorder %s493, 1
                %s498 = sphi %s483, %s483
                %s499 = sphi %s480, %s480
              $region75: #{tpu_custom_call.1} parent=71 // loop_header_branch
                %496 = sbr.rel (%p494) target = $region79
              $region76: #{tpu_custom_call.1} parent=71 // loop_body
                %v500 = vld [vmem:[%s498] sm:%s491]
                %501 = vst [vmem:[%s499] sm:%s491] %v500
                %v502 = vld [vmem:[%s498 + $0x8] sm:%s491]
                %503 = vst [vmem:[%s499 + $0x4] sm:%s491] %v502
                %v504 = vld [vmem:[%s498 + $0x10] sm:%s491]
                %505 = vst [vmem:[%s499 + $0x8] sm:%s491] %v504
                %v506 = vld [vmem:[%s498 + $0x18] sm:%s491]
                %507 = vst [vmem:[%s499 + $0xc] sm:%s491] %v506
                %v508 = vld [vmem:[%s498 + $0x20] sm:%s491]
                %509 = vst [vmem:[%s499 + $0x10] sm:%s491] %v508
                %v510 = vld [vmem:[%s498 + $0x28] sm:%s491]
                %511 = vst [vmem:[%s499 + $0x14] sm:%s491] %v510
                %v512 = vld [vmem:[%s498 + $0x30] sm:%s491]
                %513 = vst [vmem:[%s499 + $0x18] sm:%s491] %v512
                %v514 = vld [vmem:[%s498 + $0x38] sm:%s491]
                %515 = vst [vmem:[%s499 + $0x1c] sm:%s491] %v514
                %v516 = vld [vmem:[%s498 + $0x40] sm:%s491]
                %517 = vst [vmem:[%s499 + $0x20] sm:%s491] %v516
                %v518 = vld [vmem:[%s498 + $0x48] sm:%s491]
                %519 = vst [vmem:[%s499 + $0x24] sm:%s491] %v518
                %v520 = vld [vmem:[%s498 + $0x50] sm:%s491]
                %521 = vst [vmem:[%s499 + $0x28] sm:%s491] %v520
                %v522 = vld [vmem:[%s498 + $0x58] sm:%s491]
                %523 = vst [vmem:[%s499 + $0x2c] sm:%s491] %v522
                %v524 = vld [vmem:[%s498 + $0x60] sm:%s491]
                %525 = vst [vmem:[%s499 + $0x30] sm:%s491] %v524
                %v526 = vld [vmem:[%s498 + $0x68] sm:%s491]
                %527 = vst [vmem:[%s499 + $0x34] sm:%s491] %v526
                %v528 = vld [vmem:[%s498 + $0x70] sm:%s491]
                %529 = vst [vmem:[%s499 + $0x38] sm:%s491] %v528
                %v530 = vld [vmem:[%s498 + $0x78] sm:%s491]
                %531 = vst [vmem:[%s499 + $0x3c] sm:%s491] %v530
              $region77: #{tpu_custom_call.1} parent=71 // loop_footer
                %s497 = sadd.s32 1, %s493
              $region78: #{tpu_custom_call.1} parent=71 // loop_footer_branch
                %492 = sbr.rel target = $region74
              $region79: #{tpu_custom_call.1} parent=71 // loop_exit
                _
            $region72: #{tpu_custom_call.1} parent=63 // pred_fallthru
              _
          $region64: #{tpu_custom_call.1} parent=59 // pred_fallthru
            _
          %584 = vnop
        $region60: #{tpu_custom_call.1} parent=51 // pred_fallthru
          _
        // Predicated region
        $region98: #{tpu_custom_call.1} parent=51 // pred_check
          %p585 = pneg %p168
        $region99: #{tpu_custom_call.1} parent=51 // pred_check_branch
          %587 = sbr.rel (%p585) target = $region101
        $region100: #{tpu_custom_call.1} parent=51 // pred_region
          %s588 = sand.u32 %s27, 1
          %s589 = scalar_lea.sflag [#allocation8], %s588
          %s590 = sand.u32 %s158, 1
          %s591 = smul.addr %s590, 64
          %s592 = scalar_lea.vmem [#allocation13], %s591
          %s593 = ssub.s32 1, %s35
          %s594 = smul.u32 %s36, %s593
          %s595 = sadd.s32 %s594, %s35
          %597 = vsyncadd %s589, 0
          %s598 = smul.addr %s595, 4
          %s599 = scalar_lea.hbm %s4, %s598
          %s600 = sshll.u32 %s599, 4
          %s601 = int_to_ptr.hbm [resolvable:$true] %s600
          %s602 = sshll.u32 %s592, 4
          %s603 = int_to_ptr.vmem [resolvable:$true] %s602
          %608 = dma.hbm_to_vmem [thread:$0]  %s601, 1024, %s603, %s589, 128, 64, 4
        $region101: #{tpu_custom_call.1} parent=51 // pred_fallthru
          _
        // Predicated region
        $region102: #{tpu_custom_call.1} parent=51 // pred_check
          %p609 = pneg %p322
        $region103: #{tpu_custom_call.1} parent=51 // pred_check_branch
          %611 = sbr.rel (%p609) target = $region105
        $region104: #{tpu_custom_call.1} parent=51 // pred_region
          %s612 = sand.u32 %s27, 1
          %s613 = scalar_lea.sflag [#allocation8], %s612
          %s614 = sand.u32 %s312, 1
          %s615 = smul.addr %s614, 64
          %s616 = scalar_lea.vmem [#allocation17], %s615
          %s617 = smul.u32 %s36, %s35
          %s618 = smul.u32 16, %s617
          %620 = vsyncadd %s613, 0
          %s621 = smul.addr %s618, 4
          %s622 = scalar_lea.hbm %s11, %s621
          %s623 = sshll.u32 %s622, 4
          %s624 = int_to_ptr.hbm [resolvable:$true] %s623
          %s625 = sshll.u32 %s616, 4
          %s626 = int_to_ptr.vmem [resolvable:$true] %s625
          %631 = dma.hbm_to_vmem [thread:$0]  %s624, 1024, %s626, %s613, 64, 64, 4
        $region105: #{tpu_custom_call.1} parent=51 // pred_fallthru
          _
      $region52: #{tpu_custom_call.1} parent=5 // pred_fallthru
        _
      %p632 = scmp.le.s32.totalorder 1, %s27
      %p633 = scmp.lt.s32.totalorder %s27, 9
      %p634 = pnand %p632, %p633
      %p635 = pneg %p634
      // Predicated region
      $region106: #{tpu_custom_call.1} parent=5 // pred_check
        _
      $region107: #{tpu_custom_call.1} parent=5 // pred_check_branch
        %637 = sbr.rel (%p634) target = $region109
      $region108: #{tpu_custom_call.1} parent=5 // pred_region
        %s638 = ssub.s32 %s27, 1
        %s639 = sand.u32 %s32, 1
        %s640 = scalar_lea.sflag [#allocation8], %s639
        %s641 = sand.u32 %s59, 1
        %s642 = smul.addr %s641, 256
        %s643 = scalar_lea.vmem [#allocation7], %s642
        // Predicated region
        $region110: #{tpu_custom_call.1} parent=108 // pred_check
          %p644 = pneg %p72
        $region111: #{tpu_custom_call.1} parent=108 // pred_check_branch
          %646 = sbr.rel (%p644) target = $region113
        $region112: #{tpu_custom_call.1} parent=108 // pred_region
          %648 = dma.done %s640, 4096
        $region113: #{tpu_custom_call.1} parent=108 // pred_fallthru
          _
        // Predicated region
        $region114: #{tpu_custom_call.1} parent=108 // pred_check
          %p649 = pneg %p114
        $region115: #{tpu_custom_call.1} parent=108 // pred_check_branch
          %651 = sbr.rel (%p649) target = $region117
        $region116: #{tpu_custom_call.1} parent=108 // pred_region
          %653 = dma.done [#allocation11], 16
        $region117: #{tpu_custom_call.1} parent=108 // pred_fallthru
          _
        %s654 = sand.u32 %s129, 1
        %s655 = sand.u32 %s129, 1
        %s656 = smul.addr %s655, 64
        %s657 = scalar_lea.vmem [#allocation12], %s656
        // Predicated region
        $region118: #{tpu_custom_call.1} parent=108 // pred_check
          %p658 = pneg %p142
        $region119: #{tpu_custom_call.1} parent=108 // pred_check_branch
          %660 = sbr.rel (%p658) target = $region121
        $region120: #{tpu_custom_call.1} parent=108 // pred_region
          _
        $region121: #{tpu_custom_call.1} parent=108 // pred_fallthru
          _
        %s661 = sand.u32 %s32, 1
        %s662 = scalar_lea.sflag [#allocation8], %s661
        %s663 = sand.u32 %s161, 1
        %s664 = smul.addr %s663, 64
        %s665 = scalar_lea.vmem [#allocation13], %s664
        // Predicated region
        $region122: #{tpu_custom_call.1} parent=108 // pred_check
          %p666 = pneg %p174
        $region123: #{tpu_custom_call.1} parent=108 // pred_check_branch
          %668 = sbr.rel (%p666) target = $region125
        $region124: #{tpu_custom_call.1} parent=108 // pred_region
          %670 = dma.done %s662, 1024
        $region125: #{tpu_custom_call.1} parent=108 // pred_fallthru
          _
        // Predicated region
        $region126: #{tpu_custom_call.1} parent=108 // pred_check
          %p671 = pneg %p237
        $region127: #{tpu_custom_call.1} parent=108 // pred_check_branch
          %673 = sbr.rel (%p671) target = $region129
        $region128: #{tpu_custom_call.1} parent=108 // pred_region
          %675 = dma.done [#allocation11], 32
        $region129: #{tpu_custom_call.1} parent=108 // pred_fallthru
          _
        // Predicated region
        $region130: #{tpu_custom_call.1} parent=108 // pred_check
          %p676 = pneg %p279
        $region131: #{tpu_custom_call.1} parent=108 // pred_check_branch
          %678 = sbr.rel (%p676) target = $region133
        $region132: #{tpu_custom_call.1} parent=108 // pred_region
          %680 = dma.done [#allocation16], 1024
        $region133: #{tpu_custom_call.1} parent=108 // pred_fallthru
          _
        %s681 = sand.u32 %s32, 1
        %s682 = scalar_lea.sflag [#allocation8], %s681
        %s683 = sand.u32 %s315, 1
        %s684 = smul.addr %s683, 64
        %s685 = scalar_lea.vmem [#allocation17], %s684
        // Predicated region
        $region134: #{tpu_custom_call.1} parent=108 // pred_check
          %p686 = pneg %p328
        $region135: #{tpu_custom_call.1} parent=108 // pred_check_branch
          %688 = sbr.rel (%p686) target = $region137
        $region136: #{tpu_custom_call.1} parent=108 // pred_region
          %690 = dma.done %s682, 1024
        $region137: #{tpu_custom_call.1} parent=108 // pred_fallthru
          _
        %s691 = sand.u32 %s32, 1
        %s692 = scalar_lea.sflag [#allocation8], %s691
        %s693 = sand.u32 %s59, 1
        %s694 = smul.addr %s693, 256
        %s695 = scalar_lea.vmem [#allocation7], %s694
        %p696 = pneg %p72
        %p697 = pneg %p69
        %p698 = pneg %p93
        %p699 = pneg %p90
        %p700 = pneg %p114
        %p701 = pneg %p111
        %s702 = sand.u32 %s129, 1
        %s703 = sand.u32 %s129, 1
        %s704 = smul.addr %s703, 64
        %s705 = scalar_lea.vmem [#allocation12], %s704
        %p706 = pneg %p142
        %p707 = pneg %p139
        %s708 = sand.u32 %s32, 1
        %s709 = scalar_lea.sflag [#allocation8], %s708
        %s710 = sand.u32 %s161, 1
        %s711 = smul.addr %s710, 64
        %s712 = scalar_lea.vmem [#allocation13], %s711
        %p713 = pneg %p174
        %p714 = pneg %p171
        %p715 = pneg %p195
        %p716 = pneg %p192
        %p717 = pneg %p216
        %p718 = pneg %p213
        %p719 = pneg %p237
        %p720 = pneg %p234
        %p721 = pneg %p258
        %p722 = pneg %p255
        %p723 = pneg %p279
        %p724 = pneg %p276
        %p725 = pneg %p300
        %p726 = pneg %p297
        %s727 = sand.u32 %s32, 1
        %s728 = scalar_lea.sflag [#allocation8], %s727
        %s729 = sand.u32 %s315, 1
        %s730 = smul.addr %s729, 64
        %s731 = scalar_lea.vmem [#allocation17], %s730
        %p732 = pneg %p328
        %p733 = pneg %p325
        %p734 = pneg %p349
        %p735 = pneg %p346
        %p736 = pneg %p375
        %p737 = pneg %p372
        %s738 = sand.u32 %s362, 1
        %s739 = scalar_lea.sflag [#allocation9], %s738
        %s740 = sand.u32 %s362, 1
        %s741 = smul.addr %s740, 256
        %s742 = scalar_lea.vmem [#allocation18], %s741
        %s743 = smul.u32 %s39, %s38
        %s744 = ssub.s32 1, %s38
        %s745 = smul.u32 %s39, %s744
        %s746 = sadd.s32 %s745, %s38
        %s747 = smul.u32 %s39, %s38
        %s748 = smul.u32 16, %s747
        %p749 = scmp.eq.s32.totalorder %s38, 0
        %p750 = scmp.eq.s32.totalorder %s39, 0
        %p751 = pnand %p749, %p750
        %p752 = pneg %p751
        // Predicated region
        $region138: #{tpu_custom_call.1} parent=108 // pred_check
          _
        $region139: #{tpu_custom_call.1} parent=108 // pred_check_branch
          %754 = sbr.rel (%p751) target = $region141
        $region140: #{tpu_custom_call.1} parent=108 // pred_region
          %v755 = vld [vmem:[%s643] sm:$0xff]
          %v756 = vld [vmem:[%s643 + $0x8] sm:$0xff]
          %v757 = vld [vmem:[%s643 + $0x10] sm:$0xff]
          %v758 = vld [vmem:[%s643 + $0x18] sm:$0xff]
          %v759 = vld [vmem:[%s643 + $0x20] sm:$0xff]
          %v760 = vld [vmem:[%s643 + $0x28] sm:$0xff]
          %v761 = vld [vmem:[%s643 + $0x30] sm:$0xff]
          %v762 = vld [vmem:[%s643 + $0x38] sm:$0xff]
          %v763 = vld [vmem:[%s643 + $0x40] sm:$0xff]
          %v764 = vld [vmem:[%s643 + $0x48] sm:$0xff]
          %v765 = vld [vmem:[%s643 + $0x50] sm:$0xff]
          %v766 = vld [vmem:[%s643 + $0x58] sm:$0xff]
          %v767 = vld [vmem:[%s643 + $0x60] sm:$0xff]
          %v768 = vld [vmem:[%s643 + $0x68] sm:$0xff]
          %v769 = vld [vmem:[%s643 + $0x70] sm:$0xff]
          %v770 = vld [vmem:[%s643 + $0x78] sm:$0xff]
          %v771 = vld [vmem:[%s643 + $0x80] sm:$0xff]
          %v772 = vld [vmem:[%s643 + $0x88] sm:$0xff]
          %v773 = vld [vmem:[%s643 + $0x90] sm:$0xff]
          %v774 = vld [vmem:[%s643 + $0x98] sm:$0xff]
          %v775 = vld [vmem:[%s643 + $0xa0] sm:$0xff]
          %v776 = vld [vmem:[%s643 + $0xa8] sm:$0xff]
          %v777 = vld [vmem:[%s643 + $0xb0] sm:$0xff]
          %v778 = vld [vmem:[%s643 + $0xb8] sm:$0xff]
          %v779 = vld [vmem:[%s643 + $0xc0] sm:$0xff]
          %v780 = vld [vmem:[%s643 + $0xc8] sm:$0xff]
          %v781 = vld [vmem:[%s643 + $0xd0] sm:$0xff]
          %v782 = vld [vmem:[%s643 + $0xd8] sm:$0xff]
          %v783 = vld [vmem:[%s643 + $0xe0] sm:$0xff]
          %v784 = vld [vmem:[%s643 + $0xe8] sm:$0xff]
          %v785 = vld [vmem:[%s643 + $0xf0] sm:$0xff]
          %v786 = vld [vmem:[%s643 + $0xf8] sm:$0xff]
          %787 = vadd.xlane.f32.xlu0 %v755
          %v788 = vpop.xlane.xlu0 %787
          %789 = vadd.xlane.f32.xlu0 %v756
          %v790 = vpop.xlane.xlu0 %789
          %791 = vadd.xlane.f32.xlu0 %v757
          %v792 = vpop.xlane.xlu0 %791
          %793 = vadd.xlane.f32.xlu0 %v758
          %v794 = vpop.xlane.xlu0 %793
          %795 = vadd.xlane.f32.xlu0 %v759
          %v796 = vpop.xlane.xlu0 %795
          %797 = vadd.xlane.f32.xlu0 %v760
          %v798 = vpop.xlane.xlu0 %797
          %799 = vadd.xlane.f32.xlu0 %v761
          %v800 = vpop.xlane.xlu0 %799
          %801 = vadd.xlane.f32.xlu0 %v762
          %v802 = vpop.xlane.xlu0 %801
          %803 = vadd.xlane.f32.xlu0 %v763
          %v804 = vpop.xlane.xlu0 %803
          %805 = vadd.xlane.f32.xlu0 %v764
          %v806 = vpop.xlane.xlu0 %805
          %807 = vadd.xlane.f32.xlu0 %v765
          %v808 = vpop.xlane.xlu0 %807
          %809 = vadd.xlane.f32.xlu0 %v766
          %v810 = vpop.xlane.xlu0 %809
          %811 = vadd.xlane.f32.xlu0 %v767
          %v812 = vpop.xlane.xlu0 %811
          %813 = vadd.xlane.f32.xlu0 %v768
          %v814 = vpop.xlane.xlu0 %813
          %815 = vadd.xlane.f32.xlu0 %v769
          %v816 = vpop.xlane.xlu0 %815
          %817 = vadd.xlane.f32.xlu0 %v770
          %v818 = vpop.xlane.xlu0 %817
          %819 = vadd.xlane.f32.xlu0 %v771
          %v820 = vpop.xlane.xlu0 %819
          %821 = vadd.xlane.f32.xlu0 %v772
          %v822 = vpop.xlane.xlu0 %821
          %823 = vadd.xlane.f32.xlu0 %v773
          %v824 = vpop.xlane.xlu0 %823
          %825 = vadd.xlane.f32.xlu0 %v774
          %v826 = vpop.xlane.xlu0 %825
          %827 = vadd.xlane.f32.xlu0 %v775
          %v828 = vpop.xlane.xlu0 %827
          %829 = vadd.xlane.f32.xlu0 %v776
          %v830 = vpop.xlane.xlu0 %829
          %831 = vadd.xlane.f32.xlu0 %v777
          %v832 = vpop.xlane.xlu0 %831
          %833 = vadd.xlane.f32.xlu0 %v778
          %v834 = vpop.xlane.xlu0 %833
          %835 = vadd.xlane.f32.xlu0 %v779
          %v836 = vpop.xlane.xlu0 %835
          %837 = vadd.xlane.f32.xlu0 %v780
          %v838 = vpop.xlane.xlu0 %837
          %839 = vadd.xlane.f32.xlu0 %v781
          %v840 = vpop.xlane.xlu0 %839
          %841 = vadd.xlane.f32.xlu0 %v782
          %v842 = vpop.xlane.xlu0 %841
          %843 = vadd.xlane.f32.xlu0 %v783
          %v844 = vpop.xlane.xlu0 %843
          %845 = vadd.xlane.f32.xlu0 %v784
          %v846 = vpop.xlane.xlu0 %845
          %847 = vadd.xlane.f32.xlu0 %v785
          %v848 = vpop.xlane.xlu0 %847
          %849 = vadd.xlane.f32.xlu0 %v786
          %v850 = vpop.xlane.xlu0 %849
          %v851 = vrcp.pop 128.0
          %v852 = vmul.f32 128.0, %v851
          %v853 = vsub.f32 1.0, %v852
          %v854 = vmul.f32 %v851, %v853
          %v855 = vadd.f32 %v851, %v854
          %vm856 = vweird.f32 %v851
          %v857 = vsel %vm856, %v851, %v855
          %v858 = vmul.f32 %v788, %v857
          %v859 = vmul.f32 %v790, %v857
          %v860 = vmul.f32 %v792, %v857
          %v861 = vmul.f32 %v794, %v857
          %v862 = vmul.f32 %v796, %v857
          %v863 = vmul.f32 %v798, %v857
          %v864 = vmul.f32 %v800, %v857
          %v865 = vmul.f32 %v802, %v857
          %v866 = vmul.f32 %v804, %v857
          %v867 = vmul.f32 %v806, %v857
          %v868 = vmul.f32 %v808, %v857
          %v869 = vmul.f32 %v810, %v857
          %v870 = vmul.f32 %v812, %v857
          %v871 = vmul.f32 %v814, %v857
          %v872 = vmul.f32 %v816, %v857
          %v873 = vmul.f32 %v818, %v857
          %v874 = vmul.f32 %v820, %v857
          %v875 = vmul.f32 %v822, %v857
          %v876 = vmul.f32 %v824, %v857
          %v877 = vmul.f32 %v826, %v857
          %v878 = vmul.f32 %v828, %v857
          %v879 = vmul.f32 %v830, %v857
          %v880 = vmul.f32 %v832, %v857
          %v881 = vmul.f32 %v834, %v857
          %v882 = vmul.f32 %v836, %v857
          %v883 = vmul.f32 %v838, %v857
          %v884 = vmul.f32 %v840, %v857
          %v885 = vmul.f32 %v842, %v857
          %v886 = vmul.f32 %v844, %v857
          %v887 = vmul.f32 %v846, %v857
          %v888 = vmul.f32 %v848, %v857
          %v889 = vmul.f32 %v850, %v857
          %v890 = vsub.f32 %v755, %v858
          %v891 = vsub.f32 %v756, %v859
          %v892 = vsub.f32 %v757, %v860
          %v893 = vsub.f32 %v758, %v861
          %v894 = vsub.f32 %v759, %v862
          %v895 = vsub.f32 %v760, %v863
          %v896 = vsub.f32 %v761, %v864
          %v897 = vsub.f32 %v762, %v865
          %v898 = vsub.f32 %v763, %v866
          %v899 = vsub.f32 %v764, %v867
          %v900 = vsub.f32 %v765, %v868
          %v901 = vsub.f32 %v766, %v869
          %v902 = vsub.f32 %v767, %v870
          %v903 = vsub.f32 %v768, %v871
          %v904 = vsub.f32 %v769, %v872
          %v905 = vsub.f32 %v770, %v873
          %v906 = vsub.f32 %v771, %v874
          %v907 = vsub.f32 %v772, %v875
          %v908 = vsub.f32 %v773, %v876
          %v909 = vsub.f32 %v774, %v877
          %v910 = vsub.f32 %v775, %v878
          %v911 = vsub.f32 %v776, %v879
          %v912 = vsub.f32 %v777, %v880
          %v913 = vsub.f32 %v778, %v881
          %v914 = vsub.f32 %v779, %v882
          %v915 = vsub.f32 %v780, %v883
          %v916 = vsub.f32 %v781, %v884
          %v917 = vsub.f32 %v782, %v885
          %v918 = vsub.f32 %v783, %v886
          %v919 = vsub.f32 %v784, %v887
          %v920 = vsub.f32 %v785, %v888
          %v921 = vsub.f32 %v786, %v889
          %v922 = vmul.f32 %v890, %v890
          %v923 = vmul.f32 %v891, %v891
          %v924 = vmul.f32 %v892, %v892
          %v925 = vmul.f32 %v893, %v893
          %v926 = vmul.f32 %v894, %v894
          %v927 = vmul.f32 %v895, %v895
          %v928 = vmul.f32 %v896, %v896
          %v929 = vmul.f32 %v897, %v897
          %v930 = vmul.f32 %v898, %v898
          %v931 = vmul.f32 %v899, %v899
          %v932 = vmul.f32 %v900, %v900
          %v933 = vmul.f32 %v901, %v901
          %v934 = vmul.f32 %v902, %v902
          %v935 = vmul.f32 %v903, %v903
          %v936 = vmul.f32 %v904, %v904
          %v937 = vmul.f32 %v905, %v905
          %v938 = vmul.f32 %v906, %v906
          %v939 = vmul.f32 %v907, %v907
          %v940 = vmul.f32 %v908, %v908
          %v941 = vmul.f32 %v909, %v909
          %v942 = vmul.f32 %v910, %v910
          %v943 = vmul.f32 %v911, %v911
          %v944 = vmul.f32 %v912, %v912
          %v945 = vmul.f32 %v913, %v913
          %v946 = vmul.f32 %v914, %v914
          %v947 = vmul.f32 %v915, %v915
          %v948 = vmul.f32 %v916, %v916
          %v949 = vmul.f32 %v917, %v917
          %v950 = vmul.f32 %v918, %v918
          %v951 = vmul.f32 %v919, %v919
          %v952 = vmul.f32 %v920, %v920
          %v953 = vmul.f32 %v921, %v921
          %954 = vadd.xlane.f32.xlu0 %v922
          %v955 = vpop.xlane.xlu0 %954
          %956 = vadd.xlane.f32.xlu0 %v923
          %v957 = vpop.xlane.xlu0 %956
          %958 = vadd.xlane.f32.xlu0 %v924
          %v959 = vpop.xlane.xlu0 %958
          %960 = vadd.xlane.f32.xlu0 %v925
          %v961 = vpop.xlane.xlu0 %960
          %962 = vadd.xlane.f32.xlu0 %v926
          %v963 = vpop.xlane.xlu0 %962
          %964 = vadd.xlane.f32.xlu0 %v927
          %v965 = vpop.xlane.xlu0 %964
          %966 = vadd.xlane.f32.xlu0 %v928
          %v967 = vpop.xlane.xlu0 %966
          %968 = vadd.xlane.f32.xlu0 %v929
          %v969 = vpop.xlane.xlu0 %968
          %970 = vadd.xlane.f32.xlu0 %v930
          %v971 = vpop.xlane.xlu0 %970
          %972 = vadd.xlane.f32.xlu0 %v931
          %v973 = vpop.xlane.xlu0 %972
          %974 = vadd.xlane.f32.xlu0 %v932
          %v975 = vpop.xlane.xlu0 %974
          %976 = vadd.xlane.f32.xlu0 %v933
          %v977 = vpop.xlane.xlu0 %976
          %978 = vadd.xlane.f32.xlu0 %v934
          %v979 = vpop.xlane.xlu0 %978
          %980 = vadd.xlane.f32.xlu0 %v935
          %v981 = vpop.xlane.xlu0 %980
          %982 = vadd.xlane.f32.xlu0 %v936
          %v983 = vpop.xlane.xlu0 %982
          %984 = vadd.xlane.f32.xlu0 %v937
          %v985 = vpop.xlane.xlu0 %984
          %986 = vadd.xlane.f32.xlu0 %v938
          %v987 = vpop.xlane.xlu0 %986
          %988 = vadd.xlane.f32.xlu0 %v939
          %v989 = vpop.xlane.xlu0 %988
          %990 = vadd.xlane.f32.xlu0 %v940
          %v991 = vpop.xlane.xlu0 %990
          %992 = vadd.xlane.f32.xlu0 %v941
          %v993 = vpop.xlane.xlu0 %992
          %994 = vadd.xlane.f32.xlu0 %v942
          %v995 = vpop.xlane.xlu0 %994
          %996 = vadd.xlane.f32.xlu0 %v943
          %v997 = vpop.xlane.xlu0 %996
          %998 = vadd.xlane.f32.xlu0 %v944
          %v999 = vpop.xlane.xlu0 %998
          %1000 = vadd.xlane.f32.xlu0 %v945
          %v1001 = vpop.xlane.xlu0 %1000
          %1002 = vadd.xlane.f32.xlu0 %v946
          %v1003 = vpop.xlane.xlu0 %1002
          %1004 = vadd.xlane.f32.xlu0 %v947
          %v1005 = vpop.xlane.xlu0 %1004
          %1006 = vadd.xlane.f32.xlu0 %v948
          %v1007 = vpop.xlane.xlu0 %1006
          %1008 = vadd.xlane.f32.xlu0 %v949
          %v1009 = vpop.xlane.xlu0 %1008
          %1010 = vadd.xlane.f32.xlu0 %v950
          %v1011 = vpop.xlane.xlu0 %1010
          %1012 = vadd.xlane.f32.xlu0 %v951
          %v1013 = vpop.xlane.xlu0 %1012
          %1014 = vadd.xlane.f32.xlu0 %v952
          %v1015 = vpop.xlane.xlu0 %1014
          %1016 = vadd.xlane.f32.xlu0 %v953
          %v1017 = vpop.xlane.xlu0 %1016
          %v1018 = vmul.f32 %v955, %v857
          %v1019 = vmul.f32 %v957, %v857
          %v1020 = vmul.f32 %v959, %v857
          %v1021 = vmul.f32 %v961, %v857
          %v1022 = vmul.f32 %v963, %v857
          %v1023 = vmul.f32 %v965, %v857
          %v1024 = vmul.f32 %v967, %v857
          %v1025 = vmul.f32 %v969, %v857
          %v1026 = vmul.f32 %v971, %v857
          %v1027 = vmul.f32 %v973, %v857
          %v1028 = vmul.f32 %v975, %v857
          %v1029 = vmul.f32 %v977, %v857
          %v1030 = vmul.f32 %v979, %v857
          %v1031 = vmul.f32 %v981, %v857
          %v1032 = vmul.f32 %v983, %v857
          %v1033 = vmul.f32 %v985, %v857
          %v1034 = vmul.f32 %v987, %v857
          %v1035 = vmul.f32 %v989, %v857
          %v1036 = vmul.f32 %v991, %v857
          %v1037 = vmul.f32 %v993, %v857
          %v1038 = vmul.f32 %v995, %v857
          %v1039 = vmul.f32 %v997, %v857
          %v1040 = vmul.f32 %v999, %v857
          %v1041 = vmul.f32 %v1001, %v857
          %v1042 = vmul.f32 %v1003, %v857
          %v1043 = vmul.f32 %v1005, %v857
          %v1044 = vmul.f32 %v1007, %v857
          %v1045 = vmul.f32 %v1009, %v857
          %v1046 = vmul.f32 %v1011, %v857
          %v1047 = vmul.f32 %v1013, %v857
          %v1048 = vmul.f32 %v1015, %v857
          %v1049 = vmul.f32 %v1017, %v857
          %v1050 = vadd.f32 %v1018, 1e-05
          %v1051 = vadd.f32 %v1019, 1e-05
          %v1052 = vadd.f32 %v1020, 1e-05
          %v1053 = vadd.f32 %v1021, 1e-05
          %v1054 = vadd.f32 %v1022, 1e-05
          %v1055 = vadd.f32 %v1023, 1e-05
          %v1056 = vadd.f32 %v1024, 1e-05
          %v1057 = vadd.f32 %v1025, 1e-05
          %v1058 = vadd.f32 %v1026, 1e-05
          %v1059 = vadd.f32 %v1027, 1e-05
          %v1060 = vadd.f32 %v1028, 1e-05
          %v1061 = vadd.f32 %v1029, 1e-05
          %v1062 = vadd.f32 %v1030, 1e-05
          %v1063 = vadd.f32 %v1031, 1e-05
          %v1064 = vadd.f32 %v1032, 1e-05
          %v1065 = vadd.f32 %v1033, 1e-05
          %v1066 = vadd.f32 %v1034, 1e-05
          %v1067 = vadd.f32 %v1035, 1e-05
          %v1068 = vadd.f32 %v1036, 1e-05
          %v1069 = vadd.f32 %v1037, 1e-05
          %v1070 = vadd.f32 %v1038, 1e-05
          %v1071 = vadd.f32 %v1039, 1e-05
          %v1072 = vadd.f32 %v1040, 1e-05
          %v1073 = vadd.f32 %v1041, 1e-05
          %v1074 = vadd.f32 %v1042, 1e-05
          %v1075 = vadd.f32 %v1043, 1e-05
          %v1076 = vadd.f32 %v1044, 1e-05
          %v1077 = vadd.f32 %v1045, 1e-05
          %v1078 = vadd.f32 %v1046, 1e-05
          %v1079 = vadd.f32 %v1047, 1e-05
          %v1080 = vadd.f32 %v1048, 1e-05
          %v1081 = vadd.f32 %v1049, 1e-05
          %v1082 = vrsqrt.pop %v1050
          %v1083 = vmul.f32 %v1082, %v1050
          %v1084 = vmul.f32 %v1083, %v1082
          %v1085 = vmul.f32 0.5, %v1084
          %v1086 = vsub.f32 1.5, %v1085
          %v1087 = vmul.f32 %v1082, %v1086
          %vm1088 = vweird.f32 %v1050
          %vm1089 = vweird.f32 %v1082
          %vm1090 = vmor %vm1088, %vm1089
          %v1091 = vsel %vm1090, %v1082, %v1087
          %v1092 = vrsqrt.pop %v1051
          %v1093 = vmul.f32 %v1092, %v1051
          %v1094 = vmul.f32 %v1093, %v1092
          %v1095 = vmul.f32 0.5, %v1094
          %v1096 = vsub.f32 1.5, %v1095
          %v1097 = vmul.f32 %v1092, %v1096
          %vm1098 = vweird.f32 %v1051
          %vm1099 = vweird.f32 %v1092
          %vm1100 = vmor %vm1098, %vm1099
          %v1101 = vsel %vm1100, %v1092, %v1097
          %v1102 = vrsqrt.pop %v1052
          %v1103 = vmul.f32 %v1102, %v1052
          %v1104 = vmul.f32 %v1103, %v1102
          %v1105 = vmul.f32 0.5, %v1104
          %v1106 = vsub.f32 1.5, %v1105
          %v1107 = vmul.f32 %v1102, %v1106
          %vm1108 = vweird.f32 %v1052
          %vm1109 = vweird.f32 %v1102
          %vm1110 = vmor %vm1108, %vm1109
          %v1111 = vsel %vm1110, %v1102, %v1107
          %v1112 = vrsqrt.pop %v1053
          %v1113 = vmul.f32 %v1112, %v1053
          %v1114 = vmul.f32 %v1113, %v1112
          %v1115 = vmul.f32 0.5, %v1114
          %v1116 = vsub.f32 1.5, %v1115
          %v1117 = vmul.f32 %v1112, %v1116
          %vm1118 = vweird.f32 %v1053
          %vm1119 = vweird.f32 %v1112
          %vm1120 = vmor %vm1118, %vm1119
          %v1121 = vsel %vm1120, %v1112, %v1117
          %v1122 = vrsqrt.pop %v1054
          %v1123 = vmul.f32 %v1122, %v1054
          %v1124 = vmul.f32 %v1123, %v1122
          %v1125 = vmul.f32 0.5, %v1124
          %v1126 = vsub.f32 1.5, %v1125
          %v1127 = vmul.f32 %v1122, %v1126
          %vm1128 = vweird.f32 %v1054
          %vm1129 = vweird.f32 %v1122
          %vm1130 = vmor %vm1128, %vm1129
          %v1131 = vsel %vm1130, %v1122, %v1127
          %v1132 = vrsqrt.pop %v1055
          %v1133 = vmul.f32 %v1132, %v1055
          %v1134 = vmul.f32 %v1133, %v1132
          %v1135 = vmul.f32 0.5, %v1134
          %v1136 = vsub.f32 1.5, %v1135
          %v1137 = vmul.f32 %v1132, %v1136
          %vm1138 = vweird.f32 %v1055
          %vm1139 = vweird.f32 %v1132
          %vm1140 = vmor %vm1138, %vm1139
          %v1141 = vsel %vm1140, %v1132, %v1137
          %v1142 = vrsqrt.pop %v1056
          %v1143 = vmul.f32 %v1142, %v1056
          %v1144 = vmul.f32 %v1143, %v1142
          %v1145 = vmul.f32 0.5, %v1144
          %v1146 = vsub.f32 1.5, %v1145
          %v1147 = vmul.f32 %v1142, %v1146
          %vm1148 = vweird.f32 %v1056
          %vm1149 = vweird.f32 %v1142
          %vm1150 = vmor %vm1148, %vm1149
          %v1151 = vsel %vm1150, %v1142, %v1147
          %v1152 = vrsqrt.pop %v1057
          %v1153 = vmul.f32 %v1152, %v1057
          %v1154 = vmul.f32 %v1153, %v1152
          %v1155 = vmul.f32 0.5, %v1154
          %v1156 = vsub.f32 1.5, %v1155
          %v1157 = vmul.f32 %v1152, %v1156
          %vm1158 = vweird.f32 %v1057
          %vm1159 = vweird.f32 %v1152
          %vm1160 = vmor %vm1158, %vm1159
          %v1161 = vsel %vm1160, %v1152, %v1157
          %v1162 = vrsqrt.pop %v1058
          %v1163 = vmul.f32 %v1162, %v1058
          %v1164 = vmul.f32 %v1163, %v1162
          %v1165 = vmul.f32 0.5, %v1164
          %v1166 = vsub.f32 1.5, %v1165
          %v1167 = vmul.f32 %v1162, %v1166
          %vm1168 = vweird.f32 %v1058
          %vm1169 = vweird.f32 %v1162
          %vm1170 = vmor %vm1168, %vm1169
          %v1171 = vsel %vm1170, %v1162, %v1167
          %v1172 = vrsqrt.pop %v1059
          %v1173 = vmul.f32 %v1172, %v1059
          %v1174 = vmul.f32 %v1173, %v1172
          %v1175 = vmul.f32 0.5, %v1174
          %v1176 = vsub.f32 1.5, %v1175
          %v1177 = vmul.f32 %v1172, %v1176
          %vm1178 = vweird.f32 %v1059
          %vm1179 = vweird.f32 %v1172
          %vm1180 = vmor %vm1178, %vm1179
          %v1181 = vsel %vm1180, %v1172, %v1177
          %v1182 = vrsqrt.pop %v1060
          %v1183 = vmul.f32 %v1182, %v1060
          %v1184 = vmul.f32 %v1183, %v1182
          %v1185 = vmul.f32 0.5, %v1184
          %v1186 = vsub.f32 1.5, %v1185
          %v1187 = vmul.f32 %v1182, %v1186
          %vm1188 = vweird.f32 %v1060
          %vm1189 = vweird.f32 %v1182
          %vm1190 = vmor %vm1188, %vm1189
          %v1191 = vsel %vm1190, %v1182, %v1187
          %v1192 = vrsqrt.pop %v1061
          %v1193 = vmul.f32 %v1192, %v1061
          %v1194 = vmul.f32 %v1193, %v1192
          %v1195 = vmul.f32 0.5, %v1194
          %v1196 = vsub.f32 1.5, %v1195
          %v1197 = vmul.f32 %v1192, %v1196
          %vm1198 = vweird.f32 %v1061
          %vm1199 = vweird.f32 %v1192
          %vm1200 = vmor %vm1198, %vm1199
          %v1201 = vsel %vm1200, %v1192, %v1197
          %v1202 = vrsqrt.pop %v1062
          %v1203 = vmul.f32 %v1202, %v1062
          %v1204 = vmul.f32 %v1203, %v1202
          %v1205 = vmul.f32 0.5, %v1204
          %v1206 = vsub.f32 1.5, %v1205
          %v1207 = vmul.f32 %v1202, %v1206
          %vm1208 = vweird.f32 %v1062
          %vm1209 = vweird.f32 %v1202
          %vm1210 = vmor %vm1208, %vm1209
          %v1211 = vsel %vm1210, %v1202, %v1207
          %v1212 = vrsqrt.pop %v1063
          %v1213 = vmul.f32 %v1212, %v1063
          %v1214 = vmul.f32 %v1213, %v1212
          %v1215 = vmul.f32 0.5, %v1214
          %v1216 = vsub.f32 1.5, %v1215
          %v1217 = vmul.f32 %v1212, %v1216
          %vm1218 = vweird.f32 %v1063
          %vm1219 = vweird.f32 %v1212
          %vm1220 = vmor %vm1218, %vm1219
          %v1221 = vsel %vm1220, %v1212, %v1217
          %v1222 = vrsqrt.pop %v1064
          %v1223 = vmul.f32 %v1222, %v1064
          %v1224 = vmul.f32 %v1223, %v1222
          %v1225 = vmul.f32 0.5, %v1224
          %v1226 = vsub.f32 1.5, %v1225
          %v1227 = vmul.f32 %v1222, %v1226
          %vm1228 = vweird.f32 %v1064
          %vm1229 = vweird.f32 %v1222
          %vm1230 = vmor %vm1228, %vm1229
          %v1231 = vsel %vm1230, %v1222, %v1227
          %v1232 = vrsqrt.pop %v1065
          %v1233 = vmul.f32 %v1232, %v1065
          %v1234 = vmul.f32 %v1233, %v1232
          %v1235 = vmul.f32 0.5, %v1234
          %v1236 = vsub.f32 1.5, %v1235
          %v1237 = vmul.f32 %v1232, %v1236
          %vm1238 = vweird.f32 %v1065
          %vm1239 = vweird.f32 %v1232
          %vm1240 = vmor %vm1238, %vm1239
          %v1241 = vsel %vm1240, %v1232, %v1237
          %v1242 = vrsqrt.pop %v1066
          %v1243 = vmul.f32 %v1242, %v1066
          %v1244 = vmul.f32 %v1243, %v1242
          %v1245 = vmul.f32 0.5, %v1244
          %v1246 = vsub.f32 1.5, %v1245
          %v1247 = vmul.f32 %v1242, %v1246
          %vm1248 = vweird.f32 %v1066
          %vm1249 = vweird.f32 %v1242
          %vm1250 = vmor %vm1248, %vm1249
          %v1251 = vsel %vm1250, %v1242, %v1247
          %v1252 = vrsqrt.pop %v1067
          %v1253 = vmul.f32 %v1252, %v1067
          %v1254 = vmul.f32 %v1253, %v1252
          %v1255 = vmul.f32 0.5, %v1254
          %v1256 = vsub.f32 1.5, %v1255
          %v1257 = vmul.f32 %v1252, %v1256
          %vm1258 = vweird.f32 %v1067
          %vm1259 = vweird.f32 %v1252
          %vm1260 = vmor %vm1258, %vm1259
          %v1261 = vsel %vm1260, %v1252, %v1257
          %v1262 = vrsqrt.pop %v1068
          %v1263 = vmul.f32 %v1262, %v1068
          %v1264 = vmul.f32 %v1263, %v1262
          %v1265 = vmul.f32 0.5, %v1264
          %v1266 = vsub.f32 1.5, %v1265
          %v1267 = vmul.f32 %v1262, %v1266
          %vm1268 = vweird.f32 %v1068
          %vm1269 = vweird.f32 %v1262
          %vm1270 = vmor %vm1268, %vm1269
          %v1271 = vsel %vm1270, %v1262, %v1267
          %v1272 = vrsqrt.pop %v1069
          %v1273 = vmul.f32 %v1272, %v1069
          %v1274 = vmul.f32 %v1273, %v1272
          %v1275 = vmul.f32 0.5, %v1274
          %v1276 = vsub.f32 1.5, %v1275
          %v1277 = vmul.f32 %v1272, %v1276
          %vm1278 = vweird.f32 %v1069
          %vm1279 = vweird.f32 %v1272
          %vm1280 = vmor %vm1278, %vm1279
          %v1281 = vsel %vm1280, %v1272, %v1277
          %v1282 = vrsqrt.pop %v1070
          %v1283 = vmul.f32 %v1282, %v1070
          %v1284 = vmul.f32 %v1283, %v1282
          %v1285 = vmul.f32 0.5, %v1284
          %v1286 = vsub.f32 1.5, %v1285
          %v1287 = vmul.f32 %v1282, %v1286
          %vm1288 = vweird.f32 %v1070
          %vm1289 = vweird.f32 %v1282
          %vm1290 = vmor %vm1288, %vm1289
          %v1291 = vsel %vm1290, %v1282, %v1287
          %v1292 = vrsqrt.pop %v1071
          %v1293 = vmul.f32 %v1292, %v1071
          %v1294 = vmul.f32 %v1293, %v1292
          %v1295 = vmul.f32 0.5, %v1294
          %v1296 = vsub.f32 1.5, %v1295
          %v1297 = vmul.f32 %v1292, %v1296
          %vm1298 = vweird.f32 %v1071
          %vm1299 = vweird.f32 %v1292
          %vm1300 = vmor %vm1298, %vm1299
          %v1301 = vsel %vm1300, %v1292, %v1297
          %v1302 = vrsqrt.pop %v1072
          %v1303 = vmul.f32 %v1302, %v1072
          %v1304 = vmul.f32 %v1303, %v1302
          %v1305 = vmul.f32 0.5, %v1304
          %v1306 = vsub.f32 1.5, %v1305
          %v1307 = vmul.f32 %v1302, %v1306
          %vm1308 = vweird.f32 %v1072
          %vm1309 = vweird.f32 %v1302
          %vm1310 = vmor %vm1308, %vm1309
          %v1311 = vsel %vm1310, %v1302, %v1307
          %v1312 = vrsqrt.pop %v1073
          %v1313 = vmul.f32 %v1312, %v1073
          %v1314 = vmul.f32 %v1313, %v1312
          %v1315 = vmul.f32 0.5, %v1314
          %v1316 = vsub.f32 1.5, %v1315
          %v1317 = vmul.f32 %v1312, %v1316
          %vm1318 = vweird.f32 %v1073
          %vm1319 = vweird.f32 %v1312
          %vm1320 = vmor %vm1318, %vm1319
          %v1321 = vsel %vm1320, %v1312, %v1317
          %v1322 = vrsqrt.pop %v1074
          %v1323 = vmul.f32 %v1322, %v1074
          %v1324 = vmul.f32 %v1323, %v1322
          %v1325 = vmul.f32 0.5, %v1324
          %v1326 = vsub.f32 1.5, %v1325
          %v1327 = vmul.f32 %v1322, %v1326
          %vm1328 = vweird.f32 %v1074
          %vm1329 = vweird.f32 %v1322
          %vm1330 = vmor %vm1328, %vm1329
          %v1331 = vsel %vm1330, %v1322, %v1327
          %v1332 = vrsqrt.pop %v1075
          %v1333 = vmul.f32 %v1332, %v1075
          %v1334 = vmul.f32 %v1333, %v1332
          %v1335 = vmul.f32 0.5, %v1334
          %v1336 = vsub.f32 1.5, %v1335
          %v1337 = vmul.f32 %v1332, %v1336
          %vm1338 = vweird.f32 %v1075
          %vm1339 = vweird.f32 %v1332
          %vm1340 = vmor %vm1338, %vm1339
          %v1341 = vsel %vm1340, %v1332, %v1337
          %v1342 = vrsqrt.pop %v1076
          %v1343 = vmul.f32 %v1342, %v1076
          %v1344 = vmul.f32 %v1343, %v1342
          %v1345 = vmul.f32 0.5, %v1344
          %v1346 = vsub.f32 1.5, %v1345
          %v1347 = vmul.f32 %v1342, %v1346
          %vm1348 = vweird.f32 %v1076
          %vm1349 = vweird.f32 %v1342
          %vm1350 = vmor %vm1348, %vm1349
          %v1351 = vsel %vm1350, %v1342, %v1347
          %v1352 = vrsqrt.pop %v1077
          %v1353 = vmul.f32 %v1352, %v1077
          %v1354 = vmul.f32 %v1353, %v1352
          %v1355 = vmul.f32 0.5, %v1354
          %v1356 = vsub.f32 1.5, %v1355
          %v1357 = vmul.f32 %v1352, %v1356
          %vm1358 = vweird.f32 %v1077
          %vm1359 = vweird.f32 %v1352
          %vm1360 = vmor %vm1358, %vm1359
          %v1361 = vsel %vm1360, %v1352, %v1357
          %v1362 = vrsqrt.pop %v1078
          %v1363 = vmul.f32 %v1362, %v1078
          %v1364 = vmul.f32 %v1363, %v1362
          %v1365 = vmul.f32 0.5, %v1364
          %v1366 = vsub.f32 1.5, %v1365
          %v1367 = vmul.f32 %v1362, %v1366
          %vm1368 = vweird.f32 %v1078
          %vm1369 = vweird.f32 %v1362
          %vm1370 = vmor %vm1368, %vm1369
          %v1371 = vsel %vm1370, %v1362, %v1367
          %v1372 = vrsqrt.pop %v1079
          %v1373 = vmul.f32 %v1372, %v1079
          %v1374 = vmul.f32 %v1373, %v1372
          %v1375 = vmul.f32 0.5, %v1374
          %v1376 = vsub.f32 1.5, %v1375
          %v1377 = vmul.f32 %v1372, %v1376
          %vm1378 = vweird.f32 %v1079
          %vm1379 = vweird.f32 %v1372
          %vm1380 = vmor %vm1378, %vm1379
          %v1381 = vsel %vm1380, %v1372, %v1377
          %v1382 = vrsqrt.pop %v1080
          %v1383 = vmul.f32 %v1382, %v1080
          %v1384 = vmul.f32 %v1383, %v1382
          %v1385 = vmul.f32 0.5, %v1384
          %v1386 = vsub.f32 1.5, %v1385
          %v1387 = vmul.f32 %v1382, %v1386
          %vm1388 = vweird.f32 %v1080
          %vm1389 = vweird.f32 %v1382
          %vm1390 = vmor %vm1388, %vm1389
          %v1391 = vsel %vm1390, %v1382, %v1387
          %v1392 = vrsqrt.pop %v1081
          %v1393 = vmul.f32 %v1392, %v1081
          %v1394 = vmul.f32 %v1393, %v1392
          %v1395 = vmul.f32 0.5, %v1394
          %v1396 = vsub.f32 1.5, %v1395
          %v1397 = vmul.f32 %v1392, %v1396
          %vm1398 = vweird.f32 %v1081
          %vm1399 = vweird.f32 %v1392
          %vm1400 = vmor %vm1398, %vm1399
          %v1401 = vsel %vm1400, %v1392, %v1397
          %v1402 = vmul.f32 %v890, %v1091
          %v1403 = vmul.f32 %v891, %v1101
          %v1404 = vmul.f32 %v892, %v1111
          %v1405 = vmul.f32 %v893, %v1121
          %v1406 = vmul.f32 %v894, %v1131
          %v1407 = vmul.f32 %v895, %v1141
          %v1408 = vmul.f32 %v896, %v1151
          %v1409 = vmul.f32 %v897, %v1161
          %v1410 = vmul.f32 %v898, %v1171
          %v1411 = vmul.f32 %v899, %v1181
          %v1412 = vmul.f32 %v900, %v1191
          %v1413 = vmul.f32 %v901, %v1201
          %v1414 = vmul.f32 %v902, %v1211
          %v1415 = vmul.f32 %v903, %v1221
          %v1416 = vmul.f32 %v904, %v1231
          %v1417 = vmul.f32 %v905, %v1241
          %v1418 = vmul.f32 %v906, %v1251
          %v1419 = vmul.f32 %v907, %v1261
          %v1420 = vmul.f32 %v908, %v1271
          %v1421 = vmul.f32 %v909, %v1281
          %v1422 = vmul.f32 %v910, %v1291
          %v1423 = vmul.f32 %v911, %v1301
          %v1424 = vmul.f32 %v912, %v1311
          %v1425 = vmul.f32 %v913, %v1321
          %v1426 = vmul.f32 %v914, %v1331
          %v1427 = vmul.f32 %v915, %v1341
          %v1428 = vmul.f32 %v916, %v1351
          %v1429 = vmul.f32 %v917, %v1361
          %v1430 = vmul.f32 %v918, %v1371
          %v1431 = vmul.f32 %v919, %v1381
          %v1432 = vmul.f32 %v920, %v1391
          %v1433 = vmul.f32 %v921, %v1401
          %v1434 = vld [vmem:[%s1] sm:$0x1]
          %v1436 = vperm.slane %v1434, 0
          %v1438 = vmul.f32 %v1402, %v1436
          %v1439 = vmul.f32 %v1403, %v1436
          %v1440 = vmul.f32 %v1404, %v1436
          %v1441 = vmul.f32 %v1405, %v1436
          %v1442 = vmul.f32 %v1406, %v1436
          %v1443 = vmul.f32 %v1407, %v1436
          %v1444 = vmul.f32 %v1408, %v1436
          %v1445 = vmul.f32 %v1409, %v1436
          %v1446 = vmul.f32 %v1410, %v1436
          %v1447 = vmul.f32 %v1411, %v1436
          %v1448 = vmul.f32 %v1412, %v1436
          %v1449 = vmul.f32 %v1413, %v1436
          %v1450 = vmul.f32 %v1414, %v1436
          %v1451 = vmul.f32 %v1415, %v1436
          %v1452 = vmul.f32 %v1416, %v1436
          %v1453 = vmul.f32 %v1417, %v1436
          %v1454 = vmul.f32 %v1418, %v1436
          %v1455 = vmul.f32 %v1419, %v1436
          %v1456 = vmul.f32 %v1420, %v1436
          %v1457 = vmul.f32 %v1421, %v1436
          %v1458 = vmul.f32 %v1422, %v1436
          %v1459 = vmul.f32 %v1423, %v1436
          %v1460 = vmul.f32 %v1424, %v1436
          %v1461 = vmul.f32 %v1425, %v1436
          %v1462 = vmul.f32 %v1426, %v1436
          %v1463 = vmul.f32 %v1427, %v1436
          %v1464 = vmul.f32 %v1428, %v1436
          %v1465 = vmul.f32 %v1429, %v1436
          %v1466 = vmul.f32 %v1430, %v1436
          %v1467 = vmul.f32 %v1431, %v1436
          %v1468 = vmul.f32 %v1432, %v1436
          %v1469 = vmul.f32 %v1433, %v1436
          %v1470 = vld [vmem:[#allocation10] sm:$0x1]
          %v1472 = vperm.slane %v1470, 0
          %v1474 = vadd.f32 %v1438, %v1472
          %v1475 = vadd.f32 %v1439, %v1472
          %v1476 = vadd.f32 %v1440, %v1472
          %v1477 = vadd.f32 %v1441, %v1472
          %v1478 = vadd.f32 %v1442, %v1472
          %v1479 = vadd.f32 %v1443, %v1472
          %v1480 = vadd.f32 %v1444, %v1472
          %v1481 = vadd.f32 %v1445, %v1472
          %v1482 = vadd.f32 %v1446, %v1472
          %v1483 = vadd.f32 %v1447, %v1472
          %v1484 = vadd.f32 %v1448, %v1472
          %v1485 = vadd.f32 %v1449, %v1472
          %v1486 = vadd.f32 %v1450, %v1472
          %v1487 = vadd.f32 %v1451, %v1472
          %v1488 = vadd.f32 %v1452, %v1472
          %v1489 = vadd.f32 %v1453, %v1472
          %v1490 = vadd.f32 %v1454, %v1472
          %v1491 = vadd.f32 %v1455, %v1472
          %v1492 = vadd.f32 %v1456, %v1472
          %v1493 = vadd.f32 %v1457, %v1472
          %v1494 = vadd.f32 %v1458, %v1472
          %v1495 = vadd.f32 %v1459, %v1472
          %v1496 = vadd.f32 %v1460, %v1472
          %v1497 = vadd.f32 %v1461, %v1472
          %v1498 = vadd.f32 %v1462, %v1472
          %v1499 = vadd.f32 %v1463, %v1472
          %v1500 = vadd.f32 %v1464, %v1472
          %v1501 = vadd.f32 %v1465, %v1472
          %v1502 = vadd.f32 %v1466, %v1472
          %v1503 = vadd.f32 %v1467, %v1472
          %v1504 = vadd.f32 %v1468, %v1472
          %v1505 = vadd.f32 %v1469, %v1472
          %v1506 = vpack.c.bf16 %v1474, %v1474
          %v1507 = vpack.c.bf16 %v1475, %v1475
          %v1508 = vpack.c.bf16 %v1476, %v1476
          %v1509 = vpack.c.bf16 %v1477, %v1477
          %v1510 = vpack.c.bf16 %v1478, %v1478
          %v1511 = vpack.c.bf16 %v1479, %v1479
          %v1512 = vpack.c.bf16 %v1480, %v1480
          %v1513 = vpack.c.bf16 %v1481, %v1481
          %v1514 = vpack.c.bf16 %v1482, %v1482
          %v1515 = vpack.c.bf16 %v1483, %v1483
          %v1516 = vpack.c.bf16 %v1484, %v1484
          %v1517 = vpack.c.bf16 %v1485, %v1485
          %v1518 = vpack.c.bf16 %v1486, %v1486
          %v1519 = vpack.c.bf16 %v1487, %v1487
          %v1520 = vpack.c.bf16 %v1488, %v1488
          %v1521 = vpack.c.bf16 %v1489, %v1489
          %v1522 = vpack.c.bf16 %v1490, %v1490
          %v1523 = vpack.c.bf16 %v1491, %v1491
          %v1524 = vpack.c.bf16 %v1492, %v1492
          %v1525 = vpack.c.bf16 %v1493, %v1493
          %v1526 = vpack.c.bf16 %v1494, %v1494
          %v1527 = vpack.c.bf16 %v1495, %v1495
          %v1528 = vpack.c.bf16 %v1496, %v1496
          %v1529 = vpack.c.bf16 %v1497, %v1497
          %v1530 = vpack.c.bf16 %v1498, %v1498
          %v1531 = vpack.c.bf16 %v1499, %v1499
          %v1532 = vpack.c.bf16 %v1500, %v1500
          %v1533 = vpack.c.bf16 %v1501, %v1501
          %v1534 = vpack.c.bf16 %v1502, %v1502
          %v1535 = vpack.c.bf16 %v1503, %v1503
          %v1536 = vpack.c.bf16 %v1504, %v1504
          %v1537 = vpack.c.bf16 %v1505, %v1505
          %1538 = vst [vmem:[#allocation2] sm:$0xf] %v1506
          %1539 = vst [vmem:[#allocation2 + $0x4] sm:$0xf] %v1507
          %1540 = vst [vmem:[#allocation2 + $0x8] sm:$0xf] %v1508
          %1541 = vst [vmem:[#allocation2 + $0xc] sm:$0xf] %v1509
          %1542 = vst [vmem:[#allocation2 + $0x10] sm:$0xf] %v1510
          %1543 = vst [vmem:[#allocation2 + $0x14] sm:$0xf] %v1511
          %1544 = vst [vmem:[#allocation2 + $0x18] sm:$0xf] %v1512
          %1545 = vst [vmem:[#allocation2 + $0x1c] sm:$0xf] %v1513
          %1546 = vst [vmem:[#allocation2 + $0x20] sm:$0xf] %v1514
          %1547 = vst [vmem:[#allocation2 + $0x24] sm:$0xf] %v1515
          %1548 = vst [vmem:[#allocation2 + $0x28] sm:$0xf] %v1516
          %1549 = vst [vmem:[#allocation2 + $0x2c] sm:$0xf] %v1517
          %1550 = vst [vmem:[#allocation2 + $0x30] sm:$0xf] %v1518
          %1551 = vst [vmem:[#allocation2 + $0x34] sm:$0xf] %v1519
          %1552 = vst [vmem:[#allocation2 + $0x38] sm:$0xf] %v1520
          %1553 = vst [vmem:[#allocation2 + $0x3c] sm:$0xf] %v1521
          %1554 = vst [vmem:[#allocation2 + $0x40] sm:$0xf] %v1522
          %1555 = vst [vmem:[#allocation2 + $0x44] sm:$0xf] %v1523
          %1556 = vst [vmem:[#allocation2 + $0x48] sm:$0xf] %v1524
          %1557 = vst [vmem:[#allocation2 + $0x4c] sm:$0xf] %v1525
          %1558 = vst [vmem:[#allocation2 + $0x50] sm:$0xf] %v1526
          %1559 = vst [vmem:[#allocation2 + $0x54] sm:$0xf] %v1527
          %1560 = vst [vmem:[#allocation2 + $0x58] sm:$0xf] %v1528
          %1561 = vst [vmem:[#allocation2 + $0x5c] sm:$0xf] %v1529
          %1562 = vst [vmem:[#allocation2 + $0x60] sm:$0xf] %v1530
          %1563 = vst [vmem:[#allocation2 + $0x64] sm:$0xf] %v1531
          %1564 = vst [vmem:[#allocation2 + $0x68] sm:$0xf] %v1532
          %1565 = vst [vmem:[#allocation2 + $0x6c] sm:$0xf] %v1533
          %1566 = vst [vmem:[#allocation2 + $0x70] sm:$0xf] %v1534
          %1567 = vst [vmem:[#allocation2 + $0x74] sm:$0xf] %v1535
          %1568 = vst [vmem:[#allocation2 + $0x78] sm:$0xf] %v1536
          %1569 = vst [vmem:[#allocation2 + $0x7c] sm:$0xf] %v1537
          %vm1570 = vcmask 7168
          %1571 = vst.msk [vmem:[#allocation4] sm:$0xff] %vm1570, 0.0
          %1572 = vst.msk [vmem:[#allocation4 + $0x8] sm:$0xff] %vm1570, 0.0
          %1573 = vst.msk [vmem:[#allocation4 + $0x10] sm:$0xff] %vm1570, 0.0
          %1574 = vst.msk [vmem:[#allocation4 + $0x18] sm:$0xff] %vm1570, 0.0
          %1575 = vst.msk [vmem:[#allocation4 + $0x20] sm:$0xff] %vm1570, 0.0
          %1576 = vst.msk [vmem:[#allocation4 + $0x28] sm:$0xff] %vm1570, 0.0
          %1577 = vst.msk [vmem:[#allocation4 + $0x30] sm:$0xff] %vm1570, 0.0
          %1578 = vst.msk [vmem:[#allocation4 + $0x38] sm:$0xff] %vm1570, 0.0
          %1579 = vst.msk [vmem:[#allocation4 + $0x40] sm:$0xff] %vm1570, 0.0
          %1580 = vst.msk [vmem:[#allocation4 + $0x48] sm:$0xff] %vm1570, 0.0
          %1581 = vst.msk [vmem:[#allocation4 + $0x50] sm:$0xff] %vm1570, 0.0
          %1582 = vst.msk [vmem:[#allocation4 + $0x58] sm:$0xff] %vm1570, 0.0
          %1583 = vst.msk [vmem:[#allocation4 + $0x60] sm:$0xff] %vm1570, 0.0
          %1584 = vst.msk [vmem:[#allocation4 + $0x68] sm:$0xff] %vm1570, 0.0
          %1585 = vst.msk [vmem:[#allocation4 + $0x70] sm:$0xff] %vm1570, 0.0
          %1586 = vst.msk [vmem:[#allocation4 + $0x78] sm:$0xff] %vm1570, 0.0
          %1587 = vst.msk [vmem:[#allocation4 + $0x80] sm:$0xff] %vm1570, 0.0
          %1588 = vst.msk [vmem:[#allocation4 + $0x88] sm:$0xff] %vm1570, 0.0
          %1589 = vst.msk [vmem:[#allocation4 + $0x90] sm:$0xff] %vm1570, 0.0
          %1590 = vst.msk [vmem:[#allocation4 + $0x98] sm:$0xff] %vm1570, 0.0
          %1591 = vst.msk [vmem:[#allocation4 + $0xa0] sm:$0xff] %vm1570, 0.0
          %1592 = vst.msk [vmem:[#allocation4 + $0xa8] sm:$0xff] %vm1570, 0.0
          %1593 = vst.msk [vmem:[#allocation4 + $0xb0] sm:$0xff] %vm1570, 0.0
          %1594 = vst.msk [vmem:[#allocation4 + $0xb8] sm:$0xff] %vm1570, 0.0
          %1595 = vst.msk [vmem:[#allocation4 + $0xc0] sm:$0xff] %vm1570, 0.0
          %1596 = vst.msk [vmem:[#allocation4 + $0xc8] sm:$0xff] %vm1570, 0.0
          %1597 = vst.msk [vmem:[#allocation4 + $0xd0] sm:$0xff] %vm1570, 0.0
          %1598 = vst.msk [vmem:[#allocation4 + $0xd8] sm:$0xff] %vm1570, 0.0
          %1599 = vst.msk [vmem:[#allocation4 + $0xe0] sm:$0xff] %vm1570, 0.0
          %1600 = vst.msk [vmem:[#allocation4 + $0xe8] sm:$0xff] %vm1570, 0.0
          %1601 = vst.msk [vmem:[#allocation4 + $0xf0] sm:$0xff] %vm1570, 0.0
          %1602 = vst.msk [vmem:[#allocation4 + $0xf8] sm:$0xff] %vm1570, 0.0
          %1603 = vst.msk [vmem:[#allocation5] sm:$0xff] %vm1570, 0.0
          %1604 = vst.msk [vmem:[#allocation5 + $0x8] sm:$0xff] %vm1570, 0.0
          %1605 = vst.msk [vmem:[#allocation5 + $0x10] sm:$0xff] %vm1570, 0.0
          %1606 = vst.msk [vmem:[#allocation5 + $0x18] sm:$0xff] %vm1570, 0.0
          %1607 = vst.msk [vmem:[#allocation5 + $0x20] sm:$0xff] %vm1570, 0.0
          %1608 = vst.msk [vmem:[#allocation5 + $0x28] sm:$0xff] %vm1570, 0.0
          %1609 = vst.msk [vmem:[#allocation5 + $0x30] sm:$0xff] %vm1570, 0.0
          %1610 = vst.msk [vmem:[#allocation5 + $0x38] sm:$0xff] %vm1570, 0.0
          %1611 = vst.msk [vmem:[#allocation5 + $0x40] sm:$0xff] %vm1570, 0.0
          %1612 = vst.msk [vmem:[#allocation5 + $0x48] sm:$0xff] %vm1570, 0.0
          %1613 = vst.msk [vmem:[#allocation5 + $0x50] sm:$0xff] %vm1570, 0.0
          %1614 = vst.msk [vmem:[#allocation5 + $0x58] sm:$0xff] %vm1570, 0.0
          %1615 = vst.msk [vmem:[#allocation5 + $0x60] sm:$0xff] %vm1570, 0.0
          %1616 = vst.msk [vmem:[#allocation5 + $0x68] sm:$0xff] %vm1570, 0.0
          %1617 = vst.msk [vmem:[#allocation5 + $0x70] sm:$0xff] %vm1570, 0.0
          %1618 = vst.msk [vmem:[#allocation5 + $0x78] sm:$0xff] %vm1570, 0.0
          %1619 = vst.msk [vmem:[#allocation5 + $0x80] sm:$0xff] %vm1570, 0.0
          %1620 = vst.msk [vmem:[#allocation5 + $0x88] sm:$0xff] %vm1570, 0.0
          %1621 = vst.msk [vmem:[#allocation5 + $0x90] sm:$0xff] %vm1570, 0.0
          %1622 = vst.msk [vmem:[#allocation5 + $0x98] sm:$0xff] %vm1570, 0.0
          %1623 = vst.msk [vmem:[#allocation5 + $0xa0] sm:$0xff] %vm1570, 0.0
          %1624 = vst.msk [vmem:[#allocation5 + $0xa8] sm:$0xff] %vm1570, 0.0
          %1625 = vst.msk [vmem:[#allocation5 + $0xb0] sm:$0xff] %vm1570, 0.0
          %1626 = vst.msk [vmem:[#allocation5 + $0xb8] sm:$0xff] %vm1570, 0.0
          %1627 = vst.msk [vmem:[#allocation5 + $0xc0] sm:$0xff] %vm1570, 0.0
          %1628 = vst.msk [vmem:[#allocation5 + $0xc8] sm:$0xff] %vm1570, 0.0
          %1629 = vst.msk [vmem:[#allocation5 + $0xd0] sm:$0xff] %vm1570, 0.0
          %1630 = vst.msk [vmem:[#allocation5 + $0xd8] sm:$0xff] %vm1570, 0.0
          %1631 = vst.msk [vmem:[#allocation5 + $0xe0] sm:$0xff] %vm1570, 0.0
          %1632 = vst.msk [vmem:[#allocation5 + $0xe8] sm:$0xff] %vm1570, 0.0
          %1633 = vst.msk [vmem:[#allocation5 + $0xf0] sm:$0xff] %vm1570, 0.0
          %1634 = vst.msk [vmem:[#allocation5 + $0xf8] sm:$0xff] %vm1570, 0.0
        $region141: #{tpu_custom_call.1} parent=108 // pred_fallthru
          _
        // Predicated region
        $region142: #{tpu_custom_call.1} parent=108 // pred_check
          %p1635 = pneg %p749
        $region143: #{tpu_custom_call.1} parent=108 // pred_check_branch
          %1637 = sbr.rel (%p1635) target = $region145
        $region144: #{tpu_custom_call.1} parent=108 // pred_region
          %v1638 = vld [vmem:[#allocation2] sm:$0xf]
          %v1639 = vld [vmem:[#allocation2 + $0x4] sm:$0xf]
          %v1640 = vld [vmem:[#allocation2 + $0x8] sm:$0xf]
          %v1641 = vld [vmem:[#allocation2 + $0xc] sm:$0xf]
          %v1642 = vld [vmem:[#allocation2 + $0x10] sm:$0xf]
          %v1643 = vld [vmem:[#allocation2 + $0x14] sm:$0xf]
          %v1644 = vld [vmem:[#allocation2 + $0x18] sm:$0xf]
          %v1645 = vld [vmem:[#allocation2 + $0x1c] sm:$0xf]
          %v1646 = vld [vmem:[#allocation2 + $0x20] sm:$0xf]
          %v1647 = vld [vmem:[#allocation2 + $0x24] sm:$0xf]
          %v1648 = vld [vmem:[#allocation2 + $0x28] sm:$0xf]
          %v1649 = vld [vmem:[#allocation2 + $0x2c] sm:$0xf]
          %v1650 = vld [vmem:[#allocation2 + $0x30] sm:$0xf]
          %v1651 = vld [vmem:[#allocation2 + $0x34] sm:$0xf]
          %v1652 = vld [vmem:[#allocation2 + $0x38] sm:$0xf]
          %v1653 = vld [vmem:[#allocation2 + $0x3c] sm:$0xf]
          %v1654 = vld [vmem:[#allocation2 + $0x40] sm:$0xf]
          %v1655 = vld [vmem:[#allocation2 + $0x44] sm:$0xf]
          %v1656 = vld [vmem:[#allocation2 + $0x48] sm:$0xf]
          %v1657 = vld [vmem:[#allocation2 + $0x4c] sm:$0xf]
          %v1658 = vld [vmem:[#allocation2 + $0x50] sm:$0xf]
          %v1659 = vld [vmem:[#allocation2 + $0x54] sm:$0xf]
          %v1660 = vld [vmem:[#allocation2 + $0x58] sm:$0xf]
          %v1661 = vld [vmem:[#allocation2 + $0x5c] sm:$0xf]
          %v1662 = vld [vmem:[#allocation2 + $0x60] sm:$0xf]
          %v1663 = vld [vmem:[#allocation2 + $0x64] sm:$0xf]
          %v1664 = vld [vmem:[#allocation2 + $0x68] sm:$0xf]
          %v1665 = vld [vmem:[#allocation2 + $0x6c] sm:$0xf]
          %v1666 = vld [vmem:[#allocation2 + $0x70] sm:$0xf]
          %v1667 = vld [vmem:[#allocation2 + $0x74] sm:$0xf]
          %v1668 = vld [vmem:[#allocation2 + $0x78] sm:$0xf]
          %v1669 = vld [vmem:[#allocation2 + $0x7c] sm:$0xf]
          %v1670 = vld [vmem:[%s665] sm:$0xf]
          %v1671 = vld [vmem:[%s665 + $0x4] sm:$0xf]
          %v1672 = vld [vmem:[%s665 + $0x8] sm:$0xf]
          %v1673 = vld [vmem:[%s665 + $0xc] sm:$0xf]
          %v1674 = vld [vmem:[%s665 + $0x10] sm:$0xf]
          %v1675 = vld [vmem:[%s665 + $0x14] sm:$0xf]
          %v1676 = vld [vmem:[%s665 + $0x18] sm:$0xf]
          %v1677 = vld [vmem:[%s665 + $0x1c] sm:$0xf]
          %v1678 = vld [vmem:[%s665 + $0x20] sm:$0xf]
          %v1679 = vld [vmem:[%s665 + $0x24] sm:$0xf]
          %v1680 = vld [vmem:[%s665 + $0x28] sm:$0xf]
          %v1681 = vld [vmem:[%s665 + $0x2c] sm:$0xf]
          %v1682 = vld [vmem:[%s665 + $0x30] sm:$0xf]
          %v1683 = vld [vmem:[%s665 + $0x34] sm:$0xf]
          %v1684 = vld [vmem:[%s665 + $0x38] sm:$0xf]
          %v1685 = vld [vmem:[%s665 + $0x3c] sm:$0xf]
          %s1686 = scalar_lea.vmem %s6, %s39
          %v1687 = vld [vmem:[%s1686] sm:$0x1]
          %v1689 = vperm.slane %v1687, 0
          %v1723 = vunpack.c.l.b16 %v1638
          %v1724 = vunpack.c.l.b16 %v1639
          %v1725 = vunpack.c.l.b16 %v1640
          %v1726 = vunpack.c.l.b16 %v1641
          %v1727 = vunpack.c.l.b16 %v1642
          %v1728 = vunpack.c.l.b16 %v1643
          %v1729 = vunpack.c.l.b16 %v1644
          %v1730 = vunpack.c.l.b16 %v1645
          %v1731 = vunpack.c.l.b16 %v1646
          %v1732 = vunpack.c.l.b16 %v1647
          %v1733 = vunpack.c.l.b16 %v1648
          %v1734 = vunpack.c.l.b16 %v1649
          %v1735 = vunpack.c.l.b16 %v1650
          %v1736 = vunpack.c.l.b16 %v1651
          %v1737 = vunpack.c.l.b16 %v1652
          %v1738 = vunpack.c.l.b16 %v1653
          %v1739 = vunpack.c.l.b16 %v1654
          %v1740 = vunpack.c.l.b16 %v1655
          %v1741 = vunpack.c.l.b16 %v1656
          %v1742 = vunpack.c.l.b16 %v1657
          %v1743 = vunpack.c.l.b16 %v1658
          %v1744 = vunpack.c.l.b16 %v1659
          %v1745 = vunpack.c.l.b16 %v1660
          %v1746 = vunpack.c.l.b16 %v1661
          %v1747 = vunpack.c.l.b16 %v1662
          %v1748 = vunpack.c.l.b16 %v1663
          %v1749 = vunpack.c.l.b16 %v1664
          %v1750 = vunpack.c.l.b16 %v1665
          %v1751 = vunpack.c.l.b16 %v1666
          %v1752 = vunpack.c.l.b16 %v1667
          %v1753 = vunpack.c.l.b16 %v1668
          %v1754 = vunpack.c.l.b16 %v1669
          %v1755 = vpack.c.b16 %v1724, %v1723
          %v1756 = vpack.c.b16 %v1726, %v1725
          %v1757 = vpack.c.b16 %v1728, %v1727
          %v1758 = vpack.c.b16 %v1730, %v1729
          %v1759 = vpack.c.b16 %v1732, %v1731
          %v1760 = vpack.c.b16 %v1734, %v1733
          %v1761 = vpack.c.b16 %v1736, %v1735
          %v1762 = vpack.c.b16 %v1738, %v1737
          %v1763 = vpack.c.b16 %v1740, %v1739
          %v1764 = vpack.c.b16 %v1742, %v1741
          %v1765 = vpack.c.b16 %v1744, %v1743
          %v1766 = vpack.c.b16 %v1746, %v1745
          %v1767 = vpack.c.b16 %v1748, %v1747
          %v1768 = vpack.c.b16 %v1750, %v1749
          %v1769 = vpack.c.b16 %v1752, %v1751
          %v1770 = vpack.c.b16 %v1754, %v1753
          %v1803 = vunpack.c.l.b16 %v1670
          %v1804 = vunpack.c.l.b16 %v1671
          %v1805 = vunpack.c.l.b16 %v1672
          %v1806 = vunpack.c.l.b16 %v1673
          %v1807 = vunpack.c.l.b16 %v1674
          %v1808 = vunpack.c.l.b16 %v1675
          %v1809 = vunpack.c.l.b16 %v1676
          %v1810 = vunpack.c.l.b16 %v1677
          %v1811 = vunpack.c.l.b16 %v1678
          %v1812 = vunpack.c.l.b16 %v1679
          %v1813 = vunpack.c.l.b16 %v1680
          %v1814 = vunpack.c.l.b16 %v1681
          %v1815 = vunpack.c.l.b16 %v1682
          %v1816 = vunpack.c.l.b16 %v1683
          %v1817 = vunpack.c.l.b16 %v1684
          %v1818 = vunpack.c.l.b16 %v1685
          %v1819 = vpack.c.b16 %v1804, %v1803
          %v1820 = vpack.c.b16 %v1806, %v1805
          %v1821 = vpack.c.b16 %v1808, %v1807
          %v1822 = vpack.c.b16 %v1810, %v1809
          %v1823 = vpack.c.b16 %v1812, %v1811
          %v1824 = vpack.c.b16 %v1814, %v1813
          %v1825 = vpack.c.b16 %v1816, %v1815
          %v1826 = vpack.c.b16 %v1818, %v1817
          %1835 = vmatpush.bf16.msra.mxu0 %v1826
          %1836 = vmatpush.bf16.msra.mxu0 %v1825
          %1837 = vmatpush.bf16.msra.mxu0 %v1824
          %1838 = vmatpush.bf16.msra.mxu0 %v1823
          %1839 = vmatpush.bf16.msra.mxu0 %v1822
          %1840 = vmatpush.bf16.msra.mxu0 %v1821
          %1841 = vmatpush.bf16.msra.mxu0 %v1820
          %1842 = vmatpush.bf16.msra.mxu0 %v1819
          %1843 = vmatmul.bf16.gmra.mxu0 %v1755
          %v1844 = vpop.f32.mrf.mxu0
          %v1845 = vadd.f32 %v1689, %v1844
          %v1846 = vpop.f32.mrf.mxu0
          %v1847 = vadd.f32 %v1689, %v1846
          %1848 = vmatmul.bf16.gmra.mxu0 %v1756
          %v1849 = vpop.f32.mrf.mxu0
          %v1850 = vadd.f32 %v1689, %v1849
          %v1851 = vpop.f32.mrf.mxu0
          %v1852 = vadd.f32 %v1689, %v1851
          %1853 = vmatmul.bf16.gmra.mxu0 %v1757
          %v1854 = vpop.f32.mrf.mxu0
          %v1855 = vadd.f32 %v1689, %v1854
          %v1856 = vpop.f32.mrf.mxu0
          %v1857 = vadd.f32 %v1689, %v1856
          %1858 = vmatmul.bf16.gmra.mxu0 %v1758
          %v1859 = vpop.f32.mrf.mxu0
          %v1860 = vadd.f32 %v1689, %v1859
          %v1861 = vpop.f32.mrf.mxu0
          %v1862 = vadd.f32 %v1689, %v1861
          %1863 = vmatmul.bf16.gmra.mxu0 %v1759
          %v1864 = vpop.f32.mrf.mxu0
          %v1865 = vadd.f32 %v1689, %v1864
          %v1866 = vpop.f32.mrf.mxu0
          %v1867 = vadd.f32 %v1689, %v1866
          %1868 = vmatmul.bf16.gmra.mxu0 %v1760
          %v1869 = vpop.f32.mrf.mxu0
          %v1870 = vadd.f32 %v1689, %v1869
          %v1871 = vpop.f32.mrf.mxu0
          %v1872 = vadd.f32 %v1689, %v1871
          %1873 = vmatmul.bf16.gmra.mxu0 %v1761
          %v1874 = vpop.f32.mrf.mxu0
          %v1875 = vadd.f32 %v1689, %v1874
          %v1876 = vpop.f32.mrf.mxu0
          %v1877 = vadd.f32 %v1689, %v1876
          %1878 = vmatmul.bf16.gmra.mxu0 %v1762
          %v1879 = vpop.f32.mrf.mxu0
          %v1880 = vadd.f32 %v1689, %v1879
          %v1881 = vpop.f32.mrf.mxu0
          %v1882 = vadd.f32 %v1689, %v1881
          %1883 = vmatmul.bf16.gmra.mxu0 %v1763
          %v1884 = vpop.f32.mrf.mxu0
          %v1885 = vadd.f32 %v1689, %v1884
          %v1886 = vpop.f32.mrf.mxu0
          %v1887 = vadd.f32 %v1689, %v1886
          %1888 = vmatmul.bf16.gmra.mxu0 %v1764
          %v1889 = vpop.f32.mrf.mxu0
          %v1890 = vadd.f32 %v1689, %v1889
          %v1891 = vpop.f32.mrf.mxu0
          %v1892 = vadd.f32 %v1689, %v1891
          %1893 = vmatmul.bf16.gmra.mxu0 %v1765
          %v1894 = vpop.f32.mrf.mxu0
          %v1895 = vadd.f32 %v1689, %v1894
          %v1896 = vpop.f32.mrf.mxu0
          %v1897 = vadd.f32 %v1689, %v1896
          %1898 = vmatmul.bf16.gmra.mxu0 %v1766
          %v1899 = vpop.f32.mrf.mxu0
          %v1900 = vadd.f32 %v1689, %v1899
          %v1901 = vpop.f32.mrf.mxu0
          %v1902 = vadd.f32 %v1689, %v1901
          %1903 = vmatmul.bf16.gmra.mxu0 %v1767
          %v1904 = vpop.f32.mrf.mxu0
          %v1905 = vadd.f32 %v1689, %v1904
          %v1906 = vpop.f32.mrf.mxu0
          %v1907 = vadd.f32 %v1689, %v1906
          %1908 = vmatmul.bf16.gmra.mxu0 %v1768
          %v1909 = vpop.f32.mrf.mxu0
          %v1910 = vadd.f32 %v1689, %v1909
          %v1911 = vpop.f32.mrf.mxu0
          %v1912 = vadd.f32 %v1689, %v1911
          %1913 = vmatmul.bf16.gmra.mxu0 %v1769
          %v1914 = vpop.f32.mrf.mxu0
          %v1915 = vadd.f32 %v1689, %v1914
          %v1916 = vpop.f32.mrf.mxu0
          %v1917 = vadd.f32 %v1689, %v1916
          %1918 = vmatmul.bf16.gmra.mxu0 %v1770
          %v1919 = vpop.f32.mrf.mxu0
          %v1920 = vadd.f32 %v1689, %v1919
          %v1921 = vpop.f32.mrf.mxu0
          %v1922 = vadd.f32 %v1689, %v1921
          %1923 = vdwg.mxu0
          %v1924 = vmul.f32 %v1845, %v1845
          %v1925 = vmul.f32 %v1847, %v1847
          %v1926 = vmul.f32 %v1850, %v1850
          %v1927 = vmul.f32 %v1852, %v1852
          %v1928 = vmul.f32 %v1855, %v1855
          %v1929 = vmul.f32 %v1857, %v1857
          %v1930 = vmul.f32 %v1860, %v1860
          %v1931 = vmul.f32 %v1862, %v1862
          %v1932 = vmul.f32 %v1865, %v1865
          %v1933 = vmul.f32 %v1867, %v1867
          %v1934 = vmul.f32 %v1870, %v1870
          %v1935 = vmul.f32 %v1872, %v1872
          %v1936 = vmul.f32 %v1875, %v1875
          %v1937 = vmul.f32 %v1877, %v1877
          %v1938 = vmul.f32 %v1880, %v1880
          %v1939 = vmul.f32 %v1882, %v1882
          %v1940 = vmul.f32 %v1885, %v1885
          %v1941 = vmul.f32 %v1887, %v1887
          %v1942 = vmul.f32 %v1890, %v1890
          %v1943 = vmul.f32 %v1892, %v1892
          %v1944 = vmul.f32 %v1895, %v1895
          %v1945 = vmul.f32 %v1897, %v1897
          %v1946 = vmul.f32 %v1900, %v1900
          %v1947 = vmul.f32 %v1902, %v1902
          %v1948 = vmul.f32 %v1905, %v1905
          %v1949 = vmul.f32 %v1907, %v1907
          %v1950 = vmul.f32 %v1910, %v1910
          %v1951 = vmul.f32 %v1912, %v1912
          %v1952 = vmul.f32 %v1915, %v1915
          %v1953 = vmul.f32 %v1917, %v1917
          %v1954 = vmul.f32 %v1920, %v1920
          %v1955 = vmul.f32 %v1922, %v1922
          %v1956 = vmul.f32 %v1845, %v1924
          %v1957 = vmul.f32 %v1847, %v1925
          %v1958 = vmul.f32 %v1850, %v1926
          %v1959 = vmul.f32 %v1852, %v1927
          %v1960 = vmul.f32 %v1855, %v1928
          %v1961 = vmul.f32 %v1857, %v1929
          %v1962 = vmul.f32 %v1860, %v1930
          %v1963 = vmul.f32 %v1862, %v1931
          %v1964 = vmul.f32 %v1865, %v1932
          %v1965 = vmul.f32 %v1867, %v1933
          %v1966 = vmul.f32 %v1870, %v1934
          %v1967 = vmul.f32 %v1872, %v1935
          %v1968 = vmul.f32 %v1875, %v1936
          %v1969 = vmul.f32 %v1877, %v1937
          %v1970 = vmul.f32 %v1880, %v1938
          %v1971 = vmul.f32 %v1882, %v1939
          %v1972 = vmul.f32 %v1885, %v1940
          %v1973 = vmul.f32 %v1887, %v1941
          %v1974 = vmul.f32 %v1890, %v1942
          %v1975 = vmul.f32 %v1892, %v1943
          %v1976 = vmul.f32 %v1895, %v1944
          %v1977 = vmul.f32 %v1897, %v1945
          %v1978 = vmul.f32 %v1900, %v1946
          %v1979 = vmul.f32 %v1902, %v1947
          %v1980 = vmul.f32 %v1905, %v1948
          %v1981 = vmul.f32 %v1907, %v1949
          %v1982 = vmul.f32 %v1910, %v1950
          %v1983 = vmul.f32 %v1912, %v1951
          %v1984 = vmul.f32 %v1915, %v1952
          %v1985 = vmul.f32 %v1917, %v1953
          %v1986 = vmul.f32 %v1920, %v1954
          %v1987 = vmul.f32 %v1922, %v1955
          %v1988 = vmul.f32 %v1956, 0.044715
          %v1989 = vmul.f32 %v1957, 0.044715
          %v1990 = vmul.f32 %v1958, 0.044715
          %v1991 = vmul.f32 %v1959, 0.044715
          %v1992 = vmul.f32 %v1960, 0.044715
          %v1993 = vmul.f32 %v1961, 0.044715
          %v1994 = vmul.f32 %v1962, 0.044715
          %v1995 = vmul.f32 %v1963, 0.044715
          %v1996 = vmul.f32 %v1964, 0.044715
          %v1997 = vmul.f32 %v1965, 0.044715
          %v1998 = vmul.f32 %v1966, 0.044715
          %v1999 = vmul.f32 %v1967, 0.044715
          %v2000 = vmul.f32 %v1968, 0.044715
          %v2001 = vmul.f32 %v1969, 0.044715
          %v2002 = vmul.f32 %v1970, 0.044715
          %v2003 = vmul.f32 %v1971, 0.044715
          %v2004 = vmul.f32 %v1972, 0.044715
          %v2005 = vmul.f32 %v1973, 0.044715
          %v2006 = vmul.f32 %v1974, 0.044715
          %v2007 = vmul.f32 %v1975, 0.044715
          %v2008 = vmul.f32 %v1976, 0.044715
          %v2009 = vmul.f32 %v1977, 0.044715
          %v2010 = vmul.f32 %v1978, 0.044715
          %v2011 = vmul.f32 %v1979, 0.044715
          %v2012 = vmul.f32 %v1980, 0.044715
          %v2013 = vmul.f32 %v1981, 0.044715
          %v2014 = vmul.f32 %v1982, 0.044715
          %v2015 = vmul.f32 %v1983, 0.044715
          %v2016 = vmul.f32 %v1984, 0.044715
          %v2017 = vmul.f32 %v1985, 0.044715
          %v2018 = vmul.f32 %v1986, 0.044715
          %v2019 = vmul.f32 %v1987, 0.044715
          %v2020 = vadd.f32 %v1845, %v1988
          %v2021 = vadd.f32 %v1847, %v1989
          %v2022 = vadd.f32 %v1850, %v1990
          %v2023 = vadd.f32 %v1852, %v1991
          %v2024 = vadd.f32 %v1855, %v1992
          %v2025 = vadd.f32 %v1857, %v1993
          %v2026 = vadd.f32 %v1860, %v1994
          %v2027 = vadd.f32 %v1862, %v1995
          %v2028 = vadd.f32 %v1865, %v1996
          %v2029 = vadd.f32 %v1867, %v1997
          %v2030 = vadd.f32 %v1870, %v1998
          %v2031 = vadd.f32 %v1872, %v1999
          %v2032 = vadd.f32 %v1875, %v2000
          %v2033 = vadd.f32 %v1877, %v2001
          %v2034 = vadd.f32 %v1880, %v2002
          %v2035 = vadd.f32 %v1882, %v2003
          %v2036 = vadd.f32 %v1885, %v2004
          %v2037 = vadd.f32 %v1887, %v2005
          %v2038 = vadd.f32 %v1890, %v2006
          %v2039 = vadd.f32 %v1892, %v2007
          %v2040 = vadd.f32 %v1895, %v2008
          %v2041 = vadd.f32 %v1897, %v2009
          %v2042 = vadd.f32 %v1900, %v2010
          %v2043 = vadd.f32 %v1902, %v2011
          %v2044 = vadd.f32 %v1905, %v2012
          %v2045 = vadd.f32 %v1907, %v2013
          %v2046 = vadd.f32 %v1910, %v2014
          %v2047 = vadd.f32 %v1912, %v2015
          %v2048 = vadd.f32 %v1915, %v2016
          %v2049 = vadd.f32 %v1917, %v2017
          %v2050 = vadd.f32 %v1920, %v2018
          %v2051 = vadd.f32 %v1922, %v2019
          %v2052 = vmul.f32 %v2020, 0.7978846
          %v2053 = vmul.f32 %v2021, 0.7978846
          %v2054 = vmul.f32 %v2022, 0.7978846
          %v2055 = vmul.f32 %v2023, 0.7978846
          %v2056 = vmul.f32 %v2024, 0.7978846
          %v2057 = vmul.f32 %v2025, 0.7978846
          %v2058 = vmul.f32 %v2026, 0.7978846
          %v2059 = vmul.f32 %v2027, 0.7978846
          %v2060 = vmul.f32 %v2028, 0.7978846
          %v2061 = vmul.f32 %v2029, 0.7978846
          %v2062 = vmul.f32 %v2030, 0.7978846
          %v2063 = vmul.f32 %v2031, 0.7978846
          %v2064 = vmul.f32 %v2032, 0.7978846
          %v2065 = vmul.f32 %v2033, 0.7978846
          %v2066 = vmul.f32 %v2034, 0.7978846
          %v2067 = vmul.f32 %v2035, 0.7978846
          %v2068 = vmul.f32 %v2036, 0.7978846
          %v2069 = vmul.f32 %v2037, 0.7978846
          %v2070 = vmul.f32 %v2038, 0.7978846
          %v2071 = vmul.f32 %v2039, 0.7978846
          %v2072 = vmul.f32 %v2040, 0.7978846
          %v2073 = vmul.f32 %v2041, 0.7978846
          %v2074 = vmul.f32 %v2042, 0.7978846
          %v2075 = vmul.f32 %v2043, 0.7978846
          %v2076 = vmul.f32 %v2044, 0.7978846
          %v2077 = vmul.f32 %v2045, 0.7978846
          %v2078 = vmul.f32 %v2046, 0.7978846
          %v2079 = vmul.f32 %v2047, 0.7978846
          %v2080 = vmul.f32 %v2048, 0.7978846
          %v2081 = vmul.f32 %v2049, 0.7978846
          %v2082 = vmul.f32 %v2050, 0.7978846
          %v2083 = vmul.f32 %v2051, 0.7978846
          %v2084 = vtanh.pop %v2052
          %v2085 = vtanh.pop %v2053
          %v2086 = vtanh.pop %v2054
          %v2087 = vtanh.pop %v2055
          %v2088 = vtanh.pop %v2056
          %v2089 = vtanh.pop %v2057
          %v2090 = vtanh.pop %v2058
          %v2091 = vtanh.pop %v2059
          %v2092 = vtanh.pop %v2060
          %v2093 = vtanh.pop %v2061
          %v2094 = vtanh.pop %v2062
          %v2095 = vtanh.pop %v2063
          %v2096 = vtanh.pop %v2064
          %v2097 = vtanh.pop %v2065
          %v2098 = vtanh.pop %v2066
          %v2099 = vtanh.pop %v2067
          %v2100 = vtanh.pop %v2068
          %v2101 = vtanh.pop %v2069
          %v2102 = vtanh.pop %v2070
          %v2103 = vtanh.pop %v2071
          %v2104 = vtanh.pop %v2072
          %v2105 = vtanh.pop %v2073
          %v2106 = vtanh.pop %v2074
          %v2107 = vtanh.pop %v2075
          %v2108 = vtanh.pop %v2076
          %v2109 = vtanh.pop %v2077
          %v2110 = vtanh.pop %v2078
          %v2111 = vtanh.pop %v2079
          %v2112 = vtanh.pop %v2080
          %v2113 = vtanh.pop %v2081
          %v2114 = vtanh.pop %v2082
          %v2115 = vtanh.pop %v2083
          %v2116 = vadd.f32 %v2084, 1.0
          %v2117 = vadd.f32 %v2085, 1.0
          %v2118 = vadd.f32 %v2086, 1.0
          %v2119 = vadd.f32 %v2087, 1.0
          %v2120 = vadd.f32 %v2088, 1.0
          %v2121 = vadd.f32 %v2089, 1.0
          %v2122 = vadd.f32 %v2090, 1.0
          %v2123 = vadd.f32 %v2091, 1.0
          %v2124 = vadd.f32 %v2092, 1.0
          %v2125 = vadd.f32 %v2093, 1.0
          %v2126 = vadd.f32 %v2094, 1.0
          %v2127 = vadd.f32 %v2095, 1.0
          %v2128 = vadd.f32 %v2096, 1.0
          %v2129 = vadd.f32 %v2097, 1.0
          %v2130 = vadd.f32 %v2098, 1.0
          %v2131 = vadd.f32 %v2099, 1.0
          %v2132 = vadd.f32 %v2100, 1.0
          %v2133 = vadd.f32 %v2101, 1.0
          %v2134 = vadd.f32 %v2102, 1.0
          %v2135 = vadd.f32 %v2103, 1.0
          %v2136 = vadd.f32 %v2104, 1.0
          %v2137 = vadd.f32 %v2105, 1.0
          %v2138 = vadd.f32 %v2106, 1.0
          %v2139 = vadd.f32 %v2107, 1.0
          %v2140 = vadd.f32 %v2108, 1.0
          %v2141 = vadd.f32 %v2109, 1.0
          %v2142 = vadd.f32 %v2110, 1.0
          %v2143 = vadd.f32 %v2111, 1.0
          %v2144 = vadd.f32 %v2112, 1.0
          %v2145 = vadd.f32 %v2113, 1.0
          %v2146 = vadd.f32 %v2114, 1.0
          %v2147 = vadd.f32 %v2115, 1.0
          %v2148 = vmul.f32 %v2116, 0.5
          %v2149 = vmul.f32 %v2117, 0.5
          %v2150 = vmul.f32 %v2118, 0.5
          %v2151 = vmul.f32 %v2119, 0.5
          %v2152 = vmul.f32 %v2120, 0.5
          %v2153 = vmul.f32 %v2121, 0.5
          %v2154 = vmul.f32 %v2122, 0.5
          %v2155 = vmul.f32 %v2123, 0.5
          %v2156 = vmul.f32 %v2124, 0.5
          %v2157 = vmul.f32 %v2125, 0.5
          %v2158 = vmul.f32 %v2126, 0.5
          %v2159 = vmul.f32 %v2127, 0.5
          %v2160 = vmul.f32 %v2128, 0.5
          %v2161 = vmul.f32 %v2129, 0.5
          %v2162 = vmul.f32 %v2130, 0.5
          %v2163 = vmul.f32 %v2131, 0.5
          %v2164 = vmul.f32 %v2132, 0.5
          %v2165 = vmul.f32 %v2133, 0.5
          %v2166 = vmul.f32 %v2134, 0.5
          %v2167 = vmul.f32 %v2135, 0.5
          %v2168 = vmul.f32 %v2136, 0.5
          %v2169 = vmul.f32 %v2137, 0.5
          %v2170 = vmul.f32 %v2138, 0.5
          %v2171 = vmul.f32 %v2139, 0.5
          %v2172 = vmul.f32 %v2140, 0.5
          %v2173 = vmul.f32 %v2141, 0.5
          %v2174 = vmul.f32 %v2142, 0.5
          %v2175 = vmul.f32 %v2143, 0.5
          %v2176 = vmul.f32 %v2144, 0.5
          %v2177 = vmul.f32 %v2145, 0.5
          %v2178 = vmul.f32 %v2146, 0.5
          %v2179 = vmul.f32 %v2147, 0.5
          %v2180 = vmul.f32 %v1845, %v2148
          %v2181 = vmul.f32 %v1847, %v2149
          %v2182 = vmul.f32 %v1850, %v2150
          %v2183 = vmul.f32 %v1852, %v2151
          %v2184 = vmul.f32 %v1855, %v2152
          %v2185 = vmul.f32 %v1857, %v2153
          %v2186 = vmul.f32 %v1860, %v2154
          %v2187 = vmul.f32 %v1862, %v2155
          %v2188 = vmul.f32 %v1865, %v2156
          %v2189 = vmul.f32 %v1867, %v2157
          %v2190 = vmul.f32 %v1870, %v2158
          %v2191 = vmul.f32 %v1872, %v2159
          %v2192 = vmul.f32 %v1875, %v2160
          %v2193 = vmul.f32 %v1877, %v2161
          %v2194 = vmul.f32 %v1880, %v2162
          %v2195 = vmul.f32 %v1882, %v2163
          %v2196 = vmul.f32 %v1885, %v2164
          %v2197 = vmul.f32 %v1887, %v2165
          %v2198 = vmul.f32 %v1890, %v2166
          %v2199 = vmul.f32 %v1892, %v2167
          %v2200 = vmul.f32 %v1895, %v2168
          %v2201 = vmul.f32 %v1897, %v2169
          %v2202 = vmul.f32 %v1900, %v2170
          %v2203 = vmul.f32 %v1902, %v2171
          %v2204 = vmul.f32 %v1905, %v2172
          %v2205 = vmul.f32 %v1907, %v2173
          %v2206 = vmul.f32 %v1910, %v2174
          %v2207 = vmul.f32 %v1912, %v2175
          %v2208 = vmul.f32 %v1915, %v2176
          %v2209 = vmul.f32 %v1917, %v2177
          %v2210 = vmul.f32 %v1920, %v2178
          %v2211 = vmul.f32 %v1922, %v2179
          %v2212 = vld [vmem:[#allocation4] sm:$0xff]
          %v2213 = vld [vmem:[#allocation4 + $0x8] sm:$0xff]
          %v2214 = vld [vmem:[#allocation4 + $0x10] sm:$0xff]
          %v2215 = vld [vmem:[#allocation4 + $0x18] sm:$0xff]
          %v2216 = vld [vmem:[#allocation4 + $0x20] sm:$0xff]
          %v2217 = vld [vmem:[#allocation4 + $0x28] sm:$0xff]
          %v2218 = vld [vmem:[#allocation4 + $0x30] sm:$0xff]
          %v2219 = vld [vmem:[#allocation4 + $0x38] sm:$0xff]
          %v2220 = vld [vmem:[#allocation4 + $0x40] sm:$0xff]
          %v2221 = vld [vmem:[#allocation4 + $0x48] sm:$0xff]
          %v2222 = vld [vmem:[#allocation4 + $0x50] sm:$0xff]
          %v2223 = vld [vmem:[#allocation4 + $0x58] sm:$0xff]
          %v2224 = vld [vmem:[#allocation4 + $0x60] sm:$0xff]
          %v2225 = vld [vmem:[#allocation4 + $0x68] sm:$0xff]
          %v2226 = vld [vmem:[#allocation4 + $0x70] sm:$0xff]
          %v2227 = vld [vmem:[#allocation4 + $0x78] sm:$0xff]
          %v2228 = vld [vmem:[#allocation4 + $0x80] sm:$0xff]
          %v2229 = vld [vmem:[#allocation4 + $0x88] sm:$0xff]
          %v2230 = vld [vmem:[#allocation4 + $0x90] sm:$0xff]
          %v2231 = vld [vmem:[#allocation4 + $0x98] sm:$0xff]
          %v2232 = vld [vmem:[#allocation4 + $0xa0] sm:$0xff]
          %v2233 = vld [vmem:[#allocation4 + $0xa8] sm:$0xff]
          %v2234 = vld [vmem:[#allocation4 + $0xb0] sm:$0xff]
          %v2235 = vld [vmem:[#allocation4 + $0xb8] sm:$0xff]
          %v2236 = vld [vmem:[#allocation4 + $0xc0] sm:$0xff]
          %v2237 = vld [vmem:[#allocation4 + $0xc8] sm:$0xff]
          %v2238 = vld [vmem:[#allocation4 + $0xd0] sm:$0xff]
          %v2239 = vld [vmem:[#allocation4 + $0xd8] sm:$0xff]
          %v2240 = vld [vmem:[#allocation4 + $0xe0] sm:$0xff]
          %v2241 = vld [vmem:[#allocation4 + $0xe8] sm:$0xff]
          %v2242 = vld [vmem:[#allocation4 + $0xf0] sm:$0xff]
          %v2243 = vld [vmem:[#allocation4 + $0xf8] sm:$0xff]
          %2244 = vadd.xlane.f32.xlu0 %v2180
          %v2245 = vpop.xlane.xlu0 %2244
          %2246 = vadd.xlane.f32.xlu0 %v2181
          %v2247 = vpop.xlane.xlu0 %2246
          %2248 = vadd.xlane.f32.xlu0 %v2182
          %v2249 = vpop.xlane.xlu0 %2248
          %2250 = vadd.xlane.f32.xlu0 %v2183
          %v2251 = vpop.xlane.xlu0 %2250
          %2252 = vadd.xlane.f32.xlu0 %v2184
          %v2253 = vpop.xlane.xlu0 %2252
          %2254 = vadd.xlane.f32.xlu0 %v2185
          %v2255 = vpop.xlane.xlu0 %2254
          %2256 = vadd.xlane.f32.xlu0 %v2186
          %v2257 = vpop.xlane.xlu0 %2256
          %2258 = vadd.xlane.f32.xlu0 %v2187
          %v2259 = vpop.xlane.xlu0 %2258
          %2260 = vadd.xlane.f32.xlu0 %v2188
          %v2261 = vpop.xlane.xlu0 %2260
          %2262 = vadd.xlane.f32.xlu0 %v2189
          %v2263 = vpop.xlane.xlu0 %2262
          %2264 = vadd.xlane.f32.xlu0 %v2190
          %v2265 = vpop.xlane.xlu0 %2264
          %2266 = vadd.xlane.f32.xlu0 %v2191
          %v2267 = vpop.xlane.xlu0 %2266
          %2268 = vadd.xlane.f32.xlu0 %v2192
          %v2269 = vpop.xlane.xlu0 %2268
          %2270 = vadd.xlane.f32.xlu0 %v2193
          %v2271 = vpop.xlane.xlu0 %2270
          %2272 = vadd.xlane.f32.xlu0 %v2194
          %v2273 = vpop.xlane.xlu0 %2272
          %2274 = vadd.xlane.f32.xlu0 %v2195
          %v2275 = vpop.xlane.xlu0 %2274
          %2276 = vadd.xlane.f32.xlu0 %v2196
          %v2277 = vpop.xlane.xlu0 %2276
          %2278 = vadd.xlane.f32.xlu0 %v2197
          %v2279 = vpop.xlane.xlu0 %2278
          %2280 = vadd.xlane.f32.xlu0 %v2198
          %v2281 = vpop.xlane.xlu0 %2280
          %2282 = vadd.xlane.f32.xlu0 %v2199
          %v2283 = vpop.xlane.xlu0 %2282
          %2284 = vadd.xlane.f32.xlu0 %v2200
          %v2285 = vpop.xlane.xlu0 %2284
          %2286 = vadd.xlane.f32.xlu0 %v2201
          %v2287 = vpop.xlane.xlu0 %2286
          %2288 = vadd.xlane.f32.xlu0 %v2202
          %v2289 = vpop.xlane.xlu0 %2288
          %2290 = vadd.xlane.f32.xlu0 %v2203
          %v2291 = vpop.xlane.xlu0 %2290
          %2292 = vadd.xlane.f32.xlu0 %v2204
          %v2293 = vpop.xlane.xlu0 %2292
          %2294 = vadd.xlane.f32.xlu0 %v2205
          %v2295 = vpop.xlane.xlu0 %2294
          %2296 = vadd.xlane.f32.xlu0 %v2206
          %v2297 = vpop.xlane.xlu0 %2296
          %2298 = vadd.xlane.f32.xlu0 %v2207
          %v2299 = vpop.xlane.xlu0 %2298
          %2300 = vadd.xlane.f32.xlu0 %v2208
          %v2301 = vpop.xlane.xlu0 %2300
          %2302 = vadd.xlane.f32.xlu0 %v2209
          %v2303 = vpop.xlane.xlu0 %2302
          %2304 = vadd.xlane.f32.xlu0 %v2210
          %v2305 = vpop.xlane.xlu0 %2304
          %2306 = vadd.xlane.f32.xlu0 %v2211
          %v2307 = vpop.xlane.xlu0 %2306
          %v2308 = vadd.f32 %v2212, %v2245
          %v2309 = vadd.f32 %v2213, %v2247
          %v2310 = vadd.f32 %v2214, %v2249
          %v2311 = vadd.f32 %v2215, %v2251
          %v2312 = vadd.f32 %v2216, %v2253
          %v2313 = vadd.f32 %v2217, %v2255
          %v2314 = vadd.f32 %v2218, %v2257
          %v2315 = vadd.f32 %v2219, %v2259
          %v2316 = vadd.f32 %v2220, %v2261
          %v2317 = vadd.f32 %v2221, %v2263
          %v2318 = vadd.f32 %v2222, %v2265
          %v2319 = vadd.f32 %v2223, %v2267
          %v2320 = vadd.f32 %v2224, %v2269
          %v2321 = vadd.f32 %v2225, %v2271
          %v2322 = vadd.f32 %v2226, %v2273
          %v2323 = vadd.f32 %v2227, %v2275
          %v2324 = vadd.f32 %v2228, %v2277
          %v2325 = vadd.f32 %v2229, %v2279
          %v2326 = vadd.f32 %v2230, %v2281
          %v2327 = vadd.f32 %v2231, %v2283
          %v2328 = vadd.f32 %v2232, %v2285
          %v2329 = vadd.f32 %v2233, %v2287
          %v2330 = vadd.f32 %v2234, %v2289
          %v2331 = vadd.f32 %v2235, %v2291
          %v2332 = vadd.f32 %v2236, %v2293
          %v2333 = vadd.f32 %v2237, %v2295
          %v2334 = vadd.f32 %v2238, %v2297
          %v2335 = vadd.f32 %v2239, %v2299
          %v2336 = vadd.f32 %v2240, %v2301
          %v2337 = vadd.f32 %v2241, %v2303
          %v2338 = vadd.f32 %v2242, %v2305
          %v2339 = vadd.f32 %v2243, %v2307
          %vm2340 = vcmask 7168
          %2341 = vst.msk [vmem:[#allocation4] sm:$0xff] %vm2340, %v2308
          %2342 = vst.msk [vmem:[#allocation4 + $0x8] sm:$0xff] %vm2340, %v2309
          %2343 = vst.msk [vmem:[#allocation4 + $0x10] sm:$0xff] %vm2340, %v2310
          %2344 = vst.msk [vmem:[#allocation4 + $0x18] sm:$0xff] %vm2340, %v2311
          %2345 = vst.msk [vmem:[#allocation4 + $0x20] sm:$0xff] %vm2340, %v2312
          %2346 = vst.msk [vmem:[#allocation4 + $0x28] sm:$0xff] %vm2340, %v2313
          %2347 = vst.msk [vmem:[#allocation4 + $0x30] sm:$0xff] %vm2340, %v2314
          %2348 = vst.msk [vmem:[#allocation4 + $0x38] sm:$0xff] %vm2340, %v2315
          %2349 = vst.msk [vmem:[#allocation4 + $0x40] sm:$0xff] %vm2340, %v2316
          %2350 = vst.msk [vmem:[#allocation4 + $0x48] sm:$0xff] %vm2340, %v2317
          %2351 = vst.msk [vmem:[#allocation4 + $0x50] sm:$0xff] %vm2340, %v2318
          %2352 = vst.msk [vmem:[#allocation4 + $0x58] sm:$0xff] %vm2340, %v2319
          %2353 = vst.msk [vmem:[#allocation4 + $0x60] sm:$0xff] %vm2340, %v2320
          %2354 = vst.msk [vmem:[#allocation4 + $0x68] sm:$0xff] %vm2340, %v2321
          %2355 = vst.msk [vmem:[#allocation4 + $0x70] sm:$0xff] %vm2340, %v2322
          %2356 = vst.msk [vmem:[#allocation4 + $0x78] sm:$0xff] %vm2340, %v2323
          %2357 = vst.msk [vmem:[#allocation4 + $0x80] sm:$0xff] %vm2340, %v2324
          %2358 = vst.msk [vmem:[#allocation4 + $0x88] sm:$0xff] %vm2340, %v2325
          %2359 = vst.msk [vmem:[#allocation4 + $0x90] sm:$0xff] %vm2340, %v2326
          %2360 = vst.msk [vmem:[#allocation4 + $0x98] sm:$0xff] %vm2340, %v2327
          %2361 = vst.msk [vmem:[#allocation4 + $0xa0] sm:$0xff] %vm2340, %v2328
          %2362 = vst.msk [vmem:[#allocation4 + $0xa8] sm:$0xff] %vm2340, %v2329
          %2363 = vst.msk [vmem:[#allocation4 + $0xb0] sm:$0xff] %vm2340, %v2330
          %2364 = vst.msk [vmem:[#allocation4 + $0xb8] sm:$0xff] %vm2340, %v2331
          %2365 = vst.msk [vmem:[#allocation4 + $0xc0] sm:$0xff] %vm2340, %v2332
          %2366 = vst.msk [vmem:[#allocation4 + $0xc8] sm:$0xff] %vm2340, %v2333
          %2367 = vst.msk [vmem:[#allocation4 + $0xd0] sm:$0xff] %vm2340, %v2334
          %2368 = vst.msk [vmem:[#allocation4 + $0xd8] sm:$0xff] %vm2340, %v2335
          %2369 = vst.msk [vmem:[#allocation4 + $0xe0] sm:$0xff] %vm2340, %v2336
          %2370 = vst.msk [vmem:[#allocation4 + $0xe8] sm:$0xff] %vm2340, %v2337
          %2371 = vst.msk [vmem:[#allocation4 + $0xf0] sm:$0xff] %vm2340, %v2338
          %2372 = vst.msk [vmem:[#allocation4 + $0xf8] sm:$0xff] %vm2340, %v2339
          %v2373 = vld [vmem:[#allocation5] sm:$0xff]
          %v2374 = vld [vmem:[#allocation5 + $0x8] sm:$0xff]
          %v2375 = vld [vmem:[#allocation5 + $0x10] sm:$0xff]
          %v2376 = vld [vmem:[#allocation5 + $0x18] sm:$0xff]
          %v2377 = vld [vmem:[#allocation5 + $0x20] sm:$0xff]
          %v2378 = vld [vmem:[#allocation5 + $0x28] sm:$0xff]
          %v2379 = vld [vmem:[#allocation5 + $0x30] sm:$0xff]
          %v2380 = vld [vmem:[#allocation5 + $0x38] sm:$0xff]
          %v2381 = vld [vmem:[#allocation5 + $0x40] sm:$0xff]
          %v2382 = vld [vmem:[#allocation5 + $0x48] sm:$0xff]
          %v2383 = vld [vmem:[#allocation5 + $0x50] sm:$0xff]
          %v2384 = vld [vmem:[#allocation5 + $0x58] sm:$0xff]
          %v2385 = vld [vmem:[#allocation5 + $0x60] sm:$0xff]
          %v2386 = vld [vmem:[#allocation5 + $0x68] sm:$0xff]
          %v2387 = vld [vmem:[#allocation5 + $0x70] sm:$0xff]
          %v2388 = vld [vmem:[#allocation5 + $0x78] sm:$0xff]
          %v2389 = vld [vmem:[#allocation5 + $0x80] sm:$0xff]
          %v2390 = vld [vmem:[#allocation5 + $0x88] sm:$0xff]
          %v2391 = vld [vmem:[#allocation5 + $0x90] sm:$0xff]
          %v2392 = vld [vmem:[#allocation5 + $0x98] sm:$0xff]
          %v2393 = vld [vmem:[#allocation5 + $0xa0] sm:$0xff]
          %v2394 = vld [vmem:[#allocation5 + $0xa8] sm:$0xff]
          %v2395 = vld [vmem:[#allocation5 + $0xb0] sm:$0xff]
          %v2396 = vld [vmem:[#allocation5 + $0xb8] sm:$0xff]
          %v2397 = vld [vmem:[#allocation5 + $0xc0] sm:$0xff]
          %v2398 = vld [vmem:[#allocation5 + $0xc8] sm:$0xff]
          %v2399 = vld [vmem:[#allocation5 + $0xd0] sm:$0xff]
          %v2400 = vld [vmem:[#allocation5 + $0xd8] sm:$0xff]
          %v2401 = vld [vmem:[#allocation5 + $0xe0] sm:$0xff]
          %v2402 = vld [vmem:[#allocation5 + $0xe8] sm:$0xff]
          %v2403 = vld [vmem:[#allocation5 + $0xf0] sm:$0xff]
          %v2404 = vld [vmem:[#allocation5 + $0xf8] sm:$0xff]
          %v2405 = vmul.f32 %v2180, %v2180
          %v2406 = vmul.f32 %v2181, %v2181
          %v2407 = vmul.f32 %v2182, %v2182
          %v2408 = vmul.f32 %v2183, %v2183
          %v2409 = vmul.f32 %v2184, %v2184
          %v2410 = vmul.f32 %v2185, %v2185
          %v2411 = vmul.f32 %v2186, %v2186
          %v2412 = vmul.f32 %v2187, %v2187
          %v2413 = vmul.f32 %v2188, %v2188
          %v2414 = vmul.f32 %v2189, %v2189
          %v2415 = vmul.f32 %v2190, %v2190
          %v2416 = vmul.f32 %v2191, %v2191
          %v2417 = vmul.f32 %v2192, %v2192
          %v2418 = vmul.f32 %v2193, %v2193
          %v2419 = vmul.f32 %v2194, %v2194
          %v2420 = vmul.f32 %v2195, %v2195
          %v2421 = vmul.f32 %v2196, %v2196
          %v2422 = vmul.f32 %v2197, %v2197
          %v2423 = vmul.f32 %v2198, %v2198
          %v2424 = vmul.f32 %v2199, %v2199
          %v2425 = vmul.f32 %v2200, %v2200
          %v2426 = vmul.f32 %v2201, %v2201
          %v2427 = vmul.f32 %v2202, %v2202
          %v2428 = vmul.f32 %v2203, %v2203
          %v2429 = vmul.f32 %v2204, %v2204
          %v2430 = vmul.f32 %v2205, %v2205
          %v2431 = vmul.f32 %v2206, %v2206
          %v2432 = vmul.f32 %v2207, %v2207
          %v2433 = vmul.f32 %v2208, %v2208
          %v2434 = vmul.f32 %v2209, %v2209
          %v2435 = vmul.f32 %v2210, %v2210
          %v2436 = vmul.f32 %v2211, %v2211
          %2437 = vadd.xlane.f32.xlu0 %v2405
          %v2438 = vpop.xlane.xlu0 %2437
          %2439 = vadd.xlane.f32.xlu0 %v2406
          %v2440 = vpop.xlane.xlu0 %2439
          %2441 = vadd.xlane.f32.xlu0 %v2407
          %v2442 = vpop.xlane.xlu0 %2441
          %2443 = vadd.xlane.f32.xlu0 %v2408
          %v2444 = vpop.xlane.xlu0 %2443
          %2445 = vadd.xlane.f32.xlu0 %v2409
          %v2446 = vpop.xlane.xlu0 %2445
          %2447 = vadd.xlane.f32.xlu0 %v2410
          %v2448 = vpop.xlane.xlu0 %2447
          %2449 = vadd.xlane.f32.xlu0 %v2411
          %v2450 = vpop.xlane.xlu0 %2449
          %2451 = vadd.xlane.f32.xlu0 %v2412
          %v2452 = vpop.xlane.xlu0 %2451
          %2453 = vadd.xlane.f32.xlu0 %v2413
          %v2454 = vpop.xlane.xlu0 %2453
          %2455 = vadd.xlane.f32.xlu0 %v2414
          %v2456 = vpop.xlane.xlu0 %2455
          %2457 = vadd.xlane.f32.xlu0 %v2415
          %v2458 = vpop.xlane.xlu0 %2457
          %2459 = vadd.xlane.f32.xlu0 %v2416
          %v2460 = vpop.xlane.xlu0 %2459
          %2461 = vadd.xlane.f32.xlu0 %v2417
          %v2462 = vpop.xlane.xlu0 %2461
          %2463 = vadd.xlane.f32.xlu0 %v2418
          %v2464 = vpop.xlane.xlu0 %2463
          %2465 = vadd.xlane.f32.xlu0 %v2419
          %v2466 = vpop.xlane.xlu0 %2465
          %2467 = vadd.xlane.f32.xlu0 %v2420
          %v2468 = vpop.xlane.xlu0 %2467
          %2469 = vadd.xlane.f32.xlu0 %v2421
          %v2470 = vpop.xlane.xlu0 %2469
          %2471 = vadd.xlane.f32.xlu0 %v2422
          %v2472 = vpop.xlane.xlu0 %2471
          %2473 = vadd.xlane.f32.xlu0 %v2423
          %v2474 = vpop.xlane.xlu0 %2473
          %2475 = vadd.xlane.f32.xlu0 %v2424
          %v2476 = vpop.xlane.xlu0 %2475
          %2477 = vadd.xlane.f32.xlu0 %v2425
          %v2478 = vpop.xlane.xlu0 %2477
          %2479 = vadd.xlane.f32.xlu0 %v2426
          %v2480 = vpop.xlane.xlu0 %2479
          %2481 = vadd.xlane.f32.xlu0 %v2427
          %v2482 = vpop.xlane.xlu0 %2481
          %2483 = vadd.xlane.f32.xlu0 %v2428
          %v2484 = vpop.xlane.xlu0 %2483
          %2485 = vadd.xlane.f32.xlu0 %v2429
          %v2486 = vpop.xlane.xlu0 %2485
          %2487 = vadd.xlane.f32.xlu0 %v2430
          %v2488 = vpop.xlane.xlu0 %2487
          %2489 = vadd.xlane.f32.xlu0 %v2431
          %v2490 = vpop.xlane.xlu0 %2489
          %2491 = vadd.xlane.f32.xlu0 %v2432
          %v2492 = vpop.xlane.xlu0 %2491
          %2493 = vadd.xlane.f32.xlu0 %v2433
          %v2494 = vpop.xlane.xlu0 %2493
          %2495 = vadd.xlane.f32.xlu0 %v2434
          %v2496 = vpop.xlane.xlu0 %2495
          %2497 = vadd.xlane.f32.xlu0 %v2435
          %v2498 = vpop.xlane.xlu0 %2497
          %2499 = vadd.xlane.f32.xlu0 %v2436
          %v2500 = vpop.xlane.xlu0 %2499
          %v2501 = vadd.f32 %v2373, %v2438
          %v2502 = vadd.f32 %v2374, %v2440
          %v2503 = vadd.f32 %v2375, %v2442
          %v2504 = vadd.f32 %v2376, %v2444
          %v2505 = vadd.f32 %v2377, %v2446
          %v2506 = vadd.f32 %v2378, %v2448
          %v2507 = vadd.f32 %v2379, %v2450
          %v2508 = vadd.f32 %v2380, %v2452
          %v2509 = vadd.f32 %v2381, %v2454
          %v2510 = vadd.f32 %v2382, %v2456
          %v2511 = vadd.f32 %v2383, %v2458
          %v2512 = vadd.f32 %v2384, %v2460
          %v2513 = vadd.f32 %v2385, %v2462
          %v2514 = vadd.f32 %v2386, %v2464
          %v2515 = vadd.f32 %v2387, %v2466
          %v2516 = vadd.f32 %v2388, %v2468
          %v2517 = vadd.f32 %v2389, %v2470
          %v2518 = vadd.f32 %v2390, %v2472
          %v2519 = vadd.f32 %v2391, %v2474
          %v2520 = vadd.f32 %v2392, %v2476
          %v2521 = vadd.f32 %v2393, %v2478
          %v2522 = vadd.f32 %v2394, %v2480
          %v2523 = vadd.f32 %v2395, %v2482
          %v2524 = vadd.f32 %v2396, %v2484
          %v2525 = vadd.f32 %v2397, %v2486
          %v2526 = vadd.f32 %v2398, %v2488
          %v2527 = vadd.f32 %v2399, %v2490
          %v2528 = vadd.f32 %v2400, %v2492
          %v2529 = vadd.f32 %v2401, %v2494
          %v2530 = vadd.f32 %v2402, %v2496
          %v2531 = vadd.f32 %v2403, %v2498
          %v2532 = vadd.f32 %v2404, %v2500
          %2533 = vst.msk [vmem:[#allocation5] sm:$0xff] %vm2340, %v2501
          %2534 = vst.msk [vmem:[#allocation5 + $0x8] sm:$0xff] %vm2340, %v2502
          %2535 = vst.msk [vmem:[#allocation5 + $0x10] sm:$0xff] %vm2340, %v2503
          %2536 = vst.msk [vmem:[#allocation5 + $0x18] sm:$0xff] %vm2340, %v2504
          %2537 = vst.msk [vmem:[#allocation5 + $0x20] sm:$0xff] %vm2340, %v2505
          %2538 = vst.msk [vmem:[#allocation5 + $0x28] sm:$0xff] %vm2340, %v2506
          %2539 = vst.msk [vmem:[#allocation5 + $0x30] sm:$0xff] %vm2340, %v2507
          %2540 = vst.msk [vmem:[#allocation5 + $0x38] sm:$0xff] %vm2340, %v2508
          %2541 = vst.msk [vmem:[#allocation5 + $0x40] sm:$0xff] %vm2340, %v2509
          %2542 = vst.msk [vmem:[#allocation5 + $0x48] sm:$0xff] %vm2340, %v2510
          %2543 = vst.msk [vmem:[#allocation5 + $0x50] sm:$0xff] %vm2340, %v2511
          %2544 = vst.msk [vmem:[#allocation5 + $0x58] sm:$0xff] %vm2340, %v2512
          %2545 = vst.msk [vmem:[#allocation5 + $0x60] sm:$0xff] %vm2340, %v2513
          %2546 = vst.msk [vmem:[#allocation5 + $0x68] sm:$0xff] %vm2340, %v2514
          %2547 = vst.msk [vmem:[#allocation5 + $0x70] sm:$0xff] %vm2340, %v2515
          %2548 = vst.msk [vmem:[#allocation5 + $0x78] sm:$0xff] %vm2340, %v2516
          %2549 = vst.msk [vmem:[#allocation5 + $0x80] sm:$0xff] %vm2340, %v2517
          %2550 = vst.msk [vmem:[#allocation5 + $0x88] sm:$0xff] %vm2340, %v2518
          %2551 = vst.msk [vmem:[#allocation5 + $0x90] sm:$0xff] %vm2340, %v2519
          %2552 = vst.msk [vmem:[#allocation5 + $0x98] sm:$0xff] %vm2340, %v2520
          %2553 = vst.msk [vmem:[#allocation5 + $0xa0] sm:$0xff] %vm2340, %v2521
          %2554 = vst.msk [vmem:[#allocation5 + $0xa8] sm:$0xff] %vm2340, %v2522
          %2555 = vst.msk [vmem:[#allocation5 + $0xb0] sm:$0xff] %vm2340, %v2523
          %2556 = vst.msk [vmem:[#allocation5 + $0xb8] sm:$0xff] %vm2340, %v2524
          %2557 = vst.msk [vmem:[#allocation5 + $0xc0] sm:$0xff] %vm2340, %v2525
          %2558 = vst.msk [vmem:[#allocation5 + $0xc8] sm:$0xff] %vm2340, %v2526
          %2559 = vst.msk [vmem:[#allocation5 + $0xd0] sm:$0xff] %vm2340, %v2527
          %2560 = vst.msk [vmem:[#allocation5 + $0xd8] sm:$0xff] %vm2340, %v2528
          %2561 = vst.msk [vmem:[#allocation5 + $0xe0] sm:$0xff] %vm2340, %v2529
          %2562 = vst.msk [vmem:[#allocation5 + $0xe8] sm:$0xff] %vm2340, %v2530
          %2563 = vst.msk [vmem:[#allocation5 + $0xf0] sm:$0xff] %vm2340, %v2531
          %2564 = vst.msk [vmem:[#allocation5 + $0xf8] sm:$0xff] %vm2340, %v2532
          %v2565 = vpack.c.bf16 %v2180, %v2180
          %v2566 = vpack.c.bf16 %v2181, %v2181
          %v2567 = vpack.c.bf16 %v2182, %v2182
          %v2568 = vpack.c.bf16 %v2183, %v2183
          %v2569 = vpack.c.bf16 %v2184, %v2184
          %v2570 = vpack.c.bf16 %v2185, %v2185
          %v2571 = vpack.c.bf16 %v2186, %v2186
          %v2572 = vpack.c.bf16 %v2187, %v2187
          %v2573 = vpack.c.bf16 %v2188, %v2188
          %v2574 = vpack.c.bf16 %v2189, %v2189
          %v2575 = vpack.c.bf16 %v2190, %v2190
          %v2576 = vpack.c.bf16 %v2191, %v2191
          %v2577 = vpack.c.bf16 %v2192, %v2192
          %v2578 = vpack.c.bf16 %v2193, %v2193
          %v2579 = vpack.c.bf16 %v2194, %v2194
          %v2580 = vpack.c.bf16 %v2195, %v2195
          %v2581 = vpack.c.bf16 %v2196, %v2196
          %v2582 = vpack.c.bf16 %v2197, %v2197
          %v2583 = vpack.c.bf16 %v2198, %v2198
          %v2584 = vpack.c.bf16 %v2199, %v2199
          %v2585 = vpack.c.bf16 %v2200, %v2200
          %v2586 = vpack.c.bf16 %v2201, %v2201
          %v2587 = vpack.c.bf16 %v2202, %v2202
          %v2588 = vpack.c.bf16 %v2203, %v2203
          %v2589 = vpack.c.bf16 %v2204, %v2204
          %v2590 = vpack.c.bf16 %v2205, %v2205
          %v2591 = vpack.c.bf16 %v2206, %v2206
          %v2592 = vpack.c.bf16 %v2207, %v2207
          %v2593 = vpack.c.bf16 %v2208, %v2208
          %v2594 = vpack.c.bf16 %v2209, %v2209
          %v2595 = vpack.c.bf16 %v2210, %v2210
          %v2596 = vpack.c.bf16 %v2211, %v2211
          %s2597 = smul.u32 %s39, 32
          %s2598 = smul.addr %s2597, 4
          %s2599 = scalar_lea.vmem [#allocation3], %s2598
          %2600 = vst [vmem:[%s2599] sm:$0xf] %v2565
          %2601 = vst [vmem:[%s2599 + $0x4] sm:$0xf] %v2566
          %2602 = vst [vmem:[%s2599 + $0x8] sm:$0xf] %v2567
          %2603 = vst [vmem:[%s2599 + $0xc] sm:$0xf] %v2568
          %2604 = vst [vmem:[%s2599 + $0x10] sm:$0xf] %v2569
          %2605 = vst [vmem:[%s2599 + $0x14] sm:$0xf] %v2570
          %2606 = vst [vmem:[%s2599 + $0x18] sm:$0xf] %v2571
          %2607 = vst [vmem:[%s2599 + $0x1c] sm:$0xf] %v2572
          %2608 = vst [vmem:[%s2599 + $0x20] sm:$0xf] %v2573
          %2609 = vst [vmem:[%s2599 + $0x24] sm:$0xf] %v2574
          %2610 = vst [vmem:[%s2599 + $0x28] sm:$0xf] %v2575
          %2611 = vst [vmem:[%s2599 + $0x2c] sm:$0xf] %v2576
          %2612 = vst [vmem:[%s2599 + $0x30] sm:$0xf] %v2577
          %2613 = vst [vmem:[%s2599 + $0x34] sm:$0xf] %v2578
          %2614 = vst [vmem:[%s2599 + $0x38] sm:$0xf] %v2579
          %2615 = vst [vmem:[%s2599 + $0x3c] sm:$0xf] %v2580
          %2616 = vst [vmem:[%s2599 + $0x40] sm:$0xf] %v2581
          %2617 = vst [vmem:[%s2599 + $0x44] sm:$0xf] %v2582
          %2618 = vst [vmem:[%s2599 + $0x48] sm:$0xf] %v2583
          %2619 = vst [vmem:[%s2599 + $0x4c] sm:$0xf] %v2584
          %2620 = vst [vmem:[%s2599 + $0x50] sm:$0xf] %v2585
          %2621 = vst [vmem:[%s2599 + $0x54] sm:$0xf] %v2586
          %2622 = vst [vmem:[%s2599 + $0x58] sm:$0xf] %v2587
          %2623 = vst [vmem:[%s2599 + $0x5c] sm:$0xf] %v2588
          %2624 = vst [vmem:[%s2599 + $0x60] sm:$0xf] %v2589
          %2625 = vst [vmem:[%s2599 + $0x64] sm:$0xf] %v2590
          %2626 = vst [vmem:[%s2599 + $0x68] sm:$0xf] %v2591
          %2627 = vst [vmem:[%s2599 + $0x6c] sm:$0xf] %v2592
          %2628 = vst [vmem:[%s2599 + $0x70] sm:$0xf] %v2593
          %2629 = vst [vmem:[%s2599 + $0x74] sm:$0xf] %v2594
          %2630 = vst [vmem:[%s2599 + $0x78] sm:$0xf] %v2595
          %2631 = vst [vmem:[%s2599 + $0x7c] sm:$0xf] %v2596
        $region145: #{tpu_custom_call.1} parent=108 // pred_fallthru
          _
        %p2632 = scmp.eq.s32.totalorder %s38, 1
        %p2633 = pnand %p2632, %p750
        %p2634 = pneg %p2633
        // Predicated region
        $region146: #{tpu_custom_call.1} parent=108 // pred_check
          _
        $region147: #{tpu_custom_call.1} parent=108 // pred_check_branch
          %2636 = sbr.rel (%p2633) target = $region149
        $region148: #{tpu_custom_call.1} parent=108 // pred_region
          %v2637 = vld [vmem:[#allocation4] sm:$0xff]
          %v2638 = vld [vmem:[#allocation4 + $0x8] sm:$0xff]
          %v2639 = vld [vmem:[#allocation4 + $0x10] sm:$0xff]
          %v2640 = vld [vmem:[#allocation4 + $0x18] sm:$0xff]
          %v2641 = vld [vmem:[#allocation4 + $0x20] sm:$0xff]
          %v2642 = vld [vmem:[#allocation4 + $0x28] sm:$0xff]
          %v2643 = vld [vmem:[#allocation4 + $0x30] sm:$0xff]
          %v2644 = vld [vmem:[#allocation4 + $0x38] sm:$0xff]
          %v2645 = vld [vmem:[#allocation4 + $0x40] sm:$0xff]
          %v2646 = vld [vmem:[#allocation4 + $0x48] sm:$0xff]
          %v2647 = vld [vmem:[#allocation4 + $0x50] sm:$0xff]
          %v2648 = vld [vmem:[#allocation4 + $0x58] sm:$0xff]
          %v2649 = vld [vmem:[#allocation4 + $0x60] sm:$0xff]
          %v2650 = vld [vmem:[#allocation4 + $0x68] sm:$0xff]
          %v2651 = vld [vmem:[#allocation4 + $0x70] sm:$0xff]
          %v2652 = vld [vmem:[#allocation4 + $0x78] sm:$0xff]
          %v2653 = vld [vmem:[#allocation4 + $0x80] sm:$0xff]
          %v2654 = vld [vmem:[#allocation4 + $0x88] sm:$0xff]
          %v2655 = vld [vmem:[#allocation4 + $0x90] sm:$0xff]
          %v2656 = vld [vmem:[#allocation4 + $0x98] sm:$0xff]
          %v2657 = vld [vmem:[#allocation4 + $0xa0] sm:$0xff]
          %v2658 = vld [vmem:[#allocation4 + $0xa8] sm:$0xff]
          %v2659 = vld [vmem:[#allocation4 + $0xb0] sm:$0xff]
          %v2660 = vld [vmem:[#allocation4 + $0xb8] sm:$0xff]
          %v2661 = vld [vmem:[#allocation4 + $0xc0] sm:$0xff]
          %v2662 = vld [vmem:[#allocation4 + $0xc8] sm:$0xff]
          %v2663 = vld [vmem:[#allocation4 + $0xd0] sm:$0xff]
          %v2664 = vld [vmem:[#allocation4 + $0xd8] sm:$0xff]
          %v2665 = vld [vmem:[#allocation4 + $0xe0] sm:$0xff]
          %v2666 = vld [vmem:[#allocation4 + $0xe8] sm:$0xff]
          %v2667 = vld [vmem:[#allocation4 + $0xf0] sm:$0xff]
          %v2668 = vld [vmem:[#allocation4 + $0xf8] sm:$0xff]
          %v2669 = vmul.f32 %v2637, 0.00390625
          %v2670 = vmul.f32 %v2638, 0.00390625
          %v2671 = vmul.f32 %v2639, 0.00390625
          %v2672 = vmul.f32 %v2640, 0.00390625
          %v2673 = vmul.f32 %v2641, 0.00390625
          %v2674 = vmul.f32 %v2642, 0.00390625
          %v2675 = vmul.f32 %v2643, 0.00390625
          %v2676 = vmul.f32 %v2644, 0.00390625
          %v2677 = vmul.f32 %v2645, 0.00390625
          %v2678 = vmul.f32 %v2646, 0.00390625
          %v2679 = vmul.f32 %v2647, 0.00390625
          %v2680 = vmul.f32 %v2648, 0.00390625
          %v2681 = vmul.f32 %v2649, 0.00390625
          %v2682 = vmul.f32 %v2650, 0.00390625
          %v2683 = vmul.f32 %v2651, 0.00390625
          %v2684 = vmul.f32 %v2652, 0.00390625
          %v2685 = vmul.f32 %v2653, 0.00390625
          %v2686 = vmul.f32 %v2654, 0.00390625
          %v2687 = vmul.f32 %v2655, 0.00390625
          %v2688 = vmul.f32 %v2656, 0.00390625
          %v2689 = vmul.f32 %v2657, 0.00390625
          %v2690 = vmul.f32 %v2658, 0.00390625
          %v2691 = vmul.f32 %v2659, 0.00390625
          %v2692 = vmul.f32 %v2660, 0.00390625
          %v2693 = vmul.f32 %v2661, 0.00390625
          %v2694 = vmul.f32 %v2662, 0.00390625
          %v2695 = vmul.f32 %v2663, 0.00390625
          %v2696 = vmul.f32 %v2664, 0.00390625
          %v2697 = vmul.f32 %v2665, 0.00390625
          %v2698 = vmul.f32 %v2666, 0.00390625
          %v2699 = vmul.f32 %v2667, 0.00390625
          %v2700 = vmul.f32 %v2668, 0.00390625
          %v2701 = vld [vmem:[#allocation5] sm:$0xff]
          %v2702 = vld [vmem:[#allocation5 + $0x8] sm:$0xff]
          %v2703 = vld [vmem:[#allocation5 + $0x10] sm:$0xff]
          %v2704 = vld [vmem:[#allocation5 + $0x18] sm:$0xff]
          %v2705 = vld [vmem:[#allocation5 + $0x20] sm:$0xff]
          %v2706 = vld [vmem:[#allocation5 + $0x28] sm:$0xff]
          %v2707 = vld [vmem:[#allocation5 + $0x30] sm:$0xff]
          %v2708 = vld [vmem:[#allocation5 + $0x38] sm:$0xff]
          %v2709 = vld [vmem:[#allocation5 + $0x40] sm:$0xff]
          %v2710 = vld [vmem:[#allocation5 + $0x48] sm:$0xff]
          %v2711 = vld [vmem:[#allocation5 + $0x50] sm:$0xff]
          %v2712 = vld [vmem:[#allocation5 + $0x58] sm:$0xff]
          %v2713 = vld [vmem:[#allocation5 + $0x60] sm:$0xff]
          %v2714 = vld [vmem:[#allocation5 + $0x68] sm:$0xff]
          %v2715 = vld [vmem:[#allocation5 + $0x70] sm:$0xff]
          %v2716 = vld [vmem:[#allocation5 + $0x78] sm:$0xff]
          %v2717 = vld [vmem:[#allocation5 + $0x80] sm:$0xff]
          %v2718 = vld [vmem:[#allocation5 + $0x88] sm:$0xff]
          %v2719 = vld [vmem:[#allocation5 + $0x90] sm:$0xff]
          %v2720 = vld [vmem:[#allocation5 + $0x98] sm:$0xff]
          %v2721 = vld [vmem:[#allocation5 + $0xa0] sm:$0xff]
          %v2722 = vld [vmem:[#allocation5 + $0xa8] sm:$0xff]
          %v2723 = vld [vmem:[#allocation5 + $0xb0] sm:$0xff]
          %v2724 = vld [vmem:[#allocation5 + $0xb8] sm:$0xff]
          %v2725 = vld [vmem:[#allocation5 + $0xc0] sm:$0xff]
          %v2726 = vld [vmem:[#allocation5 + $0xc8] sm:$0xff]
          %v2727 = vld [vmem:[#allocation5 + $0xd0] sm:$0xff]
          %v2728 = vld [vmem:[#allocation5 + $0xd8] sm:$0xff]
          %v2729 = vld [vmem:[#allocation5 + $0xe0] sm:$0xff]
          %v2730 = vld [vmem:[#allocation5 + $0xe8] sm:$0xff]
          %v2731 = vld [vmem:[#allocation5 + $0xf0] sm:$0xff]
          %v2732 = vld [vmem:[#allocation5 + $0xf8] sm:$0xff]
          %v2733 = vmul.f32 %v2701, 0.00390625
          %v2734 = vmul.f32 %v2702, 0.00390625
          %v2735 = vmul.f32 %v2703, 0.00390625
          %v2736 = vmul.f32 %v2704, 0.00390625
          %v2737 = vmul.f32 %v2705, 0.00390625
          %v2738 = vmul.f32 %v2706, 0.00390625
          %v2739 = vmul.f32 %v2707, 0.00390625
          %v2740 = vmul.f32 %v2708, 0.00390625
          %v2741 = vmul.f32 %v2709, 0.00390625
          %v2742 = vmul.f32 %v2710, 0.00390625
          %v2743 = vmul.f32 %v2711, 0.00390625
          %v2744 = vmul.f32 %v2712, 0.00390625
          %v2745 = vmul.f32 %v2713, 0.00390625
          %v2746 = vmul.f32 %v2714, 0.00390625
          %v2747 = vmul.f32 %v2715, 0.00390625
          %v2748 = vmul.f32 %v2716, 0.00390625
          %v2749 = vmul.f32 %v2717, 0.00390625
          %v2750 = vmul.f32 %v2718, 0.00390625
          %v2751 = vmul.f32 %v2719, 0.00390625
          %v2752 = vmul.f32 %v2720, 0.00390625
          %v2753 = vmul.f32 %v2721, 0.00390625
          %v2754 = vmul.f32 %v2722, 0.00390625
          %v2755 = vmul.f32 %v2723, 0.00390625
          %v2756 = vmul.f32 %v2724, 0.00390625
          %v2757 = vmul.f32 %v2725, 0.00390625
          %v2758 = vmul.f32 %v2726, 0.00390625
          %v2759 = vmul.f32 %v2727, 0.00390625
          %v2760 = vmul.f32 %v2728, 0.00390625
          %v2761 = vmul.f32 %v2729, 0.00390625
          %v2762 = vmul.f32 %v2730, 0.00390625
          %v2763 = vmul.f32 %v2731, 0.00390625
          %v2764 = vmul.f32 %v2732, 0.00390625
          %v2765 = vmul.f32 %v2669, %v2669
          %v2766 = vmul.f32 %v2670, %v2670
          %v2767 = vmul.f32 %v2671, %v2671
          %v2768 = vmul.f32 %v2672, %v2672
          %v2769 = vmul.f32 %v2673, %v2673
          %v2770 = vmul.f32 %v2674, %v2674
          %v2771 = vmul.f32 %v2675, %v2675
          %v2772 = vmul.f32 %v2676, %v2676
          %v2773 = vmul.f32 %v2677, %v2677
          %v2774 = vmul.f32 %v2678, %v2678
          %v2775 = vmul.f32 %v2679, %v2679
          %v2776 = vmul.f32 %v2680, %v2680
          %v2777 = vmul.f32 %v2681, %v2681
          %v2778 = vmul.f32 %v2682, %v2682
          %v2779 = vmul.f32 %v2683, %v2683
          %v2780 = vmul.f32 %v2684, %v2684
          %v2781 = vmul.f32 %v2685, %v2685
          %v2782 = vmul.f32 %v2686, %v2686
          %v2783 = vmul.f32 %v2687, %v2687
          %v2784 = vmul.f32 %v2688, %v2688
          %v2785 = vmul.f32 %v2689, %v2689
          %v2786 = vmul.f32 %v2690, %v2690
          %v2787 = vmul.f32 %v2691, %v2691
          %v2788 = vmul.f32 %v2692, %v2692
          %v2789 = vmul.f32 %v2693, %v2693
          %v2790 = vmul.f32 %v2694, %v2694
          %v2791 = vmul.f32 %v2695, %v2695
          %v2792 = vmul.f32 %v2696, %v2696
          %v2793 = vmul.f32 %v2697, %v2697
          %v2794 = vmul.f32 %v2698, %v2698
          %v2795 = vmul.f32 %v2699, %v2699
          %v2796 = vmul.f32 %v2700, %v2700
          %v2797 = vsub.f32 %v2733, %v2765
          %v2798 = vsub.f32 %v2734, %v2766
          %v2799 = vsub.f32 %v2735, %v2767
          %v2800 = vsub.f32 %v2736, %v2768
          %v2801 = vsub.f32 %v2737, %v2769
          %v2802 = vsub.f32 %v2738, %v2770
          %v2803 = vsub.f32 %v2739, %v2771
          %v2804 = vsub.f32 %v2740, %v2772
          %v2805 = vsub.f32 %v2741, %v2773
          %v2806 = vsub.f32 %v2742, %v2774
          %v2807 = vsub.f32 %v2743, %v2775
          %v2808 = vsub.f32 %v2744, %v2776
          %v2809 = vsub.f32 %v2745, %v2777
          %v2810 = vsub.f32 %v2746, %v2778
          %v2811 = vsub.f32 %v2747, %v2779
          %v2812 = vsub.f32 %v2748, %v2780
          %v2813 = vsub.f32 %v2749, %v2781
          %v2814 = vsub.f32 %v2750, %v2782
          %v2815 = vsub.f32 %v2751, %v2783
          %v2816 = vsub.f32 %v2752, %v2784
          %v2817 = vsub.f32 %v2753, %v2785
          %v2818 = vsub.f32 %v2754, %v2786
          %v2819 = vsub.f32 %v2755, %v2787
          %v2820 = vsub.f32 %v2756, %v2788
          %v2821 = vsub.f32 %v2757, %v2789
          %v2822 = vsub.f32 %v2758, %v2790
          %v2823 = vsub.f32 %v2759, %v2791
          %v2824 = vsub.f32 %v2760, %v2792
          %v2825 = vsub.f32 %v2761, %v2793
          %v2826 = vsub.f32 %v2762, %v2794
          %v2827 = vsub.f32 %v2763, %v2795
          %v2828 = vsub.f32 %v2764, %v2796
          %vm2829 = vcmask 7168
          %2830 = vst.msk [vmem:[#allocation4] sm:$0xff] %vm2829, %v2669
          %2831 = vst.msk [vmem:[#allocation4 + $0x8] sm:$0xff] %vm2829, %v2670
          %2832 = vst.msk [vmem:[#allocation4 + $0x10] sm:$0xff] %vm2829, %v2671
          %2833 = vst.msk [vmem:[#allocation4 + $0x18] sm:$0xff] %vm2829, %v2672
          %2834 = vst.msk [vmem:[#allocation4 + $0x20] sm:$0xff] %vm2829, %v2673
          %2835 = vst.msk [vmem:[#allocation4 + $0x28] sm:$0xff] %vm2829, %v2674
          %2836 = vst.msk [vmem:[#allocation4 + $0x30] sm:$0xff] %vm2829, %v2675
          %2837 = vst.msk [vmem:[#allocation4 + $0x38] sm:$0xff] %vm2829, %v2676
          %2838 = vst.msk [vmem:[#allocation4 + $0x40] sm:$0xff] %vm2829, %v2677
          %2839 = vst.msk [vmem:[#allocation4 + $0x48] sm:$0xff] %vm2829, %v2678
          %2840 = vst.msk [vmem:[#allocation4 + $0x50] sm:$0xff] %vm2829, %v2679
          %2841 = vst.msk [vmem:[#allocation4 + $0x58] sm:$0xff] %vm2829, %v2680
          %2842 = vst.msk [vmem:[#allocation4 + $0x60] sm:$0xff] %vm2829, %v2681
          %2843 = vst.msk [vmem:[#allocation4 + $0x68] sm:$0xff] %vm2829, %v2682
          %2844 = vst.msk [vmem:[#allocation4 + $0x70] sm:$0xff] %vm2829, %v2683
          %2845 = vst.msk [vmem:[#allocation4 + $0x78] sm:$0xff] %vm2829, %v2684
          %2846 = vst.msk [vmem:[#allocation4 + $0x80] sm:$0xff] %vm2829, %v2685
          %2847 = vst.msk [vmem:[#allocation4 + $0x88] sm:$0xff] %vm2829, %v2686
          %2848 = vst.msk [vmem:[#allocation4 + $0x90] sm:$0xff] %vm2829, %v2687
          %2849 = vst.msk [vmem:[#allocation4 + $0x98] sm:$0xff] %vm2829, %v2688
          %2850 = vst.msk [vmem:[#allocation4 + $0xa0] sm:$0xff] %vm2829, %v2689
          %2851 = vst.msk [vmem:[#allocation4 + $0xa8] sm:$0xff] %vm2829, %v2690
          %2852 = vst.msk [vmem:[#allocation4 + $0xb0] sm:$0xff] %vm2829, %v2691
          %2853 = vst.msk [vmem:[#allocation4 + $0xb8] sm:$0xff] %vm2829, %v2692
          %2854 = vst.msk [vmem:[#allocation4 + $0xc0] sm:$0xff] %vm2829, %v2693
          %2855 = vst.msk [vmem:[#allocation4 + $0xc8] sm:$0xff] %vm2829, %v2694
          %2856 = vst.msk [vmem:[#allocation4 + $0xd0] sm:$0xff] %vm2829, %v2695
          %2857 = vst.msk [vmem:[#allocation4 + $0xd8] sm:$0xff] %vm2829, %v2696
          %2858 = vst.msk [vmem:[#allocation4 + $0xe0] sm:$0xff] %vm2829, %v2697
          %2859 = vst.msk [vmem:[#allocation4 + $0xe8] sm:$0xff] %vm2829, %v2698
          %2860 = vst.msk [vmem:[#allocation4 + $0xf0] sm:$0xff] %vm2829, %v2699
          %2861 = vst.msk [vmem:[#allocation4 + $0xf8] sm:$0xff] %vm2829, %v2700
          %v2862 = vadd.f32 %v2797, 1e-05
          %v2863 = vadd.f32 %v2798, 1e-05
          %v2864 = vadd.f32 %v2799, 1e-05
          %v2865 = vadd.f32 %v2800, 1e-05
          %v2866 = vadd.f32 %v2801, 1e-05
          %v2867 = vadd.f32 %v2802, 1e-05
          %v2868 = vadd.f32 %v2803, 1e-05
          %v2869 = vadd.f32 %v2804, 1e-05
          %v2870 = vadd.f32 %v2805, 1e-05
          %v2871 = vadd.f32 %v2806, 1e-05
          %v2872 = vadd.f32 %v2807, 1e-05
          %v2873 = vadd.f32 %v2808, 1e-05
          %v2874 = vadd.f32 %v2809, 1e-05
          %v2875 = vadd.f32 %v2810, 1e-05
          %v2876 = vadd.f32 %v2811, 1e-05
          %v2877 = vadd.f32 %v2812, 1e-05
          %v2878 = vadd.f32 %v2813, 1e-05
          %v2879 = vadd.f32 %v2814, 1e-05
          %v2880 = vadd.f32 %v2815, 1e-05
          %v2881 = vadd.f32 %v2816, 1e-05
          %v2882 = vadd.f32 %v2817, 1e-05
          %v2883 = vadd.f32 %v2818, 1e-05
          %v2884 = vadd.f32 %v2819, 1e-05
          %v2885 = vadd.f32 %v2820, 1e-05
          %v2886 = vadd.f32 %v2821, 1e-05
          %v2887 = vadd.f32 %v2822, 1e-05
          %v2888 = vadd.f32 %v2823, 1e-05
          %v2889 = vadd.f32 %v2824, 1e-05
          %v2890 = vadd.f32 %v2825, 1e-05
          %v2891 = vadd.f32 %v2826, 1e-05
          %v2892 = vadd.f32 %v2827, 1e-05
          %v2893 = vadd.f32 %v2828, 1e-05
          %v2894 = vrsqrt.pop %v2862
          %v2895 = vmul.f32 %v2894, %v2862
          %v2896 = vmul.f32 %v2895, %v2894
          %v2897 = vmul.f32 0.5, %v2896
          %v2898 = vsub.f32 1.5, %v2897
          %v2899 = vmul.f32 %v2894, %v2898
          %vm2900 = vweird.f32 %v2862
          %vm2901 = vweird.f32 %v2894
          %vm2902 = vmor %vm2900, %vm2901
          %v2903 = vsel %vm2902, %v2894, %v2899
          %v2904 = vrsqrt.pop %v2863
          %v2905 = vmul.f32 %v2904, %v2863
          %v2906 = vmul.f32 %v2905, %v2904
          %v2907 = vmul.f32 0.5, %v2906
          %v2908 = vsub.f32 1.5, %v2907
          %v2909 = vmul.f32 %v2904, %v2908
          %vm2910 = vweird.f32 %v2863
          %vm2911 = vweird.f32 %v2904
          %vm2912 = vmor %vm2910, %vm2911
          %v2913 = vsel %vm2912, %v2904, %v2909
          %v2914 = vrsqrt.pop %v2864
          %v2915 = vmul.f32 %v2914, %v2864
          %v2916 = vmul.f32 %v2915, %v2914
          %v2917 = vmul.f32 0.5, %v2916
          %v2918 = vsub.f32 1.5, %v2917
          %v2919 = vmul.f32 %v2914, %v2918
          %vm2920 = vweird.f32 %v2864
          %vm2921 = vweird.f32 %v2914
          %vm2922 = vmor %vm2920, %vm2921
          %v2923 = vsel %vm2922, %v2914, %v2919
          %v2924 = vrsqrt.pop %v2865
          %v2925 = vmul.f32 %v2924, %v2865
          %v2926 = vmul.f32 %v2925, %v2924
          %v2927 = vmul.f32 0.5, %v2926
          %v2928 = vsub.f32 1.5, %v2927
          %v2929 = vmul.f32 %v2924, %v2928
          %vm2930 = vweird.f32 %v2865
          %vm2931 = vweird.f32 %v2924
          %vm2932 = vmor %vm2930, %vm2931
          %v2933 = vsel %vm2932, %v2924, %v2929
          %v2934 = vrsqrt.pop %v2866
          %v2935 = vmul.f32 %v2934, %v2866
          %v2936 = vmul.f32 %v2935, %v2934
          %v2937 = vmul.f32 0.5, %v2936
          %v2938 = vsub.f32 1.5, %v2937
          %v2939 = vmul.f32 %v2934, %v2938
          %vm2940 = vweird.f32 %v2866
          %vm2941 = vweird.f32 %v2934
          %vm2942 = vmor %vm2940, %vm2941
          %v2943 = vsel %vm2942, %v2934, %v2939
          %v2944 = vrsqrt.pop %v2867
          %v2945 = vmul.f32 %v2944, %v2867
          %v2946 = vmul.f32 %v2945, %v2944
          %v2947 = vmul.f32 0.5, %v2946
          %v2948 = vsub.f32 1.5, %v2947
          %v2949 = vmul.f32 %v2944, %v2948
          %vm2950 = vweird.f32 %v2867
          %vm2951 = vweird.f32 %v2944
          %vm2952 = vmor %vm2950, %vm2951
          %v2953 = vsel %vm2952, %v2944, %v2949
          %v2954 = vrsqrt.pop %v2868
          %v2955 = vmul.f32 %v2954, %v2868
          %v2956 = vmul.f32 %v2955, %v2954
          %v2957 = vmul.f32 0.5, %v2956
          %v2958 = vsub.f32 1.5, %v2957
          %v2959 = vmul.f32 %v2954, %v2958
          %vm2960 = vweird.f32 %v2868
          %vm2961 = vweird.f32 %v2954
          %vm2962 = vmor %vm2960, %vm2961
          %v2963 = vsel %vm2962, %v2954, %v2959
          %v2964 = vrsqrt.pop %v2869
          %v2965 = vmul.f32 %v2964, %v2869
          %v2966 = vmul.f32 %v2965, %v2964
          %v2967 = vmul.f32 0.5, %v2966
          %v2968 = vsub.f32 1.5, %v2967
          %v2969 = vmul.f32 %v2964, %v2968
          %vm2970 = vweird.f32 %v2869
          %vm2971 = vweird.f32 %v2964
          %vm2972 = vmor %vm2970, %vm2971
          %v2973 = vsel %vm2972, %v2964, %v2969
          %v2974 = vrsqrt.pop %v2870
          %v2975 = vmul.f32 %v2974, %v2870
          %v2976 = vmul.f32 %v2975, %v2974
          %v2977 = vmul.f32 0.5, %v2976
          %v2978 = vsub.f32 1.5, %v2977
          %v2979 = vmul.f32 %v2974, %v2978
          %vm2980 = vweird.f32 %v2870
          %vm2981 = vweird.f32 %v2974
          %vm2982 = vmor %vm2980, %vm2981
          %v2983 = vsel %vm2982, %v2974, %v2979
          %v2984 = vrsqrt.pop %v2871
          %v2985 = vmul.f32 %v2984, %v2871
          %v2986 = vmul.f32 %v2985, %v2984
          %v2987 = vmul.f32 0.5, %v2986
          %v2988 = vsub.f32 1.5, %v2987
          %v2989 = vmul.f32 %v2984, %v2988
          %vm2990 = vweird.f32 %v2871
          %vm2991 = vweird.f32 %v2984
          %vm2992 = vmor %vm2990, %vm2991
          %v2993 = vsel %vm2992, %v2984, %v2989
          %v2994 = vrsqrt.pop %v2872
          %v2995 = vmul.f32 %v2994, %v2872
          %v2996 = vmul.f32 %v2995, %v2994
          %v2997 = vmul.f32 0.5, %v2996
          %v2998 = vsub.f32 1.5, %v2997
          %v2999 = vmul.f32 %v2994, %v2998
          %vm3000 = vweird.f32 %v2872
          %vm3001 = vweird.f32 %v2994
          %vm3002 = vmor %vm3000, %vm3001
          %v3003 = vsel %vm3002, %v2994, %v2999
          %v3004 = vrsqrt.pop %v2873
          %v3005 = vmul.f32 %v3004, %v2873
          %v3006 = vmul.f32 %v3005, %v3004
          %v3007 = vmul.f32 0.5, %v3006
          %v3008 = vsub.f32 1.5, %v3007
          %v3009 = vmul.f32 %v3004, %v3008
          %vm3010 = vweird.f32 %v2873
          %vm3011 = vweird.f32 %v3004
          %vm3012 = vmor %vm3010, %vm3011
          %v3013 = vsel %vm3012, %v3004, %v3009
          %v3014 = vrsqrt.pop %v2874
          %v3015 = vmul.f32 %v3014, %v2874
          %v3016 = vmul.f32 %v3015, %v3014
          %v3017 = vmul.f32 0.5, %v3016
          %v3018 = vsub.f32 1.5, %v3017
          %v3019 = vmul.f32 %v3014, %v3018
          %vm3020 = vweird.f32 %v2874
          %vm3021 = vweird.f32 %v3014
          %vm3022 = vmor %vm3020, %vm3021
          %v3023 = vsel %vm3022, %v3014, %v3019
          %v3024 = vrsqrt.pop %v2875
          %v3025 = vmul.f32 %v3024, %v2875
          %v3026 = vmul.f32 %v3025, %v3024
          %v3027 = vmul.f32 0.5, %v3026
          %v3028 = vsub.f32 1.5, %v3027
          %v3029 = vmul.f32 %v3024, %v3028
          %vm3030 = vweird.f32 %v2875
          %vm3031 = vweird.f32 %v3024
          %vm3032 = vmor %vm3030, %vm3031
          %v3033 = vsel %vm3032, %v3024, %v3029
          %v3034 = vrsqrt.pop %v2876
          %v3035 = vmul.f32 %v3034, %v2876
          %v3036 = vmul.f32 %v3035, %v3034
          %v3037 = vmul.f32 0.5, %v3036
          %v3038 = vsub.f32 1.5, %v3037
          %v3039 = vmul.f32 %v3034, %v3038
          %vm3040 = vweird.f32 %v2876
          %vm3041 = vweird.f32 %v3034
          %vm3042 = vmor %vm3040, %vm3041
          %v3043 = vsel %vm3042, %v3034, %v3039
          %v3044 = vrsqrt.pop %v2877
          %v3045 = vmul.f32 %v3044, %v2877
          %v3046 = vmul.f32 %v3045, %v3044
          %v3047 = vmul.f32 0.5, %v3046
          %v3048 = vsub.f32 1.5, %v3047
          %v3049 = vmul.f32 %v3044, %v3048
          %vm3050 = vweird.f32 %v2877
          %vm3051 = vweird.f32 %v3044
          %vm3052 = vmor %vm3050, %vm3051
          %v3053 = vsel %vm3052, %v3044, %v3049
          %v3054 = vrsqrt.pop %v2878
          %v3055 = vmul.f32 %v3054, %v2878
          %v3056 = vmul.f32 %v3055, %v3054
          %v3057 = vmul.f32 0.5, %v3056
          %v3058 = vsub.f32 1.5, %v3057
          %v3059 = vmul.f32 %v3054, %v3058
          %vm3060 = vweird.f32 %v2878
          %vm3061 = vweird.f32 %v3054
          %vm3062 = vmor %vm3060, %vm3061
          %v3063 = vsel %vm3062, %v3054, %v3059
          %v3064 = vrsqrt.pop %v2879
          %v3065 = vmul.f32 %v3064, %v2879
          %v3066 = vmul.f32 %v3065, %v3064
          %v3067 = vmul.f32 0.5, %v3066
          %v3068 = vsub.f32 1.5, %v3067
          %v3069 = vmul.f32 %v3064, %v3068
          %vm3070 = vweird.f32 %v2879
          %vm3071 = vweird.f32 %v3064
          %vm3072 = vmor %vm3070, %vm3071
          %v3073 = vsel %vm3072, %v3064, %v3069
          %v3074 = vrsqrt.pop %v2880
          %v3075 = vmul.f32 %v3074, %v2880
          %v3076 = vmul.f32 %v3075, %v3074
          %v3077 = vmul.f32 0.5, %v3076
          %v3078 = vsub.f32 1.5, %v3077
          %v3079 = vmul.f32 %v3074, %v3078
          %vm3080 = vweird.f32 %v2880
          %vm3081 = vweird.f32 %v3074
          %vm3082 = vmor %vm3080, %vm3081
          %v3083 = vsel %vm3082, %v3074, %v3079
          %v3084 = vrsqrt.pop %v2881
          %v3085 = vmul.f32 %v3084, %v2881
          %v3086 = vmul.f32 %v3085, %v3084
          %v3087 = vmul.f32 0.5, %v3086
          %v3088 = vsub.f32 1.5, %v3087
          %v3089 = vmul.f32 %v3084, %v3088
          %vm3090 = vweird.f32 %v2881
          %vm3091 = vweird.f32 %v3084
          %vm3092 = vmor %vm3090, %vm3091
          %v3093 = vsel %vm3092, %v3084, %v3089
          %v3094 = vrsqrt.pop %v2882
          %v3095 = vmul.f32 %v3094, %v2882
          %v3096 = vmul.f32 %v3095, %v3094
          %v3097 = vmul.f32 0.5, %v3096
          %v3098 = vsub.f32 1.5, %v3097
          %v3099 = vmul.f32 %v3094, %v3098
          %vm3100 = vweird.f32 %v2882
          %vm3101 = vweird.f32 %v3094
          %vm3102 = vmor %vm3100, %vm3101
          %v3103 = vsel %vm3102, %v3094, %v3099
          %v3104 = vrsqrt.pop %v2883
          %v3105 = vmul.f32 %v3104, %v2883
          %v3106 = vmul.f32 %v3105, %v3104
          %v3107 = vmul.f32 0.5, %v3106
          %v3108 = vsub.f32 1.5, %v3107
          %v3109 = vmul.f32 %v3104, %v3108
          %vm3110 = vweird.f32 %v2883
          %vm3111 = vweird.f32 %v3104
          %vm3112 = vmor %vm3110, %vm3111
          %v3113 = vsel %vm3112, %v3104, %v3109
          %v3114 = vrsqrt.pop %v2884
          %v3115 = vmul.f32 %v3114, %v2884
          %v3116 = vmul.f32 %v3115, %v3114
          %v3117 = vmul.f32 0.5, %v3116
          %v3118 = vsub.f32 1.5, %v3117
          %v3119 = vmul.f32 %v3114, %v3118
          %vm3120 = vweird.f32 %v2884
          %vm3121 = vweird.f32 %v3114
          %vm3122 = vmor %vm3120, %vm3121
          %v3123 = vsel %vm3122, %v3114, %v3119
          %v3124 = vrsqrt.pop %v2885
          %v3125 = vmul.f32 %v3124, %v2885
          %v3126 = vmul.f32 %v3125, %v3124
          %v3127 = vmul.f32 0.5, %v3126
          %v3128 = vsub.f32 1.5, %v3127
          %v3129 = vmul.f32 %v3124, %v3128
          %vm3130 = vweird.f32 %v2885
          %vm3131 = vweird.f32 %v3124
          %vm3132 = vmor %vm3130, %vm3131
          %v3133 = vsel %vm3132, %v3124, %v3129
          %v3134 = vrsqrt.pop %v2886
          %v3135 = vmul.f32 %v3134, %v2886
          %v3136 = vmul.f32 %v3135, %v3134
          %v3137 = vmul.f32 0.5, %v3136
          %v3138 = vsub.f32 1.5, %v3137
          %v3139 = vmul.f32 %v3134, %v3138
          %vm3140 = vweird.f32 %v2886
          %vm3141 = vweird.f32 %v3134
          %vm3142 = vmor %vm3140, %vm3141
          %v3143 = vsel %vm3142, %v3134, %v3139
          %v3144 = vrsqrt.pop %v2887
          %v3145 = vmul.f32 %v3144, %v2887
          %v3146 = vmul.f32 %v3145, %v3144
          %v3147 = vmul.f32 0.5, %v3146
          %v3148 = vsub.f32 1.5, %v3147
          %v3149 = vmul.f32 %v3144, %v3148
          %vm3150 = vweird.f32 %v2887
          %vm3151 = vweird.f32 %v3144
          %vm3152 = vmor %vm3150, %vm3151
          %v3153 = vsel %vm3152, %v3144, %v3149
          %v3154 = vrsqrt.pop %v2888
          %v3155 = vmul.f32 %v3154, %v2888
          %v3156 = vmul.f32 %v3155, %v3154
          %v3157 = vmul.f32 0.5, %v3156
          %v3158 = vsub.f32 1.5, %v3157
          %v3159 = vmul.f32 %v3154, %v3158
          %vm3160 = vweird.f32 %v2888
          %vm3161 = vweird.f32 %v3154
          %vm3162 = vmor %vm3160, %vm3161
          %v3163 = vsel %vm3162, %v3154, %v3159
          %v3164 = vrsqrt.pop %v2889
          %v3165 = vmul.f32 %v3164, %v2889
          %v3166 = vmul.f32 %v3165, %v3164
          %v3167 = vmul.f32 0.5, %v3166
          %v3168 = vsub.f32 1.5, %v3167
          %v3169 = vmul.f32 %v3164, %v3168
          %vm3170 = vweird.f32 %v2889
          %vm3171 = vweird.f32 %v3164
          %vm3172 = vmor %vm3170, %vm3171
          %v3173 = vsel %vm3172, %v3164, %v3169
          %v3174 = vrsqrt.pop %v2890
          %v3175 = vmul.f32 %v3174, %v2890
          %v3176 = vmul.f32 %v3175, %v3174
          %v3177 = vmul.f32 0.5, %v3176
          %v3178 = vsub.f32 1.5, %v3177
          %v3179 = vmul.f32 %v3174, %v3178
          %vm3180 = vweird.f32 %v2890
          %vm3181 = vweird.f32 %v3174
          %vm3182 = vmor %vm3180, %vm3181
          %v3183 = vsel %vm3182, %v3174, %v3179
          %v3184 = vrsqrt.pop %v2891
          %v3185 = vmul.f32 %v3184, %v2891
          %v3186 = vmul.f32 %v3185, %v3184
          %v3187 = vmul.f32 0.5, %v3186
          %v3188 = vsub.f32 1.5, %v3187
          %v3189 = vmul.f32 %v3184, %v3188
          %vm3190 = vweird.f32 %v2891
          %vm3191 = vweird.f32 %v3184
          %vm3192 = vmor %vm3190, %vm3191
          %v3193 = vsel %vm3192, %v3184, %v3189
          %v3194 = vrsqrt.pop %v2892
          %v3195 = vmul.f32 %v3194, %v2892
          %v3196 = vmul.f32 %v3195, %v3194
          %v3197 = vmul.f32 0.5, %v3196
          %v3198 = vsub.f32 1.5, %v3197
          %v3199 = vmul.f32 %v3194, %v3198
          %vm3200 = vweird.f32 %v2892
          %vm3201 = vweird.f32 %v3194
          %vm3202 = vmor %vm3200, %vm3201
          %v3203 = vsel %vm3202, %v3194, %v3199
          %v3204 = vrsqrt.pop %v2893
          %v3205 = vmul.f32 %v3204, %v2893
          %v3206 = vmul.f32 %v3205, %v3204
          %v3207 = vmul.f32 0.5, %v3206
          %v3208 = vsub.f32 1.5, %v3207
          %v3209 = vmul.f32 %v3204, %v3208
          %vm3210 = vweird.f32 %v2893
          %vm3211 = vweird.f32 %v3204
          %vm3212 = vmor %vm3210, %vm3211
          %v3213 = vsel %vm3212, %v3204, %v3209
          %3214 = vst.msk [vmem:[#allocation5] sm:$0xff] %vm2829, %v2903
          %3215 = vst.msk [vmem:[#allocation5 + $0x8] sm:$0xff] %vm2829, %v2913
          %3216 = vst.msk [vmem:[#allocation5 + $0x10] sm:$0xff] %vm2829, %v2923
          %3217 = vst.msk [vmem:[#allocation5 + $0x18] sm:$0xff] %vm2829, %v2933
          %3218 = vst.msk [vmem:[#allocation5 + $0x20] sm:$0xff] %vm2829, %v2943
          %3219 = vst.msk [vmem:[#allocation5 + $0x28] sm:$0xff] %vm2829, %v2953
          %3220 = vst.msk [vmem:[#allocation5 + $0x30] sm:$0xff] %vm2829, %v2963
          %3221 = vst.msk [vmem:[#allocation5 + $0x38] sm:$0xff] %vm2829, %v2973
          %3222 = vst.msk [vmem:[#allocation5 + $0x40] sm:$0xff] %vm2829, %v2983
          %3223 = vst.msk [vmem:[#allocation5 + $0x48] sm:$0xff] %vm2829, %v2993
          %3224 = vst.msk [vmem:[#allocation5 + $0x50] sm:$0xff] %vm2829, %v3003
          %3225 = vst.msk [vmem:[#allocation5 + $0x58] sm:$0xff] %vm2829, %v3013
          %3226 = vst.msk [vmem:[#allocation5 + $0x60] sm:$0xff] %vm2829, %v3023
          %3227 = vst.msk [vmem:[#allocation5 + $0x68] sm:$0xff] %vm2829, %v3033
          %3228 = vst.msk [vmem:[#allocation5 + $0x70] sm:$0xff] %vm2829, %v3043
          %3229 = vst.msk [vmem:[#allocation5 + $0x78] sm:$0xff] %vm2829, %v3053
          %3230 = vst.msk [vmem:[#allocation5 + $0x80] sm:$0xff] %vm2829, %v3063
          %3231 = vst.msk [vmem:[#allocation5 + $0x88] sm:$0xff] %vm2829, %v3073
          %3232 = vst.msk [vmem:[#allocation5 + $0x90] sm:$0xff] %vm2829, %v3083
          %3233 = vst.msk [vmem:[#allocation5 + $0x98] sm:$0xff] %vm2829, %v3093
          %3234 = vst.msk [vmem:[#allocation5 + $0xa0] sm:$0xff] %vm2829, %v3103
          %3235 = vst.msk [vmem:[#allocation5 + $0xa8] sm:$0xff] %vm2829, %v3113
          %3236 = vst.msk [vmem:[#allocation5 + $0xb0] sm:$0xff] %vm2829, %v3123
          %3237 = vst.msk [vmem:[#allocation5 + $0xb8] sm:$0xff] %vm2829, %v3133
          %3238 = vst.msk [vmem:[#allocation5 + $0xc0] sm:$0xff] %vm2829, %v3143
          %3239 = vst.msk [vmem:[#allocation5 + $0xc8] sm:$0xff] %vm2829, %v3153
          %3240 = vst.msk [vmem:[#allocation5 + $0xd0] sm:$0xff] %vm2829, %v3163
          %3241 = vst.msk [vmem:[#allocation5 + $0xd8] sm:$0xff] %vm2829, %v3173
          %3242 = vst.msk [vmem:[#allocation5 + $0xe0] sm:$0xff] %vm2829, %v3183
          %3243 = vst.msk [vmem:[#allocation5 + $0xe8] sm:$0xff] %vm2829, %v3193
          %3244 = vst.msk [vmem:[#allocation5 + $0xf0] sm:$0xff] %vm2829, %v3203
          %3245 = vst.msk [vmem:[#allocation5 + $0xf8] sm:$0xff] %vm2829, %v3213
          %3246 = vst [vmem:[#allocation6] sm:$0xff] 0.0
          %3247 = vst [vmem:[#allocation6 + $0x8] sm:$0xff] 0.0
          %3248 = vst [vmem:[#allocation6 + $0x10] sm:$0xff] 0.0
          %3249 = vst [vmem:[#allocation6 + $0x18] sm:$0xff] 0.0
          %3250 = vst [vmem:[#allocation6 + $0x20] sm:$0xff] 0.0
          %3251 = vst [vmem:[#allocation6 + $0x28] sm:$0xff] 0.0
          %3252 = vst [vmem:[#allocation6 + $0x30] sm:$0xff] 0.0
          %3253 = vst [vmem:[#allocation6 + $0x38] sm:$0xff] 0.0
          %3254 = vst [vmem:[#allocation6 + $0x40] sm:$0xff] 0.0
          %3255 = vst [vmem:[#allocation6 + $0x48] sm:$0xff] 0.0
          %3256 = vst [vmem:[#allocation6 + $0x50] sm:$0xff] 0.0
          %3257 = vst [vmem:[#allocation6 + $0x58] sm:$0xff] 0.0
          %3258 = vst [vmem:[#allocation6 + $0x60] sm:$0xff] 0.0
          %3259 = vst [vmem:[#allocation6 + $0x68] sm:$0xff] 0.0
          %3260 = vst [vmem:[#allocation6 + $0x70] sm:$0xff] 0.0
          %3261 = vst [vmem:[#allocation6 + $0x78] sm:$0xff] 0.0
          %3262 = vst [vmem:[#allocation6 + $0x80] sm:$0xff] 0.0
          %3263 = vst [vmem:[#allocation6 + $0x88] sm:$0xff] 0.0
          %3264 = vst [vmem:[#allocation6 + $0x90] sm:$0xff] 0.0
          %3265 = vst [vmem:[#allocation6 + $0x98] sm:$0xff] 0.0
          %3266 = vst [vmem:[#allocation6 + $0xa0] sm:$0xff] 0.0
          %3267 = vst [vmem:[#allocation6 + $0xa8] sm:$0xff] 0.0
          %3268 = vst [vmem:[#allocation6 + $0xb0] sm:$0xff] 0.0
          %3269 = vst [vmem:[#allocation6 + $0xb8] sm:$0xff] 0.0
          %3270 = vst [vmem:[#allocation6 + $0xc0] sm:$0xff] 0.0
          %3271 = vst [vmem:[#allocation6 + $0xc8] sm:$0xff] 0.0
          %3272 = vst [vmem:[#allocation6 + $0xd0] sm:$0xff] 0.0
          %3273 = vst [vmem:[#allocation6 + $0xd8] sm:$0xff] 0.0
          %3274 = vst [vmem:[#allocation6 + $0xe0] sm:$0xff] 0.0
          %3275 = vst [vmem:[#allocation6 + $0xe8] sm:$0xff] 0.0
          %3276 = vst [vmem:[#allocation6 + $0xf0] sm:$0xff] 0.0
          %3277 = vst [vmem:[#allocation6 + $0xf8] sm:$0xff] 0.0
        $region149: #{tpu_custom_call.1} parent=108 // pred_fallthru
          _
        // Predicated region
        $region150: #{tpu_custom_call.1} parent=108 // pred_check
          %p3278 = pneg %p2632
        $region151: #{tpu_custom_call.1} parent=108 // pred_check_branch
          %3280 = sbr.rel (%p3278) target = $region153
        $region152: #{tpu_custom_call.1} parent=108 // pred_region
          %v3281 = vld [vmem:[#allocation2] sm:$0xf]
          %v3282 = vld [vmem:[#allocation2 + $0x4] sm:$0xf]
          %v3283 = vld [vmem:[#allocation2 + $0x8] sm:$0xf]
          %v3284 = vld [vmem:[#allocation2 + $0xc] sm:$0xf]
          %v3285 = vld [vmem:[#allocation2 + $0x10] sm:$0xf]
          %v3286 = vld [vmem:[#allocation2 + $0x14] sm:$0xf]
          %v3287 = vld [vmem:[#allocation2 + $0x18] sm:$0xf]
          %v3288 = vld [vmem:[#allocation2 + $0x1c] sm:$0xf]
          %v3289 = vld [vmem:[#allocation2 + $0x20] sm:$0xf]
          %v3290 = vld [vmem:[#allocation2 + $0x24] sm:$0xf]
          %v3291 = vld [vmem:[#allocation2 + $0x28] sm:$0xf]
          %v3292 = vld [vmem:[#allocation2 + $0x2c] sm:$0xf]
          %v3293 = vld [vmem:[#allocation2 + $0x30] sm:$0xf]
          %v3294 = vld [vmem:[#allocation2 + $0x34] sm:$0xf]
          %v3295 = vld [vmem:[#allocation2 + $0x38] sm:$0xf]
          %v3296 = vld [vmem:[#allocation2 + $0x3c] sm:$0xf]
          %v3297 = vld [vmem:[#allocation2 + $0x40] sm:$0xf]
          %v3298 = vld [vmem:[#allocation2 + $0x44] sm:$0xf]
          %v3299 = vld [vmem:[#allocation2 + $0x48] sm:$0xf]
          %v3300 = vld [vmem:[#allocation2 + $0x4c] sm:$0xf]
          %v3301 = vld [vmem:[#allocation2 + $0x50] sm:$0xf]
          %v3302 = vld [vmem:[#allocation2 + $0x54] sm:$0xf]
          %v3303 = vld [vmem:[#allocation2 + $0x58] sm:$0xf]
          %v3304 = vld [vmem:[#allocation2 + $0x5c] sm:$0xf]
          %v3305 = vld [vmem:[#allocation2 + $0x60] sm:$0xf]
          %v3306 = vld [vmem:[#allocation2 + $0x64] sm:$0xf]
          %v3307 = vld [vmem:[#allocation2 + $0x68] sm:$0xf]
          %v3308 = vld [vmem:[#allocation2 + $0x6c] sm:$0xf]
          %v3309 = vld [vmem:[#allocation2 + $0x70] sm:$0xf]
          %v3310 = vld [vmem:[#allocation2 + $0x74] sm:$0xf]
          %v3311 = vld [vmem:[#allocation2 + $0x78] sm:$0xf]
          %v3312 = vld [vmem:[#allocation2 + $0x7c] sm:$0xf]
          %v3313 = vld [vmem:[%s657] sm:$0xf]
          %v3314 = vld [vmem:[%s657 + $0x4] sm:$0xf]
          %v3315 = vld [vmem:[%s657 + $0x8] sm:$0xf]
          %v3316 = vld [vmem:[%s657 + $0xc] sm:$0xf]
          %v3317 = vld [vmem:[%s657 + $0x10] sm:$0xf]
          %v3318 = vld [vmem:[%s657 + $0x14] sm:$0xf]
          %v3319 = vld [vmem:[%s657 + $0x18] sm:$0xf]
          %v3320 = vld [vmem:[%s657 + $0x1c] sm:$0xf]
          %v3321 = vld [vmem:[%s657 + $0x20] sm:$0xf]
          %v3322 = vld [vmem:[%s657 + $0x24] sm:$0xf]
          %v3323 = vld [vmem:[%s657 + $0x28] sm:$0xf]
          %v3324 = vld [vmem:[%s657 + $0x2c] sm:$0xf]
          %v3325 = vld [vmem:[%s657 + $0x30] sm:$0xf]
          %v3326 = vld [vmem:[%s657 + $0x34] sm:$0xf]
          %v3327 = vld [vmem:[%s657 + $0x38] sm:$0xf]
          %v3328 = vld [vmem:[%s657 + $0x3c] sm:$0xf]
          %s3329 = scalar_lea.vmem %s5, %s39
          %v3330 = vld [vmem:[%s3329] sm:$0x1]
          %v3332 = vperm.slane %v3330, 0
          %v3366 = vunpack.c.l.b16 %v3281
          %v3367 = vunpack.c.l.b16 %v3282
          %v3368 = vunpack.c.l.b16 %v3283
          %v3369 = vunpack.c.l.b16 %v3284
          %v3370 = vunpack.c.l.b16 %v3285
          %v3371 = vunpack.c.l.b16 %v3286
          %v3372 = vunpack.c.l.b16 %v3287
          %v3373 = vunpack.c.l.b16 %v3288
          %v3374 = vunpack.c.l.b16 %v3289
          %v3375 = vunpack.c.l.b16 %v3290
          %v3376 = vunpack.c.l.b16 %v3291
          %v3377 = vunpack.c.l.b16 %v3292
          %v3378 = vunpack.c.l.b16 %v3293
          %v3379 = vunpack.c.l.b16 %v3294
          %v3380 = vunpack.c.l.b16 %v3295
          %v3381 = vunpack.c.l.b16 %v3296
          %v3382 = vunpack.c.l.b16 %v3297
          %v3383 = vunpack.c.l.b16 %v3298
          %v3384 = vunpack.c.l.b16 %v3299
          %v3385 = vunpack.c.l.b16 %v3300
          %v3386 = vunpack.c.l.b16 %v3301
          %v3387 = vunpack.c.l.b16 %v3302
          %v3388 = vunpack.c.l.b16 %v3303
          %v3389 = vunpack.c.l.b16 %v3304
          %v3390 = vunpack.c.l.b16 %v3305
          %v3391 = vunpack.c.l.b16 %v3306
          %v3392 = vunpack.c.l.b16 %v3307
          %v3393 = vunpack.c.l.b16 %v3308
          %v3394 = vunpack.c.l.b16 %v3309
          %v3395 = vunpack.c.l.b16 %v3310
          %v3396 = vunpack.c.l.b16 %v3311
          %v3397 = vunpack.c.l.b16 %v3312
          %v3398 = vpack.c.b16 %v3367, %v3366
          %v3399 = vpack.c.b16 %v3369, %v3368
          %v3400 = vpack.c.b16 %v3371, %v3370
          %v3401 = vpack.c.b16 %v3373, %v3372
          %v3402 = vpack.c.b16 %v3375, %v3374
          %v3403 = vpack.c.b16 %v3377, %v3376
          %v3404 = vpack.c.b16 %v3379, %v3378
          %v3405 = vpack.c.b16 %v3381, %v3380
          %v3406 = vpack.c.b16 %v3383, %v3382
          %v3407 = vpack.c.b16 %v3385, %v3384
          %v3408 = vpack.c.b16 %v3387, %v3386
          %v3409 = vpack.c.b16 %v3389, %v3388
          %v3410 = vpack.c.b16 %v3391, %v3390
          %v3411 = vpack.c.b16 %v3393, %v3392
          %v3412 = vpack.c.b16 %v3395, %v3394
          %v3413 = vpack.c.b16 %v3397, %v3396
          %v3446 = vunpack.c.l.b16 %v3313
          %v3447 = vunpack.c.l.b16 %v3314
          %v3448 = vunpack.c.l.b16 %v3315
          %v3449 = vunpack.c.l.b16 %v3316
          %v3450 = vunpack.c.l.b16 %v3317
          %v3451 = vunpack.c.l.b16 %v3318
          %v3452 = vunpack.c.l.b16 %v3319
          %v3453 = vunpack.c.l.b16 %v3320
          %v3454 = vunpack.c.l.b16 %v3321
          %v3455 = vunpack.c.l.b16 %v3322
          %v3456 = vunpack.c.l.b16 %v3323
          %v3457 = vunpack.c.l.b16 %v3324
          %v3458 = vunpack.c.l.b16 %v3325
          %v3459 = vunpack.c.l.b16 %v3326
          %v3460 = vunpack.c.l.b16 %v3327
          %v3461 = vunpack.c.l.b16 %v3328
          %v3462 = vpack.c.b16 %v3447, %v3446
          %v3463 = vpack.c.b16 %v3449, %v3448
          %v3464 = vpack.c.b16 %v3451, %v3450
          %v3465 = vpack.c.b16 %v3453, %v3452
          %v3466 = vpack.c.b16 %v3455, %v3454
          %v3467 = vpack.c.b16 %v3457, %v3456
          %v3468 = vpack.c.b16 %v3459, %v3458
          %v3469 = vpack.c.b16 %v3461, %v3460
          %3478 = vmatpush.bf16.msra.mxu0 %v3469
          %3479 = vmatpush.bf16.msra.mxu0 %v3468
          %3480 = vmatpush.bf16.msra.mxu0 %v3467
          %3481 = vmatpush.bf16.msra.mxu0 %v3466
          %3482 = vmatpush.bf16.msra.mxu0 %v3465
          %3483 = vmatpush.bf16.msra.mxu0 %v3464
          %3484 = vmatpush.bf16.msra.mxu0 %v3463
          %3485 = vmatpush.bf16.msra.mxu0 %v3462
          %3486 = vmatmul.bf16.gmra.mxu0 %v3398
          %v3487 = vpop.f32.mrf.mxu0
          %v3488 = vadd.f32 %v3332, %v3487
          %v3489 = vpop.f32.mrf.mxu0
          %v3490 = vadd.f32 %v3332, %v3489
          %3491 = vmatmul.bf16.gmra.mxu0 %v3399
          %v3492 = vpop.f32.mrf.mxu0
          %v3493 = vadd.f32 %v3332, %v3492
          %v3494 = vpop.f32.mrf.mxu0
          %v3495 = vadd.f32 %v3332, %v3494
          %3496 = vmatmul.bf16.gmra.mxu0 %v3400
          %v3497 = vpop.f32.mrf.mxu0
          %v3498 = vadd.f32 %v3332, %v3497
          %v3499 = vpop.f32.mrf.mxu0
          %v3500 = vadd.f32 %v3332, %v3499
          %3501 = vmatmul.bf16.gmra.mxu0 %v3401
          %v3502 = vpop.f32.mrf.mxu0
          %v3503 = vadd.f32 %v3332, %v3502
          %v3504 = vpop.f32.mrf.mxu0
          %v3505 = vadd.f32 %v3332, %v3504
          %3506 = vmatmul.bf16.gmra.mxu0 %v3402
          %v3507 = vpop.f32.mrf.mxu0
          %v3508 = vadd.f32 %v3332, %v3507
          %v3509 = vpop.f32.mrf.mxu0
          %v3510 = vadd.f32 %v3332, %v3509
          %3511 = vmatmul.bf16.gmra.mxu0 %v3403
          %v3512 = vpop.f32.mrf.mxu0
          %v3513 = vadd.f32 %v3332, %v3512
          %v3514 = vpop.f32.mrf.mxu0
          %v3515 = vadd.f32 %v3332, %v3514
          %3516 = vmatmul.bf16.gmra.mxu0 %v3404
          %v3517 = vpop.f32.mrf.mxu0
          %v3518 = vadd.f32 %v3332, %v3517
          %v3519 = vpop.f32.mrf.mxu0
          %v3520 = vadd.f32 %v3332, %v3519
          %3521 = vmatmul.bf16.gmra.mxu0 %v3405
          %v3522 = vpop.f32.mrf.mxu0
          %v3523 = vadd.f32 %v3332, %v3522
          %v3524 = vpop.f32.mrf.mxu0
          %v3525 = vadd.f32 %v3332, %v3524
          %3526 = vmatmul.bf16.gmra.mxu0 %v3406
          %v3527 = vpop.f32.mrf.mxu0
          %v3528 = vadd.f32 %v3332, %v3527
          %v3529 = vpop.f32.mrf.mxu0
          %v3530 = vadd.f32 %v3332, %v3529
          %3531 = vmatmul.bf16.gmra.mxu0 %v3407
          %v3532 = vpop.f32.mrf.mxu0
          %v3533 = vadd.f32 %v3332, %v3532
          %v3534 = vpop.f32.mrf.mxu0
          %v3535 = vadd.f32 %v3332, %v3534
          %3536 = vmatmul.bf16.gmra.mxu0 %v3408
          %v3537 = vpop.f32.mrf.mxu0
          %v3538 = vadd.f32 %v3332, %v3537
          %v3539 = vpop.f32.mrf.mxu0
          %v3540 = vadd.f32 %v3332, %v3539
          %3541 = vmatmul.bf16.gmra.mxu0 %v3409
          %v3542 = vpop.f32.mrf.mxu0
          %v3543 = vadd.f32 %v3332, %v3542
          %v3544 = vpop.f32.mrf.mxu0
          %v3545 = vadd.f32 %v3332, %v3544
          %3546 = vmatmul.bf16.gmra.mxu0 %v3410
          %v3547 = vpop.f32.mrf.mxu0
          %v3548 = vadd.f32 %v3332, %v3547
          %v3549 = vpop.f32.mrf.mxu0
          %v3550 = vadd.f32 %v3332, %v3549
          %3551 = vmatmul.bf16.gmra.mxu0 %v3411
          %v3552 = vpop.f32.mrf.mxu0
          %v3553 = vadd.f32 %v3332, %v3552
          %v3554 = vpop.f32.mrf.mxu0
          %v3555 = vadd.f32 %v3332, %v3554
          %3556 = vmatmul.bf16.gmra.mxu0 %v3412
          %v3557 = vpop.f32.mrf.mxu0
          %v3558 = vadd.f32 %v3332, %v3557
          %v3559 = vpop.f32.mrf.mxu0
          %v3560 = vadd.f32 %v3332, %v3559
          %3561 = vmatmul.bf16.gmra.mxu0 %v3413
          %v3562 = vpop.f32.mrf.mxu0
          %v3563 = vadd.f32 %v3332, %v3562
          %v3564 = vpop.f32.mrf.mxu0
          %v3565 = vadd.f32 %v3332, %v3564
          %3566 = vdwg.mxu0
          %v3567 = vmul.f32 %v3488, %v3488
          %v3568 = vmul.f32 %v3490, %v3490
          %v3569 = vmul.f32 %v3493, %v3493
          %v3570 = vmul.f32 %v3495, %v3495
          %v3571 = vmul.f32 %v3498, %v3498
          %v3572 = vmul.f32 %v3500, %v3500
          %v3573 = vmul.f32 %v3503, %v3503
          %v3574 = vmul.f32 %v3505, %v3505
          %v3575 = vmul.f32 %v3508, %v3508
          %v3576 = vmul.f32 %v3510, %v3510
          %v3577 = vmul.f32 %v3513, %v3513
          %v3578 = vmul.f32 %v3515, %v3515
          %v3579 = vmul.f32 %v3518, %v3518
          %v3580 = vmul.f32 %v3520, %v3520
          %v3581 = vmul.f32 %v3523, %v3523
          %v3582 = vmul.f32 %v3525, %v3525
          %v3583 = vmul.f32 %v3528, %v3528
          %v3584 = vmul.f32 %v3530, %v3530
          %v3585 = vmul.f32 %v3533, %v3533
          %v3586 = vmul.f32 %v3535, %v3535
          %v3587 = vmul.f32 %v3538, %v3538
          %v3588 = vmul.f32 %v3540, %v3540
          %v3589 = vmul.f32 %v3543, %v3543
          %v3590 = vmul.f32 %v3545, %v3545
          %v3591 = vmul.f32 %v3548, %v3548
          %v3592 = vmul.f32 %v3550, %v3550
          %v3593 = vmul.f32 %v3553, %v3553
          %v3594 = vmul.f32 %v3555, %v3555
          %v3595 = vmul.f32 %v3558, %v3558
          %v3596 = vmul.f32 %v3560, %v3560
          %v3597 = vmul.f32 %v3563, %v3563
          %v3598 = vmul.f32 %v3565, %v3565
          %v3599 = vmul.f32 %v3488, %v3567
          %v3600 = vmul.f32 %v3490, %v3568
          %v3601 = vmul.f32 %v3493, %v3569
          %v3602 = vmul.f32 %v3495, %v3570
          %v3603 = vmul.f32 %v3498, %v3571
          %v3604 = vmul.f32 %v3500, %v3572
          %v3605 = vmul.f32 %v3503, %v3573
          %v3606 = vmul.f32 %v3505, %v3574
          %v3607 = vmul.f32 %v3508, %v3575
          %v3608 = vmul.f32 %v3510, %v3576
          %v3609 = vmul.f32 %v3513, %v3577
          %v3610 = vmul.f32 %v3515, %v3578
          %v3611 = vmul.f32 %v3518, %v3579
          %v3612 = vmul.f32 %v3520, %v3580
          %v3613 = vmul.f32 %v3523, %v3581
          %v3614 = vmul.f32 %v3525, %v3582
          %v3615 = vmul.f32 %v3528, %v3583
          %v3616 = vmul.f32 %v3530, %v3584
          %v3617 = vmul.f32 %v3533, %v3585
          %v3618 = vmul.f32 %v3535, %v3586
          %v3619 = vmul.f32 %v3538, %v3587
          %v3620 = vmul.f32 %v3540, %v3588
          %v3621 = vmul.f32 %v3543, %v3589
          %v3622 = vmul.f32 %v3545, %v3590
          %v3623 = vmul.f32 %v3548, %v3591
          %v3624 = vmul.f32 %v3550, %v3592
          %v3625 = vmul.f32 %v3553, %v3593
          %v3626 = vmul.f32 %v3555, %v3594
          %v3627 = vmul.f32 %v3558, %v3595
          %v3628 = vmul.f32 %v3560, %v3596
          %v3629 = vmul.f32 %v3563, %v3597
          %v3630 = vmul.f32 %v3565, %v3598
          %v3631 = vmul.f32 %v3599, 0.044715
          %v3632 = vmul.f32 %v3600, 0.044715
          %v3633 = vmul.f32 %v3601, 0.044715
          %v3634 = vmul.f32 %v3602, 0.044715
          %v3635 = vmul.f32 %v3603, 0.044715
          %v3636 = vmul.f32 %v3604, 0.044715
          %v3637 = vmul.f32 %v3605, 0.044715
          %v3638 = vmul.f32 %v3606, 0.044715
          %v3639 = vmul.f32 %v3607, 0.044715
          %v3640 = vmul.f32 %v3608, 0.044715
          %v3641 = vmul.f32 %v3609, 0.044715
          %v3642 = vmul.f32 %v3610, 0.044715
          %v3643 = vmul.f32 %v3611, 0.044715
          %v3644 = vmul.f32 %v3612, 0.044715
          %v3645 = vmul.f32 %v3613, 0.044715
          %v3646 = vmul.f32 %v3614, 0.044715
          %v3647 = vmul.f32 %v3615, 0.044715
          %v3648 = vmul.f32 %v3616, 0.044715
          %v3649 = vmul.f32 %v3617, 0.044715
          %v3650 = vmul.f32 %v3618, 0.044715
          %v3651 = vmul.f32 %v3619, 0.044715
          %v3652 = vmul.f32 %v3620, 0.044715
          %v3653 = vmul.f32 %v3621, 0.044715
          %v3654 = vmul.f32 %v3622, 0.044715
          %v3655 = vmul.f32 %v3623, 0.044715
          %v3656 = vmul.f32 %v3624, 0.044715
          %v3657 = vmul.f32 %v3625, 0.044715
          %v3658 = vmul.f32 %v3626, 0.044715
          %v3659 = vmul.f32 %v3627, 0.044715
          %v3660 = vmul.f32 %v3628, 0.044715
          %v3661 = vmul.f32 %v3629, 0.044715
          %v3662 = vmul.f32 %v3630, 0.044715
          %v3663 = vadd.f32 %v3488, %v3631
          %v3664 = vadd.f32 %v3490, %v3632
          %v3665 = vadd.f32 %v3493, %v3633
          %v3666 = vadd.f32 %v3495, %v3634
          %v3667 = vadd.f32 %v3498, %v3635
          %v3668 = vadd.f32 %v3500, %v3636
          %v3669 = vadd.f32 %v3503, %v3637
          %v3670 = vadd.f32 %v3505, %v3638
          %v3671 = vadd.f32 %v3508, %v3639
          %v3672 = vadd.f32 %v3510, %v3640
          %v3673 = vadd.f32 %v3513, %v3641
          %v3674 = vadd.f32 %v3515, %v3642
          %v3675 = vadd.f32 %v3518, %v3643
          %v3676 = vadd.f32 %v3520, %v3644
          %v3677 = vadd.f32 %v3523, %v3645
          %v3678 = vadd.f32 %v3525, %v3646
          %v3679 = vadd.f32 %v3528, %v3647
          %v3680 = vadd.f32 %v3530, %v3648
          %v3681 = vadd.f32 %v3533, %v3649
          %v3682 = vadd.f32 %v3535, %v3650
          %v3683 = vadd.f32 %v3538, %v3651
          %v3684 = vadd.f32 %v3540, %v3652
          %v3685 = vadd.f32 %v3543, %v3653
          %v3686 = vadd.f32 %v3545, %v3654
          %v3687 = vadd.f32 %v3548, %v3655
          %v3688 = vadd.f32 %v3550, %v3656
          %v3689 = vadd.f32 %v3553, %v3657
          %v3690 = vadd.f32 %v3555, %v3658
          %v3691 = vadd.f32 %v3558, %v3659
          %v3692 = vadd.f32 %v3560, %v3660
          %v3693 = vadd.f32 %v3563, %v3661
          %v3694 = vadd.f32 %v3565, %v3662
          %v3695 = vmul.f32 %v3663, 0.7978846
          %v3696 = vmul.f32 %v3664, 0.7978846
          %v3697 = vmul.f32 %v3665, 0.7978846
          %v3698 = vmul.f32 %v3666, 0.7978846
          %v3699 = vmul.f32 %v3667, 0.7978846
          %v3700 = vmul.f32 %v3668, 0.7978846
          %v3701 = vmul.f32 %v3669, 0.7978846
          %v3702 = vmul.f32 %v3670, 0.7978846
          %v3703 = vmul.f32 %v3671, 0.7978846
          %v3704 = vmul.f32 %v3672, 0.7978846
          %v3705 = vmul.f32 %v3673, 0.7978846
          %v3706 = vmul.f32 %v3674, 0.7978846
          %v3707 = vmul.f32 %v3675, 0.7978846
          %v3708 = vmul.f32 %v3676, 0.7978846
          %v3709 = vmul.f32 %v3677, 0.7978846
          %v3710 = vmul.f32 %v3678, 0.7978846
          %v3711 = vmul.f32 %v3679, 0.7978846
          %v3712 = vmul.f32 %v3680, 0.7978846
          %v3713 = vmul.f32 %v3681, 0.7978846
          %v3714 = vmul.f32 %v3682, 0.7978846
          %v3715 = vmul.f32 %v3683, 0.7978846
          %v3716 = vmul.f32 %v3684, 0.7978846
          %v3717 = vmul.f32 %v3685, 0.7978846
          %v3718 = vmul.f32 %v3686, 0.7978846
          %v3719 = vmul.f32 %v3687, 0.7978846
          %v3720 = vmul.f32 %v3688, 0.7978846
          %v3721 = vmul.f32 %v3689, 0.7978846
          %v3722 = vmul.f32 %v3690, 0.7978846
          %v3723 = vmul.f32 %v3691, 0.7978846
          %v3724 = vmul.f32 %v3692, 0.7978846
          %v3725 = vmul.f32 %v3693, 0.7978846
          %v3726 = vmul.f32 %v3694, 0.7978846
          %v3727 = vtanh.pop %v3695
          %v3728 = vtanh.pop %v3696
          %v3729 = vtanh.pop %v3697
          %v3730 = vtanh.pop %v3698
          %v3731 = vtanh.pop %v3699
          %v3732 = vtanh.pop %v3700
          %v3733 = vtanh.pop %v3701
          %v3734 = vtanh.pop %v3702
          %v3735 = vtanh.pop %v3703
          %v3736 = vtanh.pop %v3704
          %v3737 = vtanh.pop %v3705
          %v3738 = vtanh.pop %v3706
          %v3739 = vtanh.pop %v3707
          %v3740 = vtanh.pop %v3708
          %v3741 = vtanh.pop %v3709
          %v3742 = vtanh.pop %v3710
          %v3743 = vtanh.pop %v3711
          %v3744 = vtanh.pop %v3712
          %v3745 = vtanh.pop %v3713
          %v3746 = vtanh.pop %v3714
          %v3747 = vtanh.pop %v3715
          %v3748 = vtanh.pop %v3716
          %v3749 = vtanh.pop %v3717
          %v3750 = vtanh.pop %v3718
          %v3751 = vtanh.pop %v3719
          %v3752 = vtanh.pop %v3720
          %v3753 = vtanh.pop %v3721
          %v3754 = vtanh.pop %v3722
          %v3755 = vtanh.pop %v3723
          %v3756 = vtanh.pop %v3724
          %v3757 = vtanh.pop %v3725
          %v3758 = vtanh.pop %v3726
          %v3759 = vadd.f32 %v3727, 1.0
          %v3760 = vadd.f32 %v3728, 1.0
          %v3761 = vadd.f32 %v3729, 1.0
          %v3762 = vadd.f32 %v3730, 1.0
          %v3763 = vadd.f32 %v3731, 1.0
          %v3764 = vadd.f32 %v3732, 1.0
          %v3765 = vadd.f32 %v3733, 1.0
          %v3766 = vadd.f32 %v3734, 1.0
          %v3767 = vadd.f32 %v3735, 1.0
          %v3768 = vadd.f32 %v3736, 1.0
          %v3769 = vadd.f32 %v3737, 1.0
          %v3770 = vadd.f32 %v3738, 1.0
          %v3771 = vadd.f32 %v3739, 1.0
          %v3772 = vadd.f32 %v3740, 1.0
          %v3773 = vadd.f32 %v3741, 1.0
          %v3774 = vadd.f32 %v3742, 1.0
          %v3775 = vadd.f32 %v3743, 1.0
          %v3776 = vadd.f32 %v3744, 1.0
          %v3777 = vadd.f32 %v3745, 1.0
          %v3778 = vadd.f32 %v3746, 1.0
          %v3779 = vadd.f32 %v3747, 1.0
          %v3780 = vadd.f32 %v3748, 1.0
          %v3781 = vadd.f32 %v3749, 1.0
          %v3782 = vadd.f32 %v3750, 1.0
          %v3783 = vadd.f32 %v3751, 1.0
          %v3784 = vadd.f32 %v3752, 1.0
          %v3785 = vadd.f32 %v3753, 1.0
          %v3786 = vadd.f32 %v3754, 1.0
          %v3787 = vadd.f32 %v3755, 1.0
          %v3788 = vadd.f32 %v3756, 1.0
          %v3789 = vadd.f32 %v3757, 1.0
          %v3790 = vadd.f32 %v3758, 1.0
          %v3791 = vmul.f32 %v3759, 0.5
          %v3792 = vmul.f32 %v3760, 0.5
          %v3793 = vmul.f32 %v3761, 0.5
          %v3794 = vmul.f32 %v3762, 0.5
          %v3795 = vmul.f32 %v3763, 0.5
          %v3796 = vmul.f32 %v3764, 0.5
          %v3797 = vmul.f32 %v3765, 0.5
          %v3798 = vmul.f32 %v3766, 0.5
          %v3799 = vmul.f32 %v3767, 0.5
          %v3800 = vmul.f32 %v3768, 0.5
          %v3801 = vmul.f32 %v3769, 0.5
          %v3802 = vmul.f32 %v3770, 0.5
          %v3803 = vmul.f32 %v3771, 0.5
          %v3804 = vmul.f32 %v3772, 0.5
          %v3805 = vmul.f32 %v3773, 0.5
          %v3806 = vmul.f32 %v3774, 0.5
          %v3807 = vmul.f32 %v3775, 0.5
          %v3808 = vmul.f32 %v3776, 0.5
          %v3809 = vmul.f32 %v3777, 0.5
          %v3810 = vmul.f32 %v3778, 0.5
          %v3811 = vmul.f32 %v3779, 0.5
          %v3812 = vmul.f32 %v3780, 0.5
          %v3813 = vmul.f32 %v3781, 0.5
          %v3814 = vmul.f32 %v3782, 0.5
          %v3815 = vmul.f32 %v3783, 0.5
          %v3816 = vmul.f32 %v3784, 0.5
          %v3817 = vmul.f32 %v3785, 0.5
          %v3818 = vmul.f32 %v3786, 0.5
          %v3819 = vmul.f32 %v3787, 0.5
          %v3820 = vmul.f32 %v3788, 0.5
          %v3821 = vmul.f32 %v3789, 0.5
          %v3822 = vmul.f32 %v3790, 0.5
          %v3823 = vmul.f32 %v3488, %v3791
          %v3824 = vmul.f32 %v3490, %v3792
          %v3825 = vmul.f32 %v3493, %v3793
          %v3826 = vmul.f32 %v3495, %v3794
          %v3827 = vmul.f32 %v3498, %v3795
          %v3828 = vmul.f32 %v3500, %v3796
          %v3829 = vmul.f32 %v3503, %v3797
          %v3830 = vmul.f32 %v3505, %v3798
          %v3831 = vmul.f32 %v3508, %v3799
          %v3832 = vmul.f32 %v3510, %v3800
          %v3833 = vmul.f32 %v3513, %v3801
          %v3834 = vmul.f32 %v3515, %v3802
          %v3835 = vmul.f32 %v3518, %v3803
          %v3836 = vmul.f32 %v3520, %v3804
          %v3837 = vmul.f32 %v3523, %v3805
          %v3838 = vmul.f32 %v3525, %v3806
          %v3839 = vmul.f32 %v3528, %v3807
          %v3840 = vmul.f32 %v3530, %v3808
          %v3841 = vmul.f32 %v3533, %v3809
          %v3842 = vmul.f32 %v3535, %v3810
          %v3843 = vmul.f32 %v3538, %v3811
          %v3844 = vmul.f32 %v3540, %v3812
          %v3845 = vmul.f32 %v3543, %v3813
          %v3846 = vmul.f32 %v3545, %v3814
          %v3847 = vmul.f32 %v3548, %v3815
          %v3848 = vmul.f32 %v3550, %v3816
          %v3849 = vmul.f32 %v3553, %v3817
          %v3850 = vmul.f32 %v3555, %v3818
          %v3851 = vmul.f32 %v3558, %v3819
          %v3852 = vmul.f32 %v3560, %v3820
          %v3853 = vmul.f32 %v3563, %v3821
          %v3854 = vmul.f32 %v3565, %v3822
          %s3855 = smul.u32 %s39, 32
          %s3856 = smul.addr %s3855, 4
          %s3857 = scalar_lea.vmem [#allocation3], %s3856
          %v3858 = vld [vmem:[%s3857] sm:$0xf]
          %v3859 = vld [vmem:[%s3857 + $0x4] sm:$0xf]
          %v3860 = vld [vmem:[%s3857 + $0x8] sm:$0xf]
          %v3861 = vld [vmem:[%s3857 + $0xc] sm:$0xf]
          %v3862 = vld [vmem:[%s3857 + $0x10] sm:$0xf]
          %v3863 = vld [vmem:[%s3857 + $0x14] sm:$0xf]
          %v3864 = vld [vmem:[%s3857 + $0x18] sm:$0xf]
          %v3865 = vld [vmem:[%s3857 + $0x1c] sm:$0xf]
          %v3866 = vld [vmem:[%s3857 + $0x20] sm:$0xf]
          %v3867 = vld [vmem:[%s3857 + $0x24] sm:$0xf]
          %v3868 = vld [vmem:[%s3857 + $0x28] sm:$0xf]
          %v3869 = vld [vmem:[%s3857 + $0x2c] sm:$0xf]
          %v3870 = vld [vmem:[%s3857 + $0x30] sm:$0xf]
          %v3871 = vld [vmem:[%s3857 + $0x34] sm:$0xf]
          %v3872 = vld [vmem:[%s3857 + $0x38] sm:$0xf]
          %v3873 = vld [vmem:[%s3857 + $0x3c] sm:$0xf]
          %v3874 = vld [vmem:[%s3857 + $0x40] sm:$0xf]
          %v3875 = vld [vmem:[%s3857 + $0x44] sm:$0xf]
          %v3876 = vld [vmem:[%s3857 + $0x48] sm:$0xf]
          %v3877 = vld [vmem:[%s3857 + $0x4c] sm:$0xf]
          %v3878 = vld [vmem:[%s3857 + $0x50] sm:$0xf]
          %v3879 = vld [vmem:[%s3857 + $0x54] sm:$0xf]
          %v3880 = vld [vmem:[%s3857 + $0x58] sm:$0xf]
          %v3881 = vld [vmem:[%s3857 + $0x5c] sm:$0xf]
          %v3882 = vld [vmem:[%s3857 + $0x60] sm:$0xf]
          %v3883 = vld [vmem:[%s3857 + $0x64] sm:$0xf]
          %v3884 = vld [vmem:[%s3857 + $0x68] sm:$0xf]
          %v3885 = vld [vmem:[%s3857 + $0x6c] sm:$0xf]
          %v3886 = vld [vmem:[%s3857 + $0x70] sm:$0xf]
          %v3887 = vld [vmem:[%s3857 + $0x74] sm:$0xf]
          %v3888 = vld [vmem:[%s3857 + $0x78] sm:$0xf]
          %v3889 = vld [vmem:[%s3857 + $0x7c] sm:$0xf]
          %v3890 = vunpack.c.l.bf16 %v3858
          %v3891 = vunpack.c.l.bf16 %v3859
          %v3892 = vunpack.c.l.bf16 %v3860
          %v3893 = vunpack.c.l.bf16 %v3861
          %v3894 = vunpack.c.l.bf16 %v3862
          %v3895 = vunpack.c.l.bf16 %v3863
          %v3896 = vunpack.c.l.bf16 %v3864
          %v3897 = vunpack.c.l.bf16 %v3865
          %v3898 = vunpack.c.l.bf16 %v3866
          %v3899 = vunpack.c.l.bf16 %v3867
          %v3900 = vunpack.c.l.bf16 %v3868
          %v3901 = vunpack.c.l.bf16 %v3869
          %v3902 = vunpack.c.l.bf16 %v3870
          %v3903 = vunpack.c.l.bf16 %v3871
          %v3904 = vunpack.c.l.bf16 %v3872
          %v3905 = vunpack.c.l.bf16 %v3873
          %v3906 = vunpack.c.l.bf16 %v3874
          %v3907 = vunpack.c.l.bf16 %v3875
          %v3908 = vunpack.c.l.bf16 %v3876
          %v3909 = vunpack.c.l.bf16 %v3877
          %v3910 = vunpack.c.l.bf16 %v3878
          %v3911 = vunpack.c.l.bf16 %v3879
          %v3912 = vunpack.c.l.bf16 %v3880
          %v3913 = vunpack.c.l.bf16 %v3881
          %v3914 = vunpack.c.l.bf16 %v3882
          %v3915 = vunpack.c.l.bf16 %v3883
          %v3916 = vunpack.c.l.bf16 %v3884
          %v3917 = vunpack.c.l.bf16 %v3885
          %v3918 = vunpack.c.l.bf16 %v3886
          %v3919 = vunpack.c.l.bf16 %v3887
          %v3920 = vunpack.c.l.bf16 %v3888
          %v3921 = vunpack.c.l.bf16 %v3889
          %v3922 = vld [vmem:[#allocation4] sm:$0xff]
          %v3923 = vld [vmem:[#allocation4 + $0x8] sm:$0xff]
          %v3924 = vld [vmem:[#allocation4 + $0x10] sm:$0xff]
          %v3925 = vld [vmem:[#allocation4 + $0x18] sm:$0xff]
          %v3926 = vld [vmem:[#allocation4 + $0x20] sm:$0xff]
          %v3927 = vld [vmem:[#allocation4 + $0x28] sm:$0xff]
          %v3928 = vld [vmem:[#allocation4 + $0x30] sm:$0xff]
          %v3929 = vld [vmem:[#allocation4 + $0x38] sm:$0xff]
          %v3930 = vld [vmem:[#allocation4 + $0x40] sm:$0xff]
          %v3931 = vld [vmem:[#allocation4 + $0x48] sm:$0xff]
          %v3932 = vld [vmem:[#allocation4 + $0x50] sm:$0xff]
          %v3933 = vld [vmem:[#allocation4 + $0x58] sm:$0xff]
          %v3934 = vld [vmem:[#allocation4 + $0x60] sm:$0xff]
          %v3935 = vld [vmem:[#allocation4 + $0x68] sm:$0xff]
          %v3936 = vld [vmem:[#allocation4 + $0x70] sm:$0xff]
          %v3937 = vld [vmem:[#allocation4 + $0x78] sm:$0xff]
          %v3938 = vld [vmem:[#allocation4 + $0x80] sm:$0xff]
          %v3939 = vld [vmem:[#allocation4 + $0x88] sm:$0xff]
          %v3940 = vld [vmem:[#allocation4 + $0x90] sm:$0xff]
          %v3941 = vld [vmem:[#allocation4 + $0x98] sm:$0xff]
          %v3942 = vld [vmem:[#allocation4 + $0xa0] sm:$0xff]
          %v3943 = vld [vmem:[#allocation4 + $0xa8] sm:$0xff]
          %v3944 = vld [vmem:[#allocation4 + $0xb0] sm:$0xff]
          %v3945 = vld [vmem:[#allocation4 + $0xb8] sm:$0xff]
          %v3946 = vld [vmem:[#allocation4 + $0xc0] sm:$0xff]
          %v3947 = vld [vmem:[#allocation4 + $0xc8] sm:$0xff]
          %v3948 = vld [vmem:[#allocation4 + $0xd0] sm:$0xff]
          %v3949 = vld [vmem:[#allocation4 + $0xd8] sm:$0xff]
          %v3950 = vld [vmem:[#allocation4 + $0xe0] sm:$0xff]
          %v3951 = vld [vmem:[#allocation4 + $0xe8] sm:$0xff]
          %v3952 = vld [vmem:[#allocation4 + $0xf0] sm:$0xff]
          %v3953 = vld [vmem:[#allocation4 + $0xf8] sm:$0xff]
          %3955 = vset.pattern.permute.xlu0 0
          %3956 = vperm.xlu0 %3955, %v3922
          %v3957 = vpop.permute.xlu0 %3956
          %3960 = vset.pattern.permute.xlu0 0
          %3961 = vperm.xlu0 %3960, %v3923
          %v3962 = vpop.permute.xlu0 %3961
          %3965 = vset.pattern.permute.xlu0 0
          %3966 = vperm.xlu0 %3965, %v3924
          %v3967 = vpop.permute.xlu0 %3966
          %3970 = vset.pattern.permute.xlu0 0
          %3971 = vperm.xlu0 %3970, %v3925
          %v3972 = vpop.permute.xlu0 %3971
          %3975 = vset.pattern.permute.xlu0 0
          %3976 = vperm.xlu0 %3975, %v3926
          %v3977 = vpop.permute.xlu0 %3976
          %3980 = vset.pattern.permute.xlu0 0
          %3981 = vperm.xlu0 %3980, %v3927
          %v3982 = vpop.permute.xlu0 %3981
          %3985 = vset.pattern.permute.xlu0 0
          %3986 = vperm.xlu0 %3985, %v3928
          %v3987 = vpop.permute.xlu0 %3986
          %3990 = vset.pattern.permute.xlu0 0
          %3991 = vperm.xlu0 %3990, %v3929
          %v3992 = vpop.permute.xlu0 %3991
          %3995 = vset.pattern.permute.xlu0 0
          %3996 = vperm.xlu0 %3995, %v3930
          %v3997 = vpop.permute.xlu0 %3996
          %4000 = vset.pattern.permute.xlu0 0
          %4001 = vperm.xlu0 %4000, %v3931
          %v4002 = vpop.permute.xlu0 %4001
          %4005 = vset.pattern.permute.xlu0 0
          %4006 = vperm.xlu0 %4005, %v3932
          %v4007 = vpop.permute.xlu0 %4006
          %4010 = vset.pattern.permute.xlu0 0
          %4011 = vperm.xlu0 %4010, %v3933
          %v4012 = vpop.permute.xlu0 %4011
          %4015 = vset.pattern.permute.xlu0 0
          %4016 = vperm.xlu0 %4015, %v3934
          %v4017 = vpop.permute.xlu0 %4016
          %4020 = vset.pattern.permute.xlu0 0
          %4021 = vperm.xlu0 %4020, %v3935
          %v4022 = vpop.permute.xlu0 %4021
          %4025 = vset.pattern.permute.xlu0 0
          %4026 = vperm.xlu0 %4025, %v3936
          %v4027 = vpop.permute.xlu0 %4026
          %4030 = vset.pattern.permute.xlu0 0
          %4031 = vperm.xlu0 %4030, %v3937
          %v4032 = vpop.permute.xlu0 %4031
          %4035 = vset.pattern.permute.xlu0 0
          %4036 = vperm.xlu0 %4035, %v3938
          %v4037 = vpop.permute.xlu0 %4036
          %4040 = vset.pattern.permute.xlu0 0
          %4041 = vperm.xlu0 %4040, %v3939
          %v4042 = vpop.permute.xlu0 %4041
          %4045 = vset.pattern.permute.xlu0 0
          %4046 = vperm.xlu0 %4045, %v3940
          %v4047 = vpop.permute.xlu0 %4046
          %4050 = vset.pattern.permute.xlu0 0
          %4051 = vperm.xlu0 %4050, %v3941
          %v4052 = vpop.permute.xlu0 %4051
          %4055 = vset.pattern.permute.xlu0 0
          %4056 = vperm.xlu0 %4055, %v3942
          %v4057 = vpop.permute.xlu0 %4056
          %4060 = vset.pattern.permute.xlu0 0
          %4061 = vperm.xlu0 %4060, %v3943
          %v4062 = vpop.permute.xlu0 %4061
          %4065 = vset.pattern.permute.xlu0 0
          %4066 = vperm.xlu0 %4065, %v3944
          %v4067 = vpop.permute.xlu0 %4066
          %4070 = vset.pattern.permute.xlu0 0
          %4071 = vperm.xlu0 %4070, %v3945
          %v4072 = vpop.permute.xlu0 %4071
          %4075 = vset.pattern.permute.xlu0 0
          %4076 = vperm.xlu0 %4075, %v3946
          %v4077 = vpop.permute.xlu0 %4076
          %4080 = vset.pattern.permute.xlu0 0
          %4081 = vperm.xlu0 %4080, %v3947
          %v4082 = vpop.permute.xlu0 %4081
          %4085 = vset.pattern.permute.xlu0 0
          %4086 = vperm.xlu0 %4085, %v3948
          %v4087 = vpop.permute.xlu0 %4086
          %4090 = vset.pattern.permute.xlu0 0
          %4091 = vperm.xlu0 %4090, %v3949
          %v4092 = vpop.permute.xlu0 %4091
          %4095 = vset.pattern.permute.xlu0 0
          %4096 = vperm.xlu0 %4095, %v3950
          %v4097 = vpop.permute.xlu0 %4096
          %4100 = vset.pattern.permute.xlu0 0
          %4101 = vperm.xlu0 %4100, %v3951
          %v4102 = vpop.permute.xlu0 %4101
          %4105 = vset.pattern.permute.xlu0 0
          %4106 = vperm.xlu0 %4105, %v3952
          %v4107 = vpop.permute.xlu0 %4106
          %4110 = vset.pattern.permute.xlu0 0
          %4111 = vperm.xlu0 %4110, %v3953
          %v4112 = vpop.permute.xlu0 %4111
          %v4114 = vsub.f32 %v3890, %v3957
          %v4115 = vsub.f32 %v3891, %v3962
          %v4116 = vsub.f32 %v3892, %v3967
          %v4117 = vsub.f32 %v3893, %v3972
          %v4118 = vsub.f32 %v3894, %v3977
          %v4119 = vsub.f32 %v3895, %v3982
          %v4120 = vsub.f32 %v3896, %v3987
          %v4121 = vsub.f32 %v3897, %v3992
          %v4122 = vsub.f32 %v3898, %v3997
          %v4123 = vsub.f32 %v3899, %v4002
          %v4124 = vsub.f32 %v3900, %v4007
          %v4125 = vsub.f32 %v3901, %v4012
          %v4126 = vsub.f32 %v3902, %v4017
          %v4127 = vsub.f32 %v3903, %v4022
          %v4128 = vsub.f32 %v3904, %v4027
          %v4129 = vsub.f32 %v3905, %v4032
          %v4130 = vsub.f32 %v3906, %v4037
          %v4131 = vsub.f32 %v3907, %v4042
          %v4132 = vsub.f32 %v3908, %v4047
          %v4133 = vsub.f32 %v3909, %v4052
          %v4134 = vsub.f32 %v3910, %v4057
          %v4135 = vsub.f32 %v3911, %v4062
          %v4136 = vsub.f32 %v3912, %v4067
          %v4137 = vsub.f32 %v3913, %v4072
          %v4138 = vsub.f32 %v3914, %v4077
          %v4139 = vsub.f32 %v3915, %v4082
          %v4140 = vsub.f32 %v3916, %v4087
          %v4141 = vsub.f32 %v3917, %v4092
          %v4142 = vsub.f32 %v3918, %v4097
          %v4143 = vsub.f32 %v3919, %v4102
          %v4144 = vsub.f32 %v3920, %v4107
          %v4145 = vsub.f32 %v3921, %v4112
          %v4146 = vld [vmem:[#allocation5] sm:$0xff]
          %v4147 = vld [vmem:[#allocation5 + $0x8] sm:$0xff]
          %v4148 = vld [vmem:[#allocation5 + $0x10] sm:$0xff]
          %v4149 = vld [vmem:[#allocation5 + $0x18] sm:$0xff]
          %v4150 = vld [vmem:[#allocation5 + $0x20] sm:$0xff]
          %v4151 = vld [vmem:[#allocation5 + $0x28] sm:$0xff]
          %v4152 = vld [vmem:[#allocation5 + $0x30] sm:$0xff]
          %v4153 = vld [vmem:[#allocation5 + $0x38] sm:$0xff]
          %v4154 = vld [vmem:[#allocation5 + $0x40] sm:$0xff]
          %v4155 = vld [vmem:[#allocation5 + $0x48] sm:$0xff]
          %v4156 = vld [vmem:[#allocation5 + $0x50] sm:$0xff]
          %v4157 = vld [vmem:[#allocation5 + $0x58] sm:$0xff]
          %v4158 = vld [vmem:[#allocation5 + $0x60] sm:$0xff]
          %v4159 = vld [vmem:[#allocation5 + $0x68] sm:$0xff]
          %v4160 = vld [vmem:[#allocation5 + $0x70] sm:$0xff]
          %v4161 = vld [vmem:[#allocation5 + $0x78] sm:$0xff]
          %v4162 = vld [vmem:[#allocation5 + $0x80] sm:$0xff]
          %v4163 = vld [vmem:[#allocation5 + $0x88] sm:$0xff]
          %v4164 = vld [vmem:[#allocation5 + $0x90] sm:$0xff]
          %v4165 = vld [vmem:[#allocation5 + $0x98] sm:$0xff]
          %v4166 = vld [vmem:[#allocation5 + $0xa0] sm:$0xff]
          %v4167 = vld [vmem:[#allocation5 + $0xa8] sm:$0xff]
          %v4168 = vld [vmem:[#allocation5 + $0xb0] sm:$0xff]
          %v4169 = vld [vmem:[#allocation5 + $0xb8] sm:$0xff]
          %v4170 = vld [vmem:[#allocation5 + $0xc0] sm:$0xff]
          %v4171 = vld [vmem:[#allocation5 + $0xc8] sm:$0xff]
          %v4172 = vld [vmem:[#allocation5 + $0xd0] sm:$0xff]
          %v4173 = vld [vmem:[#allocation5 + $0xd8] sm:$0xff]
          %v4174 = vld [vmem:[#allocation5 + $0xe0] sm:$0xff]
          %v4175 = vld [vmem:[#allocation5 + $0xe8] sm:$0xff]
          %v4176 = vld [vmem:[#allocation5 + $0xf0] sm:$0xff]
          %v4177 = vld [vmem:[#allocation5 + $0xf8] sm:$0xff]
          %4179 = vset.pattern.permute.xlu0 0
          %4180 = vperm.xlu0 %4179, %v4146
          %v4181 = vpop.permute.xlu0 %4180
          %4184 = vset.pattern.permute.xlu0 0
          %4185 = vperm.xlu0 %4184, %v4147
          %v4186 = vpop.permute.xlu0 %4185
          %4189 = vset.pattern.permute.xlu0 0
          %4190 = vperm.xlu0 %4189, %v4148
          %v4191 = vpop.permute.xlu0 %4190
          %4194 = vset.pattern.permute.xlu0 0
          %4195 = vperm.xlu0 %4194, %v4149
          %v4196 = vpop.permute.xlu0 %4195
          %4199 = vset.pattern.permute.xlu0 0
          %4200 = vperm.xlu0 %4199, %v4150
          %v4201 = vpop.permute.xlu0 %4200
          %4204 = vset.pattern.permute.xlu0 0
          %4205 = vperm.xlu0 %4204, %v4151
          %v4206 = vpop.permute.xlu0 %4205
          %4209 = vset.pattern.permute.xlu0 0
          %4210 = vperm.xlu0 %4209, %v4152
          %v4211 = vpop.permute.xlu0 %4210
          %4214 = vset.pattern.permute.xlu0 0
          %4215 = vperm.xlu0 %4214, %v4153
          %v4216 = vpop.permute.xlu0 %4215
          %4219 = vset.pattern.permute.xlu0 0
          %4220 = vperm.xlu0 %4219, %v4154
          %v4221 = vpop.permute.xlu0 %4220
          %4224 = vset.pattern.permute.xlu0 0
          %4225 = vperm.xlu0 %4224, %v4155
          %v4226 = vpop.permute.xlu0 %4225
          %4229 = vset.pattern.permute.xlu0 0
          %4230 = vperm.xlu0 %4229, %v4156
          %v4231 = vpop.permute.xlu0 %4230
          %4234 = vset.pattern.permute.xlu0 0
          %4235 = vperm.xlu0 %4234, %v4157
          %v4236 = vpop.permute.xlu0 %4235
          %4239 = vset.pattern.permute.xlu0 0
          %4240 = vperm.xlu0 %4239, %v4158
          %v4241 = vpop.permute.xlu0 %4240
          %4244 = vset.pattern.permute.xlu0 0
          %4245 = vperm.xlu0 %4244, %v4159
          %v4246 = vpop.permute.xlu0 %4245
          %4249 = vset.pattern.permute.xlu0 0
          %4250 = vperm.xlu0 %4249, %v4160
          %v4251 = vpop.permute.xlu0 %4250
          %4254 = vset.pattern.permute.xlu0 0
          %4255 = vperm.xlu0 %4254, %v4161
          %v4256 = vpop.permute.xlu0 %4255
          %4259 = vset.pattern.permute.xlu0 0
          %4260 = vperm.xlu0 %4259, %v4162
          %v4261 = vpop.permute.xlu0 %4260
          %4264 = vset.pattern.permute.xlu0 0
          %4265 = vperm.xlu0 %4264, %v4163
          %v4266 = vpop.permute.xlu0 %4265
          %4269 = vset.pattern.permute.xlu0 0
          %4270 = vperm.xlu0 %4269, %v4164
          %v4271 = vpop.permute.xlu0 %4270
          %4274 = vset.pattern.permute.xlu0 0
          %4275 = vperm.xlu0 %4274, %v4165
          %v4276 = vpop.permute.xlu0 %4275
          %4279 = vset.pattern.permute.xlu0 0
          %4280 = vperm.xlu0 %4279, %v4166
          %v4281 = vpop.permute.xlu0 %4280
          %4284 = vset.pattern.permute.xlu0 0
          %4285 = vperm.xlu0 %4284, %v4167
          %v4286 = vpop.permute.xlu0 %4285
          %4289 = vset.pattern.permute.xlu0 0
          %4290 = vperm.xlu0 %4289, %v4168
          %v4291 = vpop.permute.xlu0 %4290
          %4294 = vset.pattern.permute.xlu0 0
          %4295 = vperm.xlu0 %4294, %v4169
          %v4296 = vpop.permute.xlu0 %4295
          %4299 = vset.pattern.permute.xlu0 0
          %4300 = vperm.xlu0 %4299, %v4170
          %v4301 = vpop.permute.xlu0 %4300
          %4304 = vset.pattern.permute.xlu0 0
          %4305 = vperm.xlu0 %4304, %v4171
          %v4306 = vpop.permute.xlu0 %4305
          %4309 = vset.pattern.permute.xlu0 0
          %4310 = vperm.xlu0 %4309, %v4172
          %v4311 = vpop.permute.xlu0 %4310
          %4314 = vset.pattern.permute.xlu0 0
          %4315 = vperm.xlu0 %4314, %v4173
          %v4316 = vpop.permute.xlu0 %4315
          %4319 = vset.pattern.permute.xlu0 0
          %4320 = vperm.xlu0 %4319, %v4174
          %v4321 = vpop.permute.xlu0 %4320
          %4324 = vset.pattern.permute.xlu0 0
          %4325 = vperm.xlu0 %4324, %v4175
          %v4326 = vpop.permute.xlu0 %4325
          %4329 = vset.pattern.permute.xlu0 0
          %4330 = vperm.xlu0 %4329, %v4176
          %v4331 = vpop.permute.xlu0 %4330
          %4334 = vset.pattern.permute.xlu0 0
          %4335 = vperm.xlu0 %4334, %v4177
          %v4336 = vpop.permute.xlu0 %4335
          %v4338 = vmul.f32 %v4114, %v4181
          %v4339 = vmul.f32 %v4115, %v4186
          %v4340 = vmul.f32 %v4116, %v4191
          %v4341 = vmul.f32 %v4117, %v4196
          %v4342 = vmul.f32 %v4118, %v4201
          %v4343 = vmul.f32 %v4119, %v4206
          %v4344 = vmul.f32 %v4120, %v4211
          %v4345 = vmul.f32 %v4121, %v4216
          %v4346 = vmul.f32 %v4122, %v4221
          %v4347 = vmul.f32 %v4123, %v4226
          %v4348 = vmul.f32 %v4124, %v4231
          %v4349 = vmul.f32 %v4125, %v4236
          %v4350 = vmul.f32 %v4126, %v4241
          %v4351 = vmul.f32 %v4127, %v4246
          %v4352 = vmul.f32 %v4128, %v4251
          %v4353 = vmul.f32 %v4129, %v4256
          %v4354 = vmul.f32 %v4130, %v4261
          %v4355 = vmul.f32 %v4131, %v4266
          %v4356 = vmul.f32 %v4132, %v4271
          %v4357 = vmul.f32 %v4133, %v4276
          %v4358 = vmul.f32 %v4134, %v4281
          %v4359 = vmul.f32 %v4135, %v4286
          %v4360 = vmul.f32 %v4136, %v4291
          %v4361 = vmul.f32 %v4137, %v4296
          %v4362 = vmul.f32 %v4138, %v4301
          %v4363 = vmul.f32 %v4139, %v4306
          %v4364 = vmul.f32 %v4140, %v4311
          %v4365 = vmul.f32 %v4141, %v4316
          %v4366 = vmul.f32 %v4142, %v4321
          %v4367 = vmul.f32 %v4143, %v4326
          %v4368 = vmul.f32 %v4144, %v4331
          %v4369 = vmul.f32 %v4145, %v4336
          %s4370 = scalar_lea.vmem [#allocation14], %s39
          %v4371 = vld [vmem:[%s4370] sm:$0x1]
          %v4373 = vperm.slane %v4371, 0
          %v4375 = vmul.f32 %v4338, %v4373
          %v4376 = vmul.f32 %v4339, %v4373
          %v4377 = vmul.f32 %v4340, %v4373
          %v4378 = vmul.f32 %v4341, %v4373
          %v4379 = vmul.f32 %v4342, %v4373
          %v4380 = vmul.f32 %v4343, %v4373
          %v4381 = vmul.f32 %v4344, %v4373
          %v4382 = vmul.f32 %v4345, %v4373
          %v4383 = vmul.f32 %v4346, %v4373
          %v4384 = vmul.f32 %v4347, %v4373
          %v4385 = vmul.f32 %v4348, %v4373
          %v4386 = vmul.f32 %v4349, %v4373
          %v4387 = vmul.f32 %v4350, %v4373
          %v4388 = vmul.f32 %v4351, %v4373
          %v4389 = vmul.f32 %v4352, %v4373
          %v4390 = vmul.f32 %v4353, %v4373
          %v4391 = vmul.f32 %v4354, %v4373
          %v4392 = vmul.f32 %v4355, %v4373
          %v4393 = vmul.f32 %v4356, %v4373
          %v4394 = vmul.f32 %v4357, %v4373
          %v4395 = vmul.f32 %v4358, %v4373
          %v4396 = vmul.f32 %v4359, %v4373
          %v4397 = vmul.f32 %v4360, %v4373
          %v4398 = vmul.f32 %v4361, %v4373
          %v4399 = vmul.f32 %v4362, %v4373
          %v4400 = vmul.f32 %v4363, %v4373
          %v4401 = vmul.f32 %v4364, %v4373
          %v4402 = vmul.f32 %v4365, %v4373
          %v4403 = vmul.f32 %v4366, %v4373
          %v4404 = vmul.f32 %v4367, %v4373
          %v4405 = vmul.f32 %v4368, %v4373
          %v4406 = vmul.f32 %v4369, %v4373
          %s4407 = scalar_lea.vmem %s8, %s39
          %v4408 = vld [vmem:[%s4407] sm:$0x1]
          %v4410 = vperm.slane %v4408, 0
          %v4412 = vadd.f32 %v4375, %v4410
          %v4413 = vadd.f32 %v4376, %v4410
          %v4414 = vadd.f32 %v4377, %v4410
          %v4415 = vadd.f32 %v4378, %v4410
          %v4416 = vadd.f32 %v4379, %v4410
          %v4417 = vadd.f32 %v4380, %v4410
          %v4418 = vadd.f32 %v4381, %v4410
          %v4419 = vadd.f32 %v4382, %v4410
          %v4420 = vadd.f32 %v4383, %v4410
          %v4421 = vadd.f32 %v4384, %v4410
          %v4422 = vadd.f32 %v4385, %v4410
          %v4423 = vadd.f32 %v4386, %v4410
          %v4424 = vadd.f32 %v4387, %v4410
          %v4425 = vadd.f32 %v4388, %v4410
          %v4426 = vadd.f32 %v4389, %v4410
          %v4427 = vadd.f32 %v4390, %v4410
          %v4428 = vadd.f32 %v4391, %v4410
          %v4429 = vadd.f32 %v4392, %v4410
          %v4430 = vadd.f32 %v4393, %v4410
          %v4431 = vadd.f32 %v4394, %v4410
          %v4432 = vadd.f32 %v4395, %v4410
          %v4433 = vadd.f32 %v4396, %v4410
          %v4434 = vadd.f32 %v4397, %v4410
          %v4435 = vadd.f32 %v4398, %v4410
          %v4436 = vadd.f32 %v4399, %v4410
          %v4437 = vadd.f32 %v4400, %v4410
          %v4438 = vadd.f32 %v4401, %v4410
          %v4439 = vadd.f32 %v4402, %v4410
          %v4440 = vadd.f32 %v4403, %v4410
          %v4441 = vadd.f32 %v4404, %v4410
          %v4442 = vadd.f32 %v4405, %v4410
          %v4443 = vadd.f32 %v4406, %v4410
          %v4444 = vpack.c.bf16 %v4412, %v4412
          %v4445 = vpack.c.bf16 %v4413, %v4413
          %v4446 = vpack.c.bf16 %v4414, %v4414
          %v4447 = vpack.c.bf16 %v4415, %v4415
          %v4448 = vpack.c.bf16 %v4416, %v4416
          %v4449 = vpack.c.bf16 %v4417, %v4417
          %v4450 = vpack.c.bf16 %v4418, %v4418
          %v4451 = vpack.c.bf16 %v4419, %v4419
          %v4452 = vpack.c.bf16 %v4420, %v4420
          %v4453 = vpack.c.bf16 %v4421, %v4421
          %v4454 = vpack.c.bf16 %v4422, %v4422
          %v4455 = vpack.c.bf16 %v4423, %v4423
          %v4456 = vpack.c.bf16 %v4424, %v4424
          %v4457 = vpack.c.bf16 %v4425, %v4425
          %v4458 = vpack.c.bf16 %v4426, %v4426
          %v4459 = vpack.c.bf16 %v4427, %v4427
          %v4460 = vpack.c.bf16 %v4428, %v4428
          %v4461 = vpack.c.bf16 %v4429, %v4429
          %v4462 = vpack.c.bf16 %v4430, %v4430
          %v4463 = vpack.c.bf16 %v4431, %v4431
          %v4464 = vpack.c.bf16 %v4432, %v4432
          %v4465 = vpack.c.bf16 %v4433, %v4433
          %v4466 = vpack.c.bf16 %v4434, %v4434
          %v4467 = vpack.c.bf16 %v4435, %v4435
          %v4468 = vpack.c.bf16 %v4436, %v4436
          %v4469 = vpack.c.bf16 %v4437, %v4437
          %v4470 = vpack.c.bf16 %v4438, %v4438
          %v4471 = vpack.c.bf16 %v4439, %v4439
          %v4472 = vpack.c.bf16 %v4440, %v4440
          %v4473 = vpack.c.bf16 %v4441, %v4441
          %v4474 = vpack.c.bf16 %v4442, %v4442
          %v4475 = vpack.c.bf16 %v4443, %v4443
          %v4476 = vld [vmem:[#allocation15] sm:$0xf]
          %v4477 = vld [vmem:[#allocation15 + $0x4] sm:$0xf]
          %v4478 = vld [vmem:[#allocation15 + $0x8] sm:$0xf]
          %v4479 = vld [vmem:[#allocation15 + $0xc] sm:$0xf]
          %v4480 = vld [vmem:[#allocation15 + $0x10] sm:$0xf]
          %v4481 = vld [vmem:[#allocation15 + $0x14] sm:$0xf]
          %v4482 = vld [vmem:[#allocation15 + $0x18] sm:$0xf]
          %v4483 = vld [vmem:[#allocation15 + $0x1c] sm:$0xf]
          %v4484 = vld [vmem:[#allocation15 + $0x20] sm:$0xf]
          %v4485 = vld [vmem:[#allocation15 + $0x24] sm:$0xf]
          %v4486 = vld [vmem:[#allocation15 + $0x28] sm:$0xf]
          %v4487 = vld [vmem:[#allocation15 + $0x2c] sm:$0xf]
          %v4488 = vld [vmem:[#allocation15 + $0x30] sm:$0xf]
          %v4489 = vld [vmem:[#allocation15 + $0x34] sm:$0xf]
          %v4490 = vld [vmem:[#allocation15 + $0x38] sm:$0xf]
          %v4491 = vld [vmem:[#allocation15 + $0x3c] sm:$0xf]
          %v4492 = vld [vmem:[%s10] sm:$0xff]
          %v4493 = vld [vmem:[%s10 + $0x8] sm:$0xff]
          %v4494 = vld [vmem:[%s10 + $0x10] sm:$0xff]
          %v4495 = vld [vmem:[%s10 + $0x18] sm:$0xff]
          %v4496 = vld [vmem:[%s10 + $0x20] sm:$0xff]
          %v4497 = vld [vmem:[%s10 + $0x28] sm:$0xff]
          %v4498 = vld [vmem:[%s10 + $0x30] sm:$0xff]
          %v4499 = vld [vmem:[%s10 + $0x38] sm:$0xff]
          %v4500 = vld [vmem:[%s10 + $0x40] sm:$0xff]
          %v4501 = vld [vmem:[%s10 + $0x48] sm:$0xff]
          %v4502 = vld [vmem:[%s10 + $0x50] sm:$0xff]
          %v4503 = vld [vmem:[%s10 + $0x58] sm:$0xff]
          %v4504 = vld [vmem:[%s10 + $0x60] sm:$0xff]
          %v4505 = vld [vmem:[%s10 + $0x68] sm:$0xff]
          %v4506 = vld [vmem:[%s10 + $0x70] sm:$0xff]
          %v4507 = vld [vmem:[%s10 + $0x78] sm:$0xff]
          %4509 = vset.pattern.permute.xlu0 0
          %4510 = vperm.xlu0 %4509, %v4492
          %v4511 = vpop.permute.xlu0 %4510
          %4514 = vset.pattern.permute.xlu0 0
          %4515 = vperm.xlu0 %4514, %v4493
          %v4516 = vpop.permute.xlu0 %4515
          %4519 = vset.pattern.permute.xlu0 0
          %4520 = vperm.xlu0 %4519, %v4494
          %v4521 = vpop.permute.xlu0 %4520
          %4524 = vset.pattern.permute.xlu0 0
          %4525 = vperm.xlu0 %4524, %v4495
          %v4526 = vpop.permute.xlu0 %4525
          %4529 = vset.pattern.permute.xlu0 0
          %4530 = vperm.xlu0 %4529, %v4496
          %v4531 = vpop.permute.xlu0 %4530
          %4534 = vset.pattern.permute.xlu0 0
          %4535 = vperm.xlu0 %4534, %v4497
          %v4536 = vpop.permute.xlu0 %4535
          %4539 = vset.pattern.permute.xlu0 0
          %4540 = vperm.xlu0 %4539, %v4498
          %v4541 = vpop.permute.xlu0 %4540
          %4544 = vset.pattern.permute.xlu0 0
          %4545 = vperm.xlu0 %4544, %v4499
          %v4546 = vpop.permute.xlu0 %4545
          %4549 = vset.pattern.permute.xlu0 0
          %4550 = vperm.xlu0 %4549, %v4500
          %v4551 = vpop.permute.xlu0 %4550
          %4554 = vset.pattern.permute.xlu0 0
          %4555 = vperm.xlu0 %4554, %v4501
          %v4556 = vpop.permute.xlu0 %4555
          %4559 = vset.pattern.permute.xlu0 0
          %4560 = vperm.xlu0 %4559, %v4502
          %v4561 = vpop.permute.xlu0 %4560
          %4564 = vset.pattern.permute.xlu0 0
          %4565 = vperm.xlu0 %4564, %v4503
          %v4566 = vpop.permute.xlu0 %4565
          %4569 = vset.pattern.permute.xlu0 0
          %4570 = vperm.xlu0 %4569, %v4504
          %v4571 = vpop.permute.xlu0 %4570
          %4574 = vset.pattern.permute.xlu0 0
          %4575 = vperm.xlu0 %4574, %v4505
          %v4576 = vpop.permute.xlu0 %4575
          %4579 = vset.pattern.permute.xlu0 0
          %4580 = vperm.xlu0 %4579, %v4506
          %v4581 = vpop.permute.xlu0 %4580
          %4584 = vset.pattern.permute.xlu0 0
          %4585 = vperm.xlu0 %4584, %v4507
          %v4586 = vpop.permute.xlu0 %4585
          %v4604 = vunpack.c.l.b16 %v4476
          %v4605 = vunpack.c.l.b16 %v4477
          %v4606 = vunpack.c.l.b16 %v4478
          %v4607 = vunpack.c.l.b16 %v4479
          %v4608 = vunpack.c.l.b16 %v4480
          %v4609 = vunpack.c.l.b16 %v4481
          %v4610 = vunpack.c.l.b16 %v4482
          %v4611 = vunpack.c.l.b16 %v4483
          %v4612 = vunpack.c.l.b16 %v4484
          %v4613 = vunpack.c.l.b16 %v4485
          %v4614 = vunpack.c.l.b16 %v4486
          %v4615 = vunpack.c.l.b16 %v4487
          %v4616 = vunpack.c.l.b16 %v4488
          %v4617 = vunpack.c.l.b16 %v4489
          %v4618 = vunpack.c.l.b16 %v4490
          %v4619 = vunpack.c.l.b16 %v4491
          %v4620 = vpack.c.b16 %v4605, %v4604
          %v4621 = vpack.c.b16 %v4607, %v4606
          %v4622 = vpack.c.b16 %v4609, %v4608
          %v4623 = vpack.c.b16 %v4611, %v4610
          %v4624 = vpack.c.b16 %v4613, %v4612
          %v4625 = vpack.c.b16 %v4615, %v4614
          %v4626 = vpack.c.b16 %v4617, %v4616
          %v4627 = vpack.c.b16 %v4619, %v4618
          %v4652 = vunpack.c.l.b16 %v4444
          %v4653 = vunpack.c.l.b16 %v4445
          %v4654 = vunpack.c.l.b16 %v4446
          %v4655 = vunpack.c.l.b16 %v4447
          %v4656 = vunpack.c.l.b16 %v4448
          %v4657 = vunpack.c.l.b16 %v4449
          %v4658 = vunpack.c.l.b16 %v4450
          %v4659 = vunpack.c.l.b16 %v4451
          %v4660 = vunpack.c.l.b16 %v4452
          %v4661 = vunpack.c.l.b16 %v4453
          %v4662 = vunpack.c.l.b16 %v4454
          %v4663 = vunpack.c.l.b16 %v4455
          %v4664 = vunpack.c.l.b16 %v4456
          %v4665 = vunpack.c.l.b16 %v4457
          %v4666 = vunpack.c.l.b16 %v4458
          %v4667 = vunpack.c.l.b16 %v4459
          %v4668 = vpack.c.b16 %v4653, %v4652
          %v4669 = vpack.c.b16 %v4655, %v4654
          %v4670 = vpack.c.b16 %v4657, %v4656
          %v4671 = vpack.c.b16 %v4659, %v4658
          %v4672 = vpack.c.b16 %v4661, %v4660
          %v4673 = vpack.c.b16 %v4663, %v4662
          %v4674 = vpack.c.b16 %v4665, %v4664
          %v4675 = vpack.c.b16 %v4667, %v4666
          %4684 = vmatpush.bf16.msra.mxu0 %v4675
          %4685 = vmatpush.bf16.msra.mxu0 %v4674
          %4686 = vmatpush.bf16.msra.mxu0 %v4673
          %4687 = vmatpush.bf16.msra.mxu0 %v4672
          %4688 = vmatpush.bf16.msra.mxu0 %v4671
          %4689 = vmatpush.bf16.msra.mxu0 %v4670
          %4690 = vmatpush.bf16.msra.mxu0 %v4669
          %4691 = vmatpush.bf16.msra.mxu0 %v4668
          %4692 = vmatmul.bf16.gmra.mxu0 %v4620
          %v4693 = vpop.f32.mrf.mxu0
          %v4694 = vadd.f32 %v4511, %v4693
          %v4695 = vpop.f32.mrf.mxu0
          %v4696 = vadd.f32 %v4516, %v4695
          %4697 = vmatmul.bf16.gmra.mxu0 %v4621
          %v4698 = vpop.f32.mrf.mxu0
          %v4699 = vadd.f32 %v4521, %v4698
          %v4700 = vpop.f32.mrf.mxu0
          %v4701 = vadd.f32 %v4526, %v4700
          %4702 = vmatmul.bf16.gmra.mxu0 %v4622
          %v4703 = vpop.f32.mrf.mxu0
          %v4704 = vadd.f32 %v4531, %v4703
          %v4705 = vpop.f32.mrf.mxu0
          %v4706 = vadd.f32 %v4536, %v4705
          %4707 = vmatmul.bf16.gmra.mxu0 %v4623
          %v4708 = vpop.f32.mrf.mxu0
          %v4709 = vadd.f32 %v4541, %v4708
          %v4710 = vpop.f32.mrf.mxu0
          %v4711 = vadd.f32 %v4546, %v4710
          %4712 = vmatmul.bf16.gmra.mxu0 %v4624
          %v4713 = vpop.f32.mrf.mxu0
          %v4714 = vadd.f32 %v4551, %v4713
          %v4715 = vpop.f32.mrf.mxu0
          %v4716 = vadd.f32 %v4556, %v4715
          %4717 = vmatmul.bf16.gmra.mxu0 %v4625
          %v4718 = vpop.f32.mrf.mxu0
          %v4719 = vadd.f32 %v4561, %v4718
          %v4720 = vpop.f32.mrf.mxu0
          %v4721 = vadd.f32 %v4566, %v4720
          %4722 = vmatmul.bf16.gmra.mxu0 %v4626
          %v4723 = vpop.f32.mrf.mxu0
          %v4724 = vadd.f32 %v4571, %v4723
          %v4725 = vpop.f32.mrf.mxu0
          %v4726 = vadd.f32 %v4576, %v4725
          %4727 = vmatmul.bf16.gmra.mxu0 %v4627
          %v4728 = vpop.f32.mrf.mxu0
          %v4729 = vadd.f32 %v4581, %v4728
          %v4730 = vpop.f32.mrf.mxu0
          %v4731 = vadd.f32 %v4586, %v4730
          %4732 = vdwg.mxu0
          %v4749 = vunpack.c.l.b16 %v4460
          %v4750 = vunpack.c.l.b16 %v4461
          %v4751 = vunpack.c.l.b16 %v4462
          %v4752 = vunpack.c.l.b16 %v4463
          %v4753 = vunpack.c.l.b16 %v4464
          %v4754 = vunpack.c.l.b16 %v4465
          %v4755 = vunpack.c.l.b16 %v4466
          %v4756 = vunpack.c.l.b16 %v4467
          %v4757 = vunpack.c.l.b16 %v4468
          %v4758 = vunpack.c.l.b16 %v4469
          %v4759 = vunpack.c.l.b16 %v4470
          %v4760 = vunpack.c.l.b16 %v4471
          %v4761 = vunpack.c.l.b16 %v4472
          %v4762 = vunpack.c.l.b16 %v4473
          %v4763 = vunpack.c.l.b16 %v4474
          %v4764 = vunpack.c.l.b16 %v4475
          %v4765 = vpack.c.b16 %v4750, %v4749
          %v4766 = vpack.c.b16 %v4752, %v4751
          %v4767 = vpack.c.b16 %v4754, %v4753
          %v4768 = vpack.c.b16 %v4756, %v4755
          %v4769 = vpack.c.b16 %v4758, %v4757
          %v4770 = vpack.c.b16 %v4760, %v4759
          %v4771 = vpack.c.b16 %v4762, %v4761
          %v4772 = vpack.c.b16 %v4764, %v4763
          %4781 = vmatpush.bf16.msra.mxu0 %v4772
          %4782 = vmatpush.bf16.msra.mxu0 %v4771
          %4783 = vmatpush.bf16.msra.mxu0 %v4770
          %4784 = vmatpush.bf16.msra.mxu0 %v4769
          %4785 = vmatpush.bf16.msra.mxu0 %v4768
          %4786 = vmatpush.bf16.msra.mxu0 %v4767
          %4787 = vmatpush.bf16.msra.mxu0 %v4766
          %4788 = vmatpush.bf16.msra.mxu0 %v4765
          %4789 = vmatmul.bf16.gmra.mxu0 %v4620
          %v4790 = vpop.f32.mrf.mxu0
          %v4791 = vadd.f32 %v4511, %v4790
          %v4792 = vpop.f32.mrf.mxu0
          %v4793 = vadd.f32 %v4516, %v4792
          %4794 = vmatmul.bf16.gmra.mxu0 %v4621
          %v4795 = vpop.f32.mrf.mxu0
          %v4796 = vadd.f32 %v4521, %v4795
          %v4797 = vpop.f32.mrf.mxu0
          %v4798 = vadd.f32 %v4526, %v4797
          %4799 = vmatmul.bf16.gmra.mxu0 %v4622
          %v4800 = vpop.f32.mrf.mxu0
          %v4801 = vadd.f32 %v4531, %v4800
          %v4802 = vpop.f32.mrf.mxu0
          %v4803 = vadd.f32 %v4536, %v4802
          %4804 = vmatmul.bf16.gmra.mxu0 %v4623
          %v4805 = vpop.f32.mrf.mxu0
          %v4806 = vadd.f32 %v4541, %v4805
          %v4807 = vpop.f32.mrf.mxu0
          %v4808 = vadd.f32 %v4546, %v4807
          %4809 = vmatmul.bf16.gmra.mxu0 %v4624
          %v4810 = vpop.f32.mrf.mxu0
          %v4811 = vadd.f32 %v4551, %v4810
          %v4812 = vpop.f32.mrf.mxu0
          %v4813 = vadd.f32 %v4556, %v4812
          %4814 = vmatmul.bf16.gmra.mxu0 %v4625
          %v4815 = vpop.f32.mrf.mxu0
          %v4816 = vadd.f32 %v4561, %v4815
          %v4817 = vpop.f32.mrf.mxu0
          %v4818 = vadd.f32 %v4566, %v4817
          %4819 = vmatmul.bf16.gmra.mxu0 %v4626
          %v4820 = vpop.f32.mrf.mxu0
          %v4821 = vadd.f32 %v4571, %v4820
          %v4822 = vpop.f32.mrf.mxu0
          %v4823 = vadd.f32 %v4576, %v4822
          %4824 = vmatmul.bf16.gmra.mxu0 %v4627
          %v4825 = vpop.f32.mrf.mxu0
          %v4826 = vadd.f32 %v4581, %v4825
          %v4827 = vpop.f32.mrf.mxu0
          %v4828 = vadd.f32 %v4586, %v4827
          %4829 = vdwg.mxu0
          %v4830 = vmul.f32 %v3823, %v4694
          %v4831 = vmul.f32 %v3824, %v4696
          %v4832 = vmul.f32 %v3825, %v4699
          %v4833 = vmul.f32 %v3826, %v4701
          %v4834 = vmul.f32 %v3827, %v4704
          %v4835 = vmul.f32 %v3828, %v4706
          %v4836 = vmul.f32 %v3829, %v4709
          %v4837 = vmul.f32 %v3830, %v4711
          %v4838 = vmul.f32 %v3831, %v4714
          %v4839 = vmul.f32 %v3832, %v4716
          %v4840 = vmul.f32 %v3833, %v4719
          %v4841 = vmul.f32 %v3834, %v4721
          %v4842 = vmul.f32 %v3835, %v4724
          %v4843 = vmul.f32 %v3836, %v4726
          %v4844 = vmul.f32 %v3837, %v4729
          %v4845 = vmul.f32 %v3838, %v4731
          %v4846 = vmul.f32 %v3839, %v4791
          %v4847 = vmul.f32 %v3840, %v4793
          %v4848 = vmul.f32 %v3841, %v4796
          %v4849 = vmul.f32 %v3842, %v4798
          %v4850 = vmul.f32 %v3843, %v4801
          %v4851 = vmul.f32 %v3844, %v4803
          %v4852 = vmul.f32 %v3845, %v4806
          %v4853 = vmul.f32 %v3846, %v4808
          %v4854 = vmul.f32 %v3847, %v4811
          %v4855 = vmul.f32 %v3848, %v4813
          %v4856 = vmul.f32 %v3849, %v4816
          %v4857 = vmul.f32 %v3850, %v4818
          %v4858 = vmul.f32 %v3851, %v4821
          %v4859 = vmul.f32 %v3852, %v4823
          %v4860 = vmul.f32 %v3853, %v4826
          %v4861 = vmul.f32 %v3854, %v4828
          %v4862 = vpack.c.bf16 %v4831, %v4830
          %v4863 = vpack.c.bf16 %v4833, %v4832
          %v4864 = vpack.c.bf16 %v4835, %v4834
          %v4865 = vpack.c.bf16 %v4837, %v4836
          %v4866 = vpack.c.bf16 %v4839, %v4838
          %v4867 = vpack.c.bf16 %v4841, %v4840
          %v4868 = vpack.c.bf16 %v4843, %v4842
          %v4869 = vpack.c.bf16 %v4845, %v4844
          %v4870 = vpack.c.bf16 %v4847, %v4846
          %v4871 = vpack.c.bf16 %v4849, %v4848
          %v4872 = vpack.c.bf16 %v4851, %v4850
          %v4873 = vpack.c.bf16 %v4853, %v4852
          %v4874 = vpack.c.bf16 %v4855, %v4854
          %v4875 = vpack.c.bf16 %v4857, %v4856
          %v4876 = vpack.c.bf16 %v4859, %v4858
          %v4877 = vpack.c.bf16 %v4861, %v4860
          %v4878 = vld [vmem:[#allocation6] sm:$0xff]
          %v4879 = vld [vmem:[#allocation6 + $0x8] sm:$0xff]
          %v4880 = vld [vmem:[#allocation6 + $0x10] sm:$0xff]
          %v4881 = vld [vmem:[#allocation6 + $0x18] sm:$0xff]
          %v4882 = vld [vmem:[#allocation6 + $0x20] sm:$0xff]
          %v4883 = vld [vmem:[#allocation6 + $0x28] sm:$0xff]
          %v4884 = vld [vmem:[#allocation6 + $0x30] sm:$0xff]
          %v4885 = vld [vmem:[#allocation6 + $0x38] sm:$0xff]
          %v4886 = vld [vmem:[#allocation6 + $0x40] sm:$0xff]
          %v4887 = vld [vmem:[#allocation6 + $0x48] sm:$0xff]
          %v4888 = vld [vmem:[#allocation6 + $0x50] sm:$0xff]
          %v4889 = vld [vmem:[#allocation6 + $0x58] sm:$0xff]
          %v4890 = vld [vmem:[#allocation6 + $0x60] sm:$0xff]
          %v4891 = vld [vmem:[#allocation6 + $0x68] sm:$0xff]
          %v4892 = vld [vmem:[#allocation6 + $0x70] sm:$0xff]
          %v4893 = vld [vmem:[#allocation6 + $0x78] sm:$0xff]
          %v4894 = vld [vmem:[#allocation6 + $0x80] sm:$0xff]
          %v4895 = vld [vmem:[#allocation6 + $0x88] sm:$0xff]
          %v4896 = vld [vmem:[#allocation6 + $0x90] sm:$0xff]
          %v4897 = vld [vmem:[#allocation6 + $0x98] sm:$0xff]
          %v4898 = vld [vmem:[#allocation6 + $0xa0] sm:$0xff]
          %v4899 = vld [vmem:[#allocation6 + $0xa8] sm:$0xff]
          %v4900 = vld [vmem:[#allocation6 + $0xb0] sm:$0xff]
          %v4901 = vld [vmem:[#allocation6 + $0xb8] sm:$0xff]
          %v4902 = vld [vmem:[#allocation6 + $0xc0] sm:$0xff]
          %v4903 = vld [vmem:[#allocation6 + $0xc8] sm:$0xff]
          %v4904 = vld [vmem:[#allocation6 + $0xd0] sm:$0xff]
          %v4905 = vld [vmem:[#allocation6 + $0xd8] sm:$0xff]
          %v4906 = vld [vmem:[#allocation6 + $0xe0] sm:$0xff]
          %v4907 = vld [vmem:[#allocation6 + $0xe8] sm:$0xff]
          %v4908 = vld [vmem:[#allocation6 + $0xf0] sm:$0xff]
          %v4909 = vld [vmem:[#allocation6 + $0xf8] sm:$0xff]
          %v4910 = vld [vmem:[%s685] sm:$0xf]
          %v4911 = vld [vmem:[%s685 + $0x4] sm:$0xf]
          %v4912 = vld [vmem:[%s685 + $0x8] sm:$0xf]
          %v4913 = vld [vmem:[%s685 + $0xc] sm:$0xf]
          %v4914 = vld [vmem:[%s685 + $0x10] sm:$0xf]
          %v4915 = vld [vmem:[%s685 + $0x14] sm:$0xf]
          %v4916 = vld [vmem:[%s685 + $0x18] sm:$0xf]
          %v4917 = vld [vmem:[%s685 + $0x1c] sm:$0xf]
          %v4918 = vld [vmem:[%s685 + $0x20] sm:$0xf]
          %v4919 = vld [vmem:[%s685 + $0x24] sm:$0xf]
          %v4920 = vld [vmem:[%s685 + $0x28] sm:$0xf]
          %v4921 = vld [vmem:[%s685 + $0x2c] sm:$0xf]
          %v4922 = vld [vmem:[%s685 + $0x30] sm:$0xf]
          %v4923 = vld [vmem:[%s685 + $0x34] sm:$0xf]
          %v4924 = vld [vmem:[%s685 + $0x38] sm:$0xf]
          %v4925 = vld [vmem:[%s685 + $0x3c] sm:$0xf]
          %v4942 = vunpack.c.l.b16 %v4910
          %v4943 = vunpack.c.l.b16 %v4911
          %v4944 = vunpack.c.l.b16 %v4912
          %v4945 = vunpack.c.l.b16 %v4913
          %v4946 = vunpack.c.l.b16 %v4914
          %v4947 = vunpack.c.l.b16 %v4915
          %v4948 = vunpack.c.l.b16 %v4916
          %v4949 = vunpack.c.l.b16 %v4917
          %v4950 = vunpack.c.l.b16 %v4918
          %v4951 = vunpack.c.l.b16 %v4919
          %v4952 = vunpack.c.l.b16 %v4920
          %v4953 = vunpack.c.l.b16 %v4921
          %v4954 = vunpack.c.l.b16 %v4922
          %v4955 = vunpack.c.l.b16 %v4923
          %v4956 = vunpack.c.l.b16 %v4924
          %v4957 = vunpack.c.l.b16 %v4925
          %v4958 = vpack.c.b16 %v4943, %v4942
          %v4959 = vpack.c.b16 %v4945, %v4944
          %v4960 = vpack.c.b16 %v4947, %v4946
          %v4961 = vpack.c.b16 %v4949, %v4948
          %v4962 = vpack.c.b16 %v4951, %v4950
          %v4963 = vpack.c.b16 %v4953, %v4952
          %v4964 = vpack.c.b16 %v4955, %v4954
          %v4965 = vpack.c.b16 %v4957, %v4956
          %4974 = vmatpush.bf16.msra.mxu0 %v4965
          %4975 = vmatpush.bf16.msra.mxu0 %v4964
          %4976 = vmatpush.bf16.msra.mxu0 %v4963
          %4977 = vmatpush.bf16.msra.mxu0 %v4962
          %4978 = vmatpush.bf16.msra.mxu0 %v4961
          %4979 = vmatpush.bf16.msra.mxu0 %v4960
          %4980 = vmatpush.bf16.msra.mxu0 %v4959
          %4981 = vmatpush.bf16.msra.mxu0 %v4958
          %4982 = vmatmul.bf16.gmra.mxu0 %v4862
          %v4983 = vpop.f32.mrf.mxu0
          %v4984 = vadd.f32 0.0, %v4983
          %v4985 = vpop.f32.mrf.mxu0
          %v4986 = vadd.f32 0.0, %v4985
          %4987 = vmatmul.bf16.gmra.mxu0 %v4863
          %v4988 = vpop.f32.mrf.mxu0
          %v4989 = vadd.f32 0.0, %v4988
          %v4990 = vpop.f32.mrf.mxu0
          %v4991 = vadd.f32 0.0, %v4990
          %4992 = vmatmul.bf16.gmra.mxu0 %v4864
          %v4993 = vpop.f32.mrf.mxu0
          %v4994 = vadd.f32 0.0, %v4993
          %v4995 = vpop.f32.mrf.mxu0
          %v4996 = vadd.f32 0.0, %v4995
          %4997 = vmatmul.bf16.gmra.mxu0 %v4865
          %v4998 = vpop.f32.mrf.mxu0
          %v4999 = vadd.f32 0.0, %v4998
          %v5000 = vpop.f32.mrf.mxu0
          %v5001 = vadd.f32 0.0, %v5000
          %5002 = vmatmul.bf16.gmra.mxu0 %v4866
          %v5003 = vpop.f32.mrf.mxu0
          %v5004 = vadd.f32 0.0, %v5003
          %v5005 = vpop.f32.mrf.mxu0
          %v5006 = vadd.f32 0.0, %v5005
          %5007 = vmatmul.bf16.gmra.mxu0 %v4867
          %v5008 = vpop.f32.mrf.mxu0
          %v5009 = vadd.f32 0.0, %v5008
          %v5010 = vpop.f32.mrf.mxu0
          %v5011 = vadd.f32 0.0, %v5010
          %5012 = vmatmul.bf16.gmra.mxu0 %v4868
          %v5013 = vpop.f32.mrf.mxu0
          %v5014 = vadd.f32 0.0, %v5013
          %v5015 = vpop.f32.mrf.mxu0
          %v5016 = vadd.f32 0.0, %v5015
          %5017 = vmatmul.bf16.gmra.mxu0 %v4869
          %v5018 = vpop.f32.mrf.mxu0
          %v5019 = vadd.f32 0.0, %v5018
          %v5020 = vpop.f32.mrf.mxu0
          %v5021 = vadd.f32 0.0, %v5020
          %5022 = vmatmul.bf16.gmra.mxu0 %v4870
          %v5023 = vpop.f32.mrf.mxu0
          %v5024 = vadd.f32 0.0, %v5023
          %v5025 = vpop.f32.mrf.mxu0
          %v5026 = vadd.f32 0.0, %v5025
          %5027 = vmatmul.bf16.gmra.mxu0 %v4871
          %v5028 = vpop.f32.mrf.mxu0
          %v5029 = vadd.f32 0.0, %v5028
          %v5030 = vpop.f32.mrf.mxu0
          %v5031 = vadd.f32 0.0, %v5030
          %5032 = vmatmul.bf16.gmra.mxu0 %v4872
          %v5033 = vpop.f32.mrf.mxu0
          %v5034 = vadd.f32 0.0, %v5033
          %v5035 = vpop.f32.mrf.mxu0
          %v5036 = vadd.f32 0.0, %v5035
          %5037 = vmatmul.bf16.gmra.mxu0 %v4873
          %v5038 = vpop.f32.mrf.mxu0
          %v5039 = vadd.f32 0.0, %v5038
          %v5040 = vpop.f32.mrf.mxu0
          %v5041 = vadd.f32 0.0, %v5040
          %5042 = vmatmul.bf16.gmra.mxu0 %v4874
          %v5043 = vpop.f32.mrf.mxu0
          %v5044 = vadd.f32 0.0, %v5043
          %v5045 = vpop.f32.mrf.mxu0
          %v5046 = vadd.f32 0.0, %v5045
          %5047 = vmatmul.bf16.gmra.mxu0 %v4875
          %v5048 = vpop.f32.mrf.mxu0
          %v5049 = vadd.f32 0.0, %v5048
          %v5050 = vpop.f32.mrf.mxu0
          %v5051 = vadd.f32 0.0, %v5050
          %5052 = vmatmul.bf16.gmra.mxu0 %v4876
          %v5053 = vpop.f32.mrf.mxu0
          %v5054 = vadd.f32 0.0, %v5053
          %v5055 = vpop.f32.mrf.mxu0
          %v5056 = vadd.f32 0.0, %v5055
          %5057 = vmatmul.bf16.gmra.mxu0 %v4877
          %v5058 = vpop.f32.mrf.mxu0
          %v5059 = vadd.f32 0.0, %v5058
          %v5060 = vpop.f32.mrf.mxu0
          %v5061 = vadd.f32 0.0, %v5060
          %5062 = vdwg.mxu0
          %v5063 = vadd.f32 %v4878, %v4984
          %v5064 = vadd.f32 %v4879, %v4986
          %v5065 = vadd.f32 %v4880, %v4989
          %v5066 = vadd.f32 %v4881, %v4991
          %v5067 = vadd.f32 %v4882, %v4994
          %v5068 = vadd.f32 %v4883, %v4996
          %v5069 = vadd.f32 %v4884, %v4999
          %v5070 = vadd.f32 %v4885, %v5001
          %v5071 = vadd.f32 %v4886, %v5004
          %v5072 = vadd.f32 %v4887, %v5006
          %v5073 = vadd.f32 %v4888, %v5009
          %v5074 = vadd.f32 %v4889, %v5011
          %v5075 = vadd.f32 %v4890, %v5014
          %v5076 = vadd.f32 %v4891, %v5016
          %v5077 = vadd.f32 %v4892, %v5019
          %v5078 = vadd.f32 %v4893, %v5021
          %v5079 = vadd.f32 %v4894, %v5024
          %v5080 = vadd.f32 %v4895, %v5026
          %v5081 = vadd.f32 %v4896, %v5029
          %v5082 = vadd.f32 %v4897, %v5031
          %v5083 = vadd.f32 %v4898, %v5034
          %v5084 = vadd.f32 %v4899, %v5036
          %v5085 = vadd.f32 %v4900, %v5039
          %v5086 = vadd.f32 %v4901, %v5041
          %v5087 = vadd.f32 %v4902, %v5044
          %v5088 = vadd.f32 %v4903, %v5046
          %v5089 = vadd.f32 %v4904, %v5049
          %v5090 = vadd.f32 %v4905, %v5051
          %v5091 = vadd.f32 %v4906, %v5054
          %v5092 = vadd.f32 %v4907, %v5056
          %v5093 = vadd.f32 %v4908, %v5059
          %v5094 = vadd.f32 %v4909, %v5061
          %5095 = vst [vmem:[#allocation6] sm:$0xff] %v5063
          %5096 = vst [vmem:[#allocation6 + $0x8] sm:$0xff] %v5064
          %5097 = vst [vmem:[#allocation6 + $0x10] sm:$0xff] %v5065
          %5098 = vst [vmem:[#allocation6 + $0x18] sm:$0xff] %v5066
          %5099 = vst [vmem:[#allocation6 + $0x20] sm:$0xff] %v5067
          %5100 = vst [vmem:[#allocation6 + $0x28] sm:$0xff] %v5068
          %5101 = vst [vmem:[#allocation6 + $0x30] sm:$0xff] %v5069
          %5102 = vst [vmem:[#allocation6 + $0x38] sm:$0xff] %v5070
          %5103 = vst [vmem:[#allocation6 + $0x40] sm:$0xff] %v5071
          %5104 = vst [vmem:[#allocation6 + $0x48] sm:$0xff] %v5072
          %5105 = vst [vmem:[#allocation6 + $0x50] sm:$0xff] %v5073
          %5106 = vst [vmem:[#allocation6 + $0x58] sm:$0xff] %v5074
          %5107 = vst [vmem:[#allocation6 + $0x60] sm:$0xff] %v5075
          %5108 = vst [vmem:[#allocation6 + $0x68] sm:$0xff] %v5076
          %5109 = vst [vmem:[#allocation6 + $0x70] sm:$0xff] %v5077
          %5110 = vst [vmem:[#allocation6 + $0x78] sm:$0xff] %v5078
          %5111 = vst [vmem:[#allocation6 + $0x80] sm:$0xff] %v5079
          %5112 = vst [vmem:[#allocation6 + $0x88] sm:$0xff] %v5080
          %5113 = vst [vmem:[#allocation6 + $0x90] sm:$0xff] %v5081
          %5114 = vst [vmem:[#allocation6 + $0x98] sm:$0xff] %v5082
          %5115 = vst [vmem:[#allocation6 + $0xa0] sm:$0xff] %v5083
          %5116 = vst [vmem:[#allocation6 + $0xa8] sm:$0xff] %v5084
          %5117 = vst [vmem:[#allocation6 + $0xb0] sm:$0xff] %v5085
          %5118 = vst [vmem:[#allocation6 + $0xb8] sm:$0xff] %v5086
          %5119 = vst [vmem:[#allocation6 + $0xc0] sm:$0xff] %v5087
          %5120 = vst [vmem:[#allocation6 + $0xc8] sm:$0xff] %v5088
          %5121 = vst [vmem:[#allocation6 + $0xd0] sm:$0xff] %v5089
          %5122 = vst [vmem:[#allocation6 + $0xd8] sm:$0xff] %v5090
          %5123 = vst [vmem:[#allocation6 + $0xe0] sm:$0xff] %v5091
          %5124 = vst [vmem:[#allocation6 + $0xe8] sm:$0xff] %v5092
          %5125 = vst [vmem:[#allocation6 + $0xf0] sm:$0xff] %v5093
          %5126 = vst [vmem:[#allocation6 + $0xf8] sm:$0xff] %v5094
        $region153: #{tpu_custom_call.1} parent=108 // pred_fallthru
          _
        %p5127 = scmp.eq.s32.totalorder %s39, 1
        %p5128 = pnand %p2632, %p5127
        %p5129 = pneg %p5128
        // Predicated region
        $region154: #{tpu_custom_call.1} parent=108 // pred_check
          _
        $region155: #{tpu_custom_call.1} parent=108 // pred_check_branch
          %5131 = sbr.rel (%p5128) target = $region157
        $region156: #{tpu_custom_call.1} parent=108 // pred_region
          %v5132 = vld [vmem:[#allocation6] sm:$0xff]
          %v5133 = vld [vmem:[#allocation6 + $0x8] sm:$0xff]
          %v5134 = vld [vmem:[#allocation6 + $0x10] sm:$0xff]
          %v5135 = vld [vmem:[#allocation6 + $0x18] sm:$0xff]
          %v5136 = vld [vmem:[#allocation6 + $0x20] sm:$0xff]
          %v5137 = vld [vmem:[#allocation6 + $0x28] sm:$0xff]
          %v5138 = vld [vmem:[#allocation6 + $0x30] sm:$0xff]
          %v5139 = vld [vmem:[#allocation6 + $0x38] sm:$0xff]
          %v5140 = vld [vmem:[#allocation6 + $0x40] sm:$0xff]
          %v5141 = vld [vmem:[#allocation6 + $0x48] sm:$0xff]
          %v5142 = vld [vmem:[#allocation6 + $0x50] sm:$0xff]
          %v5143 = vld [vmem:[#allocation6 + $0x58] sm:$0xff]
          %v5144 = vld [vmem:[#allocation6 + $0x60] sm:$0xff]
          %v5145 = vld [vmem:[#allocation6 + $0x68] sm:$0xff]
          %v5146 = vld [vmem:[#allocation6 + $0x70] sm:$0xff]
          %v5147 = vld [vmem:[#allocation6 + $0x78] sm:$0xff]
          %v5148 = vld [vmem:[#allocation6 + $0x80] sm:$0xff]
          %v5149 = vld [vmem:[#allocation6 + $0x88] sm:$0xff]
          %v5150 = vld [vmem:[#allocation6 + $0x90] sm:$0xff]
          %v5151 = vld [vmem:[#allocation6 + $0x98] sm:$0xff]
          %v5152 = vld [vmem:[#allocation6 + $0xa0] sm:$0xff]
          %v5153 = vld [vmem:[#allocation6 + $0xa8] sm:$0xff]
          %v5154 = vld [vmem:[#allocation6 + $0xb0] sm:$0xff]
          %v5155 = vld [vmem:[#allocation6 + $0xb8] sm:$0xff]
          %v5156 = vld [vmem:[#allocation6 + $0xc0] sm:$0xff]
          %v5157 = vld [vmem:[#allocation6 + $0xc8] sm:$0xff]
          %v5158 = vld [vmem:[#allocation6 + $0xd0] sm:$0xff]
          %v5159 = vld [vmem:[#allocation6 + $0xd8] sm:$0xff]
          %v5160 = vld [vmem:[#allocation6 + $0xe0] sm:$0xff]
          %v5161 = vld [vmem:[#allocation6 + $0xe8] sm:$0xff]
          %v5162 = vld [vmem:[#allocation6 + $0xf0] sm:$0xff]
          %v5163 = vld [vmem:[#allocation6 + $0xf8] sm:$0xff]
          %v5164 = vld [vmem:[%s12] sm:$0x1]
          %v5166 = vperm.slane %v5164, 0
          %v5168 = vadd.f32 %v5132, %v5166
          %v5169 = vadd.f32 %v5133, %v5166
          %v5170 = vadd.f32 %v5134, %v5166
          %v5171 = vadd.f32 %v5135, %v5166
          %v5172 = vadd.f32 %v5136, %v5166
          %v5173 = vadd.f32 %v5137, %v5166
          %v5174 = vadd.f32 %v5138, %v5166
          %v5175 = vadd.f32 %v5139, %v5166
          %v5176 = vadd.f32 %v5140, %v5166
          %v5177 = vadd.f32 %v5141, %v5166
          %v5178 = vadd.f32 %v5142, %v5166
          %v5179 = vadd.f32 %v5143, %v5166
          %v5180 = vadd.f32 %v5144, %v5166
          %v5181 = vadd.f32 %v5145, %v5166
          %v5182 = vadd.f32 %v5146, %v5166
          %v5183 = vadd.f32 %v5147, %v5166
          %v5184 = vadd.f32 %v5148, %v5166
          %v5185 = vadd.f32 %v5149, %v5166
          %v5186 = vadd.f32 %v5150, %v5166
          %v5187 = vadd.f32 %v5151, %v5166
          %v5188 = vadd.f32 %v5152, %v5166
          %v5189 = vadd.f32 %v5153, %v5166
          %v5190 = vadd.f32 %v5154, %v5166
          %v5191 = vadd.f32 %v5155, %v5166
          %v5192 = vadd.f32 %v5156, %v5166
          %v5193 = vadd.f32 %v5157, %v5166
          %v5194 = vadd.f32 %v5158, %v5166
          %v5195 = vadd.f32 %v5159, %v5166
          %v5196 = vadd.f32 %v5160, %v5166
          %v5197 = vadd.f32 %v5161, %v5166
          %v5198 = vadd.f32 %v5162, %v5166
          %v5199 = vadd.f32 %v5163, %v5166
          %v5200 = vld [vmem:[%s643] sm:$0xff]
          %v5201 = vld [vmem:[%s643 + $0x8] sm:$0xff]
          %v5202 = vld [vmem:[%s643 + $0x10] sm:$0xff]
          %v5203 = vld [vmem:[%s643 + $0x18] sm:$0xff]
          %v5204 = vld [vmem:[%s643 + $0x20] sm:$0xff]
          %v5205 = vld [vmem:[%s643 + $0x28] sm:$0xff]
          %v5206 = vld [vmem:[%s643 + $0x30] sm:$0xff]
          %v5207 = vld [vmem:[%s643 + $0x38] sm:$0xff]
          %v5208 = vld [vmem:[%s643 + $0x40] sm:$0xff]
          %v5209 = vld [vmem:[%s643 + $0x48] sm:$0xff]
          %v5210 = vld [vmem:[%s643 + $0x50] sm:$0xff]
          %v5211 = vld [vmem:[%s643 + $0x58] sm:$0xff]
          %v5212 = vld [vmem:[%s643 + $0x60] sm:$0xff]
          %v5213 = vld [vmem:[%s643 + $0x68] sm:$0xff]
          %v5214 = vld [vmem:[%s643 + $0x70] sm:$0xff]
          %v5215 = vld [vmem:[%s643 + $0x78] sm:$0xff]
          %v5216 = vld [vmem:[%s643 + $0x80] sm:$0xff]
          %v5217 = vld [vmem:[%s643 + $0x88] sm:$0xff]
          %v5218 = vld [vmem:[%s643 + $0x90] sm:$0xff]
          %v5219 = vld [vmem:[%s643 + $0x98] sm:$0xff]
          %v5220 = vld [vmem:[%s643 + $0xa0] sm:$0xff]
          %v5221 = vld [vmem:[%s643 + $0xa8] sm:$0xff]
          %v5222 = vld [vmem:[%s643 + $0xb0] sm:$0xff]
          %v5223 = vld [vmem:[%s643 + $0xb8] sm:$0xff]
          %v5224 = vld [vmem:[%s643 + $0xc0] sm:$0xff]
          %v5225 = vld [vmem:[%s643 + $0xc8] sm:$0xff]
          %v5226 = vld [vmem:[%s643 + $0xd0] sm:$0xff]
          %v5227 = vld [vmem:[%s643 + $0xd8] sm:$0xff]
          %v5228 = vld [vmem:[%s643 + $0xe0] sm:$0xff]
          %v5229 = vld [vmem:[%s643 + $0xe8] sm:$0xff]
          %v5230 = vld [vmem:[%s643 + $0xf0] sm:$0xff]
          %v5231 = vld [vmem:[%s643 + $0xf8] sm:$0xff]
          %v5232 = vadd.f32 %v5168, %v5200
          %v5233 = vadd.f32 %v5169, %v5201
          %v5234 = vadd.f32 %v5170, %v5202
          %v5235 = vadd.f32 %v5171, %v5203
          %v5236 = vadd.f32 %v5172, %v5204
          %v5237 = vadd.f32 %v5173, %v5205
          %v5238 = vadd.f32 %v5174, %v5206
          %v5239 = vadd.f32 %v5175, %v5207
          %v5240 = vadd.f32 %v5176, %v5208
          %v5241 = vadd.f32 %v5177, %v5209
          %v5242 = vadd.f32 %v5178, %v5210
          %v5243 = vadd.f32 %v5179, %v5211
          %v5244 = vadd.f32 %v5180, %v5212
          %v5245 = vadd.f32 %v5181, %v5213
          %v5246 = vadd.f32 %v5182, %v5214
          %v5247 = vadd.f32 %v5183, %v5215
          %v5248 = vadd.f32 %v5184, %v5216
          %v5249 = vadd.f32 %v5185, %v5217
          %v5250 = vadd.f32 %v5186, %v5218
          %v5251 = vadd.f32 %v5187, %v5219
          %v5252 = vadd.f32 %v5188, %v5220
          %v5253 = vadd.f32 %v5189, %v5221
          %v5254 = vadd.f32 %v5190, %v5222
          %v5255 = vadd.f32 %v5191, %v5223
          %v5256 = vadd.f32 %v5192, %v5224
          %v5257 = vadd.f32 %v5193, %v5225
          %v5258 = vadd.f32 %v5194, %v5226
          %v5259 = vadd.f32 %v5195, %v5227
          %v5260 = vadd.f32 %v5196, %v5228
          %v5261 = vadd.f32 %v5197, %v5229
          %v5262 = vadd.f32 %v5198, %v5230
          %v5263 = vadd.f32 %v5199, %v5231
          %5264 = vst [vmem:[%s742] sm:$0xff] %v5232
          %5265 = vst [vmem:[%s742 + $0x8] sm:$0xff] %v5233
          %5266 = vst [vmem:[%s742 + $0x10] sm:$0xff] %v5234
          %5267 = vst [vmem:[%s742 + $0x18] sm:$0xff] %v5235
          %5268 = vst [vmem:[%s742 + $0x20] sm:$0xff] %v5236
          %5269 = vst [vmem:[%s742 + $0x28] sm:$0xff] %v5237
          %5270 = vst [vmem:[%s742 + $0x30] sm:$0xff] %v5238
          %5271 = vst [vmem:[%s742 + $0x38] sm:$0xff] %v5239
          %5272 = vst [vmem:[%s742 + $0x40] sm:$0xff] %v5240
          %5273 = vst [vmem:[%s742 + $0x48] sm:$0xff] %v5241
          %5274 = vst [vmem:[%s742 + $0x50] sm:$0xff] %v5242
          %5275 = vst [vmem:[%s742 + $0x58] sm:$0xff] %v5243
          %5276 = vst [vmem:[%s742 + $0x60] sm:$0xff] %v5244
          %5277 = vst [vmem:[%s742 + $0x68] sm:$0xff] %v5245
          %5278 = vst [vmem:[%s742 + $0x70] sm:$0xff] %v5246
          %5279 = vst [vmem:[%s742 + $0x78] sm:$0xff] %v5247
          %5280 = vst [vmem:[%s742 + $0x80] sm:$0xff] %v5248
          %5281 = vst [vmem:[%s742 + $0x88] sm:$0xff] %v5249
          %5282 = vst [vmem:[%s742 + $0x90] sm:$0xff] %v5250
          %5283 = vst [vmem:[%s742 + $0x98] sm:$0xff] %v5251
          %5284 = vst [vmem:[%s742 + $0xa0] sm:$0xff] %v5252
          %5285 = vst [vmem:[%s742 + $0xa8] sm:$0xff] %v5253
          %5286 = vst [vmem:[%s742 + $0xb0] sm:$0xff] %v5254
          %5287 = vst [vmem:[%s742 + $0xb8] sm:$0xff] %v5255
          %5288 = vst [vmem:[%s742 + $0xc0] sm:$0xff] %v5256
          %5289 = vst [vmem:[%s742 + $0xc8] sm:$0xff] %v5257
          %5290 = vst [vmem:[%s742 + $0xd0] sm:$0xff] %v5258
          %5291 = vst [vmem:[%s742 + $0xd8] sm:$0xff] %v5259
          %5292 = vst [vmem:[%s742 + $0xe0] sm:$0xff] %v5260
          %5293 = vst [vmem:[%s742 + $0xe8] sm:$0xff] %v5261
          %5294 = vst [vmem:[%s742 + $0xf0] sm:$0xff] %v5262
          %5295 = vst [vmem:[%s742 + $0xf8] sm:$0xff] %v5263
        $region157: #{tpu_custom_call.1} parent=108 // pred_fallthru
          _
        %s5296 = sand.u32 %s362, 1
        %s5297 = scalar_lea.sflag [#allocation9], %s5296
        %s5298 = sand.u32 %s362, 1
        %s5299 = smul.addr %s5298, 256
        %s5300 = scalar_lea.vmem [#allocation18], %s5299
        // Predicated region
        $region158: #{tpu_custom_call.1} parent=108 // pred_check
          %p5301 = pneg %p372
        $region159: #{tpu_custom_call.1} parent=108 // pred_check_branch
          %5303 = sbr.rel (%p5301) target = $region161
        $region160: #{tpu_custom_call.1} parent=108 // pred_region
          %5305 = vsyncadd %s5297, 0
          %s5306 = smul.addr %s37, 32
          %s5307 = smul.addr %s5306, 8
          %s5308 = scalar_lea.hbm %s13, %s5307
          %s5309 = sshll.u32 %s5300, 4
          %s5310 = int_to_ptr.vmem [resolvable:$true] %s5309
          %s5311 = sshll.u32 %s5308, 4
          %s5312 = int_to_ptr.hbm [resolvable:$true] %s5311
          %5317 = dma.vmem_to_hbm [thread:$0]  %s5310, 4096, %s5312, %s5297, 128, 128, 8
        $region161: #{tpu_custom_call.1} parent=108 // pred_fallthru
          _
      $region109: #{tpu_custom_call.1} parent=5 // pred_fallthru
        _
      %p5318 = scmp.le.s32.totalorder 2, %s27
      // Predicated region
      $region162: #{tpu_custom_call.1} parent=5 // pred_check
        %p5319 = pneg %p5318
      $region163: #{tpu_custom_call.1} parent=5 // pred_check_branch
        %5321 = sbr.rel (%p5319) target = $region165
      $region164: #{tpu_custom_call.1} parent=5 // pred_region
        %s5322 = ssub.s32 %s27, 2
        // Predicated region
        $region166: #{tpu_custom_call.1} parent=164 // pred_check
          %p5323 = pneg %p378
        $region167: #{tpu_custom_call.1} parent=164 // pred_check_branch
          %5325 = sbr.rel (%p5323) target = $region169
        $region168: #{tpu_custom_call.1} parent=164 // pred_region
          %s5326 = sand.u32 %s363, 1
          %s5327 = scalar_lea.sflag [#allocation9], %s5326
          %s5328 = sand.u32 %s363, 1
          %s5329 = smul.addr %s5328, 256
          %s5330 = scalar_lea.vmem [#allocation18], %s5329
          %5332 = dma.done %s5327, 4096
        $region169: #{tpu_custom_call.1} parent=164 // pred_fallthru
          _
      $region165: #{tpu_custom_call.1} parent=5 // pred_fallthru
        _
    $region6: #{tpu_custom_call.1} parent=1 // loop_footer
      %s31 = sadd.s32 1, %s27
    $region7: #{tpu_custom_call.1} parent=1 // loop_footer_branch
      %26 = sbr.rel target = $region3
    $region8: #{tpu_custom_call.1} parent=1 // loop_exit
      _
    %5333 = vsyncpa [#allocation8], 1
    %s5334 = scalar_lea.sflag [#allocation8], 1
    %5335 = vsyncpa %s5334, 1
    %5336 = vsyncpa [#allocation11], 1
    %5337 = vsyncpa [#allocation16], 1
    %5338 = vsyncpa [#allocation9], 1
    %s5339 = scalar_lea.sflag [#allocation9], 1
    %5340 = vsyncpa %s5339, 1

</llo_original>
